<compile_context>
chip_gen: v7x
topology: tpu7x:2x2x1
jax: 0.10.0
libtpu: 0.0.40
codegen_flags: <defaults>
</compile_context>

<pallas_src>
import jax
import jax.numpy as jnp
from jax.experimental import pallas as pl
from jax.experimental.pallas import tpu as pltpu


# ----------------------------- Pallas kernel ------------------------------- #
# Layout inside the kernel (per batch tile of Bt samples):
#   xT : (D, Bt)        input poses, batch on lanes
#   cT : (Cc*F, Bt)     conditioning, rows = cond_channel*F + f
#   h  : (F, Bt)        single-channel feature map after in_layer
#   h1 : (Ch*F, Bt)     ResNet hidden activations
#   out: (L, Bt)        latent, batch on lanes (lane-dense stores)

def encoder_kernel(xT_ref, cT_ref,
                   w_inT_ref, b_in_ref,
                   W1h_ref, W1c_ref, b1_ref,
                   W2_ref, b2_ref,
                   Wsh_ref, Wsc_ref,
                   W3_ref, b3_ref,
                   W4_ref, b4_ref,
                   Wo_ref, bo_ref,
                   w_outT_ref, b_out_ref,
                   out_ref):
    f32 = jnp.float32
    xT = xT_ref[...]                                   # (D, Bt)
    cT = cT_ref[...]                                   # (Cc*F, Bt)

    # in_layer: Linear(D -> F), transposed   h = W_in^T x + b_in
    h = jnp.dot(w_inT_ref[...], xT, preferred_element_type=f32) + b_in_ref[...]

    # --- ResNet block 1 (cond concat folded into split weight matrices) ---
    t = (jnp.dot(W1h_ref[...], h, preferred_element_type=f32)
         + jnp.dot(W1c_ref[...], cT, preferred_element_type=f32)
         + b1_ref[...])
    t = jax.nn.silu(t)
    t = jnp.dot(W2_ref[...], t, preferred_element_type=f32) + b2_ref[...]
    skip = (jnp.dot(Wsh_ref[...], h, preferred_element_type=f32)
            + jnp.dot(Wsc_ref[...], cT, preferred_element_type=f32))
    h1 = t + skip                                      # (Ch*F, Bt)

    # --- ResNet block 2 (identity skip) ---
    t = jax.nn.silu(
        jnp.dot(W3_ref[...], h1, preferred_element_type=f32) + b3_ref[...])
    t = jnp.dot(W4_ref[...], t, preferred_element_type=f32) + b4_ref[...]
    h2 = t + h1                                        # (Ch*F, Bt)

    # 1x1 conv back to a single channel                # (F, Bt)
    o = jnp.dot(Wo_ref[...], h2, preferred_element_type=f32) + bo_ref[...]

    # out_layer: Linear(F -> L), transposed -> lane-dense (L, Bt) store
    y = jnp.dot(w_outT_ref[...], o, preferred_element_type=f32) + b_out_ref[...]
    out_ref[...] = y.astype(out_ref.dtype)


# ------------------- host-side weight folding (no kernel work) -------------- #

_KP_ORDER = ("w_inT", "b_in", "W1h", "W1c", "b1", "W2", "b2",
             "Wsh", "Wsc", "W3", "b3", "W4", "b4", "Wo", "bo",
             "w_outT", "b_out")


def fold_params(p, F):
    """Turn raw conv/linear params into the matmul-only form used by the kernel."""
    eye = jnp.eye(F, dtype=jnp.float32)
    lo = jnp.eye(F, k=-1, dtype=jnp.float32)   # tap k=0 reads f-1
    hi = jnp.eye(F, k=1, dtype=jnp.float32)    # tap k=2 reads f+1

    def conv3_mat(w):    # (3, Cout, Cin) -> (Cout*F, Cin*F), zero-padded k=3 conv
        return jnp.kron(w[0], lo) + jnp.kron(w[1], eye) + jnp.kron(w[2], hi)

    def conv1_mat(w):    # (Cout, Cin) -> (Cout*F, Cin*F)
        return jnp.kron(w, eye)

    def bias_col(b):     # (Cout, ...) -> (Cout*F, 1)
        return jnp.repeat(jnp.reshape(b, (-1,)), F)[:, None]

    W1 = conv3_mat(p["w1"])          # (Ch*F, (1+Cc)*F)
    Wsk = conv1_mat(p["wskip"])      # (Ch*F, (1+Cc)*F)
    return dict(
        w_inT=jnp.transpose(p["w_in"]),          # (F, D)
        b_in=jnp.reshape(p["b_in"], (-1, 1)),    # (F, 1)
        W1h=W1[:, :F], W1c=W1[:, F:],            # split = folded channel concat
        b1=bias_col(p["b1"]),
        W2=conv3_mat(p["w2"]), b2=bias_col(p["b2"]),
        Wsh=Wsk[:, :F], Wsc=Wsk[:, F:],
        W3=conv3_mat(p["w3"]), b3=bias_col(p["b3"]),
        W4=conv3_mat(p["w4"]), b4=bias_col(p["b4"]),
        Wo=conv1_mat(p["wo"]), bo=bias_col(p["bo"]),   # (F, Ch*F), (F, 1)
        w_outT=jnp.transpose(p["w_out"]),        # (L, F)
        b_out=jnp.reshape(p["b_out"], (-1, 1)),  # (L, 1)
    )


# ------------------------------- wrapper ------------------------------------ #

def conditional_grasp_pose_encoder(x, cond, params, *, block_b=128):
    """x: (B, 1, D), cond: (B, Cc, F)  ->  (B, 1, L)."""
    B, _, D = x.shape
    Cc, Fc = cond.shape[1], cond.shape[2]
    F = params["w_in"].shape[1]
    L = params["w_out"].shape[1]
    assert Fc == F, "cond feature dim must equal feature_resolution"

    kp = fold_params(params, F)
    weights = [kp[name] for name in _KP_ORDER]

    Bt = block_b
    nb = pl.cdiv(B, Bt)
    Bp = nb * Bt

    # Batch goes to lanes: transpose once in the wrapper (XLA side).
    xT = jnp.transpose(x[:, 0, :]).astype(jnp.float32)                 # (D, B)
    cT = jnp.transpose(jnp.reshape(cond, (B, Cc * F))).astype(jnp.float32)
    if Bp != B:
        xT = jnp.pad(xT, ((0, 0), (0, Bp - B)))
        cT = jnp.pad(cT, ((0, 0), (0, Bp - B)))

    def col_spec(rows):
        return pl.BlockSpec((rows, Bt), lambda i: (0, i))

    def full_spec(shape):
        return pl.BlockSpec(shape, lambda i: (0, 0))

    in_specs = ([col_spec(D), col_spec(Cc * F)]
                + [full_spec(w.shape) for w in weights])
    out_specs = col_spec(L)

    yT = pl.pallas_call(
        encoder_kernel,
        out_shape=jax.ShapeDtypeStruct((L, Bp), jnp.float32),
        grid=(nb,),
        in_specs=in_specs,
        out_specs=out_specs,
        compiler_params=pltpu.CompilerParams(
            dimension_semantics=("parallel",)),
    )(xT, cT, *weights)

    return jnp.transpose(yT[:, :B])[:, None, :]                        # (B, 1, L)


# ------------------------- deterministic parameters ------------------------- #

def init_params(key, D, F, L, Cc, Ch):
    Cin = 1 + Cc
    ks = jax.random.split(key, 8)

    def w(k, shape, fan_in):
        return (jax.random.normal(k, shape, jnp.float32)
                / jnp.sqrt(jnp.float32(fan_in)))

    return dict(
        # in_layer (pre-transposed storage: h = x @ w_in + b_in)
        w_in=w(ks[0], (D, F), D),
        b_in=jnp.full((1, F), 0.01, jnp.float32),
        # ResNet1D stand-in
        w1=w(ks[1], (3, Ch, Cin), 3 * Cin),
        b1=jnp.zeros((Ch, 1), jnp.float32),
        w2=w(ks[2], (3, Ch, Ch), 3 * Ch),
        b2=jnp.zeros((Ch, 1), jnp.float32),
        wskip=w(ks[3], (Ch, Cin), Cin),
        w3=w(ks[4], (3, Ch, Ch), 3 * Ch),
        b3=jnp.zeros((Ch, 1), jnp.float32),
        w4=w(ks[5], (3, Ch, Ch), 3 * Ch),
        b4=jnp.zeros((Ch, 1), jnp.float32),
        wo=w(ks[6], (1, Ch), Ch),
        bo=jnp.full((1, 1), 0.01, jnp.float32),
        # out_layer (pre-transposed storage: y = o @ w_out + b_out)
        w_out=w(ks[7], (F, L), F),
        b_out=jnp.full((1, L), 0.01, jnp.float32),
    )


# ------------------------------ pure-JAX ref -------------------------------- #

def ref_forward(x, cond, p):
    hp = "highest"
    h = jnp.einsum("bod,df->bof", x, p["w_in"], precision=hp) + p["b_in"][None]
    hc = jnp.concatenate([h, cond], axis=1)

    def conv3(inp, w, b):
        T = inp.shape[2]
        pad = jnp.pad(inp, ((0, 0), (0, 0), (1, 1)))
        out = jnp.broadcast_to(b[None], (inp.shape[0], w.shape[1], T))
        for k in range(3):
            out = out + jnp.einsum("oc,bct->bot", w[k], pad[:, :, k:k + T],
                                   precision=hp)
        return out

    t = jax.nn.silu(conv3(hc, p["w1"], p["b1"]))
    t = conv3(t, p["w2"], p["b2"])
    h1 = t + jnp.einsum("oc,bct->bot", p["wskip"], hc, precision=hp)
    t = jax.nn.silu(conv3(h1, p["w3"], p["b3"]))
    t = conv3(t, p["w4"], p["b4"])
    h2 = t + h1
    o = jnp.einsum("oc,bct->bot", p["wo"], h2, precision=hp) + p["bo"][None]
    return jnp.einsum("bof,fl->bol", o, p["w_out"], precision=hp) + p["b_out"][None]


# --------------------------------- main ------------------------------------- #

if __name__ == "__main__":
    B = 256        # batch (two 128-sample tiles per the batched grid)
    D = 7          # in_features (grasp pose dim)
    F = 16         # feature_resolution
    L = 8          # latent_size
    Cc = 4         # cond channels
    Dc = F         # cond feature dim (== feature_resolution)
    Ch = 8         # hidden channels in the ResNet1D stand-in

    key = jax.random.PRNGKey(0)
    kx, kc, kp = jax.random.split(key, 3)
    x = jax.random.normal(kx, (B, 1, D), jnp.float32)
    cond = jax.random.normal(kc, (B, Cc, Dc), jnp.float32)
    params = init_params(kp, D, F, L, Cc, Ch)

    encoder = jax.jit(conditional_grasp_pose_encoder)
    out = jax.block_until_ready(encoder(x, cond, params))

    ref = ref_forward(x, cond, params)
    assert out.shape == (B, 1, L), out.shape
    assert jnp.allclose(out, ref, atol=5e-4, rtol=5e-4), (
        "Pallas kernel mismatch vs JAX reference")

    print("KERNEL_OK")
</pallas_src>

<mosaic_0001>
module attributes {stable_mosaic.version = 11 : i64} {
  func.func @encoder_kernel(%arg0: i32, %arg1: memref<7x128xf32, #tpu.memory_space<vmem>>, %arg2: memref<64x128xf32, #tpu.memory_space<vmem>>, %arg3: memref<16x7xf32, #tpu.memory_space<vmem>>, %arg4: memref<16x1xf32, #tpu.memory_space<vmem>>, %arg5: memref<128x16xf32, #tpu.memory_space<vmem>>, %arg6: memref<128x64xf32, #tpu.memory_space<vmem>>, %arg7: memref<128x1xf32, #tpu.memory_space<vmem>>, %arg8: memref<128x128xf32, #tpu.memory_space<vmem>>, %arg9: memref<128x1xf32, #tpu.memory_space<vmem>>, %arg10: memref<128x16xf32, #tpu.memory_space<vmem>>, %arg11: memref<128x64xf32, #tpu.memory_space<vmem>>, %arg12: memref<128x128xf32, #tpu.memory_space<vmem>>, %arg13: memref<128x1xf32, #tpu.memory_space<vmem>>, %arg14: memref<128x128xf32, #tpu.memory_space<vmem>>, %arg15: memref<128x1xf32, #tpu.memory_space<vmem>>, %arg16: memref<16x128xf32, #tpu.memory_space<vmem>>, %arg17: memref<16x1xf32, #tpu.memory_space<vmem>>, %arg18: memref<8x16xf32, #tpu.memory_space<vmem>>, %arg19: memref<8x1xf32, #tpu.memory_space<vmem>>, %arg20: memref<8x128xf32, #tpu.memory_space<vmem>>) attributes {dimension_semantics = [#tpu.dimension_semantics<parallel>], iteration_bounds = array<i64: 2>, scalar_prefetch = 0 : i64, scratch_operands = 0 : i64, tpu.core_type = #tpu.core_type<tc>, window_params = [{transform_indices = @transform_0, window_bounds = array<i64: 7, 128>}, {transform_indices = @transform_1, window_bounds = array<i64: 64, 128>}, {pipeline_mode = #tpu.pipeline_mode<synchronous>, transform_indices = @transform_2, window_bounds = array<i64: 16, 7>}, {pipeline_mode = #tpu.pipeline_mode<synchronous>, transform_indices = @transform_3, window_bounds = array<i64: 16, 1>}, {pipeline_mode = #tpu.pipeline_mode<synchronous>, transform_indices = @transform_4, window_bounds = array<i64: 128, 16>}, {pipeline_mode = #tpu.pipeline_mode<synchronous>, transform_indices = @transform_5, window_bounds = array<i64: 128, 64>}, {pipeline_mode = #tpu.pipeline_mode<synchronous>, transform_indices = @transform_6, window_bounds = array<i64: 128, 1>}, {pipeline_mode = #tpu.pipeline_mode<synchronous>, transform_indices = @transform_7, window_bounds = array<i64: 128, 128>}, {pipeline_mode = #tpu.pipeline_mode<synchronous>, transform_indices = @transform_8, window_bounds = array<i64: 128, 1>}, {pipeline_mode = #tpu.pipeline_mode<synchronous>, transform_indices = @transform_9, window_bounds = array<i64: 128, 16>}, {pipeline_mode = #tpu.pipeline_mode<synchronous>, transform_indices = @transform_10, window_bounds = array<i64: 128, 64>}, {pipeline_mode = #tpu.pipeline_mode<synchronous>, transform_indices = @transform_11, window_bounds = array<i64: 128, 128>}, {pipeline_mode = #tpu.pipeline_mode<synchronous>, transform_indices = @transform_12, window_bounds = array<i64: 128, 1>}, {pipeline_mode = #tpu.pipeline_mode<synchronous>, transform_indices = @transform_13, window_bounds = array<i64: 128, 128>}, {pipeline_mode = #tpu.pipeline_mode<synchronous>, transform_indices = @transform_14, window_bounds = array<i64: 128, 1>}, {pipeline_mode = #tpu.pipeline_mode<synchronous>, transform_indices = @transform_15, window_bounds = array<i64: 16, 128>}, {pipeline_mode = #tpu.pipeline_mode<synchronous>, transform_indices = @transform_16, window_bounds = array<i64: 16, 1>}, {pipeline_mode = #tpu.pipeline_mode<synchronous>, transform_indices = @transform_17, window_bounds = array<i64: 8, 16>}, {pipeline_mode = #tpu.pipeline_mode<synchronous>, transform_indices = @transform_18, window_bounds = array<i64: 8, 1>}, {transform_indices = @transform_19, window_bounds = array<i64: 8, 128>}]} {
    %c0 = arith.constant 0 : index
    %c0_0 = arith.constant 0 : index
    %0 = vector.load %arg1[%c0, %c0_0] : memref<7x128xf32, #tpu.memory_space<vmem>>, vector<7x128xf32>
    %c0_1 = arith.constant 0 : index
    %c0_2 = arith.constant 0 : index
    %1 = vector.load %arg2[%c0_1, %c0_2] : memref<64x128xf32, #tpu.memory_space<vmem>>, vector<64x128xf32>
    %c0_3 = arith.constant 0 : index
    %c0_4 = arith.constant 0 : index
    %2 = vector.load %arg3[%c0_3, %c0_4] : memref<16x7xf32, #tpu.memory_space<vmem>>, vector<16x7xf32>
    %cst = arith.constant dense<0.000000e+00> : vector<16x128xf32>
    %3 = tpu.matmul %2, %0, %cst {dimension_numbers = #tpu.dot_dimension_numbers<[1], [0], [0], [1], [0, 0, 1, 1], [], []>} : vector<16x7xf32>, vector<7x128xf32>, vector<16x128xf32> -> vector<16x128xf32>
    %c0_5 = arith.constant 0 : index
    %c0_6 = arith.constant 0 : index
    %4 = vector.load %arg4[%c0_5, %c0_6] : memref<16x1xf32, #tpu.memory_space<vmem>>, vector<16x1xf32>
    %5 = vector.broadcast %4 : vector<16x1xf32> to vector<16x128xf32>
    %6 = arith.addf %3, %5 : vector<16x128xf32>
    %c0_7 = arith.constant 0 : index
    %c0_8 = arith.constant 0 : index
    %7 = vector.load %arg5[%c0_7, %c0_8] : memref<128x16xf32, #tpu.memory_space<vmem>>, vector<128x16xf32>
    %cst_9 = arith.constant dense<0.000000e+00> : vector<128x128xf32>
    %8 = tpu.matmul %7, %6, %cst_9 {dimension_numbers = #tpu.dot_dimension_numbers<[1], [0], [0], [1], [0, 0, 1, 1], [], []>} : vector<128x16xf32>, vector<16x128xf32>, vector<128x128xf32> -> vector<128x128xf32>
    %c0_10 = arith.constant 0 : index
    %c0_11 = arith.constant 0 : index
    %9 = vector.load %arg6[%c0_10, %c0_11] : memref<128x64xf32, #tpu.memory_space<vmem>>, vector<128x64xf32>
    %cst_12 = arith.constant dense<0.000000e+00> : vector<128x128xf32>
    %10 = tpu.matmul %9, %1, %cst_12 {dimension_numbers = #tpu.dot_dimension_numbers<[1], [0], [0], [1], [0, 0, 1, 1], [], []>} : vector<128x64xf32>, vector<64x128xf32>, vector<128x128xf32> -> vector<128x128xf32>
    %11 = arith.addf %8, %10 : vector<128x128xf32>
    %c0_13 = arith.constant 0 : index
    %c0_14 = arith.constant 0 : index
    %12 = vector.load %arg7[%c0_13, %c0_14] : memref<128x1xf32, #tpu.memory_space<vmem>>, vector<128x1xf32>
    %13 = vector.broadcast %12 : vector<128x1xf32> to vector<128x128xf32>
    %14 = arith.addf %11, %13 : vector<128x128xf32>
    %15 = arith.negf %14 : vector<128x128xf32>
    %16 = math.exp %15 : vector<128x128xf32>
    %cst_15 = arith.constant 1.000000e+00 : f32
    %17 = vector.broadcast %cst_15 : f32 to vector<128x128xf32>
    %18 = arith.addf %17, %16 : vector<128x128xf32>
    %19 = arith.divf %17, %18 : vector<128x128xf32>
    %20 = arith.mulf %14, %19 : vector<128x128xf32>
    %c0_16 = arith.constant 0 : index
    %c0_17 = arith.constant 0 : index
    %21 = vector.load %arg8[%c0_16, %c0_17] : memref<128x128xf32, #tpu.memory_space<vmem>>, vector<128x128xf32>
    %cst_18 = arith.constant dense<0.000000e+00> : vector<128x128xf32>
    %22 = tpu.matmul %21, %20, %cst_18 {dimension_numbers = #tpu.dot_dimension_numbers<[1], [0], [0], [1], [0, 0, 1, 1], [], []>} : vector<128x128xf32>, vector<128x128xf32>, vector<128x128xf32> -> vector<128x128xf32>
    %c0_19 = arith.constant 0 : index
    %c0_20 = arith.constant 0 : index
    %23 = vector.load %arg9[%c0_19, %c0_20] : memref<128x1xf32, #tpu.memory_space<vmem>>, vector<128x1xf32>
    %24 = vector.broadcast %23 : vector<128x1xf32> to vector<128x128xf32>
    %25 = arith.addf %22, %24 : vector<128x128xf32>
    %c0_21 = arith.constant 0 : index
    %c0_22 = arith.constant 0 : index
    %26 = vector.load %arg10[%c0_21, %c0_22] : memref<128x16xf32, #tpu.memory_space<vmem>>, vector<128x16xf32>
    %cst_23 = arith.constant dense<0.000000e+00> : vector<128x128xf32>
    %27 = tpu.matmul %26, %6, %cst_23 {dimension_numbers = #tpu.dot_dimension_numbers<[1], [0], [0], [1], [0, 0, 1, 1], [], []>} : vector<128x16xf32>, vector<16x128xf32>, vector<128x128xf32> -> vector<128x128xf32>
    %c0_24 = arith.constant 0 : index
    %c0_25 = arith.constant 0 : index
    %28 = vector.load %arg11[%c0_24, %c0_25] : memref<128x64xf32, #tpu.memory_space<vmem>>, vector<128x64xf32>
    %cst_26 = arith.constant dense<0.000000e+00> : vector<128x128xf32>
    %29 = tpu.matmul %28, %1, %cst_26 {dimension_numbers = #tpu.dot_dimension_numbers<[1], [0], [0], [1], [0, 0, 1, 1], [], []>} : vector<128x64xf32>, vector<64x128xf32>, vector<128x128xf32> -> vector<128x128xf32>
    %30 = arith.addf %27, %29 : vector<128x128xf32>
    %31 = arith.addf %25, %30 : vector<128x128xf32>
    %c0_27 = arith.constant 0 : index
    %c0_28 = arith.constant 0 : index
    %32 = vector.load %arg12[%c0_27, %c0_28] : memref<128x128xf32, #tpu.memory_space<vmem>>, vector<128x128xf32>
    %cst_29 = arith.constant dense<0.000000e+00> : vector<128x128xf32>
    %33 = tpu.matmul %32, %31, %cst_29 {dimension_numbers = #tpu.dot_dimension_numbers<[1], [0], [0], [1], [0, 0, 1, 1], [], []>} : vector<128x128xf32>, vector<128x128xf32>, vector<128x128xf32> -> vector<128x128xf32>
    %c0_30 = arith.constant 0 : index
    %c0_31 = arith.constant 0 : index
    %34 = vector.load %arg13[%c0_30, %c0_31] : memref<128x1xf32, #tpu.memory_space<vmem>>, vector<128x1xf32>
    %35 = vector.broadcast %34 : vector<128x1xf32> to vector<128x128xf32>
    %36 = arith.addf %33, %35 : vector<128x128xf32>
    %37 = arith.negf %36 : vector<128x128xf32>
    %38 = math.exp %37 : vector<128x128xf32>
    %cst_32 = arith.constant 1.000000e+00 : f32
    %39 = vector.broadcast %cst_32 : f32 to vector<128x128xf32>
    %40 = arith.addf %39, %38 : vector<128x128xf32>
    %41 = arith.divf %39, %40 : vector<128x128xf32>
    %42 = arith.mulf %36, %41 : vector<128x128xf32>
    %c0_33 = arith.constant 0 : index
    %c0_34 = arith.constant 0 : index
    %43 = vector.load %arg14[%c0_33, %c0_34] : memref<128x128xf32, #tpu.memory_space<vmem>>, vector<128x128xf32>
    %cst_35 = arith.constant dense<0.000000e+00> : vector<128x128xf32>
    %44 = tpu.matmul %43, %42, %cst_35 {dimension_numbers = #tpu.dot_dimension_numbers<[1], [0], [0], [1], [0, 0, 1, 1], [], []>} : vector<128x128xf32>, vector<128x128xf32>, vector<128x128xf32> -> vector<128x128xf32>
    %c0_36 = arith.constant 0 : index
    %c0_37 = arith.constant 0 : index
    %45 = vector.load %arg15[%c0_36, %c0_37] : memref<128x1xf32, #tpu.memory_space<vmem>>, vector<128x1xf32>
    %46 = vector.broadcast %45 : vector<128x1xf32> to vector<128x128xf32>
    %47 = arith.addf %44, %46 : vector<128x128xf32>
    %48 = arith.addf %47, %31 : vector<128x128xf32>
    %c0_38 = arith.constant 0 : index
    %c0_39 = arith.constant 0 : index
    %49 = vector.load %arg16[%c0_38, %c0_39] : memref<16x128xf32, #tpu.memory_space<vmem>>, vector<16x128xf32>
    %cst_40 = arith.constant dense<0.000000e+00> : vector<16x128xf32>
    %50 = tpu.matmul %49, %48, %cst_40 {dimension_numbers = #tpu.dot_dimension_numbers<[1], [0], [0], [1], [0, 0, 1, 1], [], []>} : vector<16x128xf32>, vector<128x128xf32>, vector<16x128xf32> -> vector<16x128xf32>
    %c0_41 = arith.constant 0 : index
    %c0_42 = arith.constant 0 : index
    %51 = vector.load %arg17[%c0_41, %c0_42] : memref<16x1xf32, #tpu.memory_space<vmem>>, vector<16x1xf32>
    %52 = vector.broadcast %51 : vector<16x1xf32> to vector<16x128xf32>
    %53 = arith.addf %50, %52 : vector<16x128xf32>
    %c0_43 = arith.constant 0 : index
    %c0_44 = arith.constant 0 : index
    %54 = vector.load %arg18[%c0_43, %c0_44] : memref<8x16xf32, #tpu.memory_space<vmem>>, vector<8x16xf32>
    %cst_45 = arith.constant dense<0.000000e+00> : vector<8x128xf32>
    %55 = tpu.matmul %54, %53, %cst_45 {dimension_numbers = #tpu.dot_dimension_numbers<[1], [0], [0], [1], [0, 0, 1, 1], [], []>} : vector<8x16xf32>, vector<16x128xf32>, vector<8x128xf32> -> vector<8x128xf32>
    %c0_46 = arith.constant 0 : index
    %c0_47 = arith.constant 0 : index
    %56 = vector.load %arg19[%c0_46, %c0_47] : memref<8x1xf32, #tpu.memory_space<vmem>>, vector<8x1xf32>
    %57 = vector.broadcast %56 : vector<8x1xf32> to vector<8x128xf32>
    %58 = arith.addf %55, %57 : vector<8x128xf32>
    %c0_48 = arith.constant 0 : index
    %c0_49 = arith.constant 0 : index
    %59 = vector.load %arg20[%c0_48, %c0_49] : memref<8x128xf32, #tpu.memory_space<vmem>>, vector<8x128xf32>
    tpu.vector_store %arg20[%c0_48, %c0_49], %58 {strides = array<i32>} : memref<8x128xf32, #tpu.memory_space<vmem>>, vector<8x128xf32>,
    return
  }
  func.func @transform_0(%arg0: i32) -> (i32, i32) {
    %c0_i32 = arith.constant 0 : i32
    %c0_i32_0 = arith.constant 0 : i32
    return %c0_i32, %arg0 : i32, i32
  }
  func.func @transform_1(%arg0: i32) -> (i32, i32) {
    %c0_i32 = arith.constant 0 : i32
    %c0_i32_0 = arith.constant 0 : i32
    return %c0_i32, %arg0 : i32, i32
  }
  func.func @transform_2(%arg0: i32) -> (i32, i32) {
    %c0_i32 = arith.constant 0 : i32
    %c0_i32_0 = arith.constant 0 : i32
    %c0_i32_1 = arith.constant 0 : i32
    return %c0_i32, %c0_i32_0 : i32, i32
  }
  func.func @transform_3(%arg0: i32) -> (i32, i32) {
    %c0_i32 = arith.constant 0 : i32
    %c0_i32_0 = arith.constant 0 : i32
    %c0_i32_1 = arith.constant 0 : i32
    return %c0_i32, %c0_i32_0 : i32, i32
  }
  func.func @transform_4(%arg0: i32) -> (i32, i32) {
    %c0_i32 = arith.constant 0 : i32
    %c0_i32_0 = arith.constant 0 : i32
    %c0_i32_1 = arith.constant 0 : i32
    return %c0_i32, %c0_i32_0 : i32, i32
  }
  func.func @transform_5(%arg0: i32) -> (i32, i32) {
    %c0_i32 = arith.constant 0 : i32
    %c0_i32_0 = arith.constant 0 : i32
    %c0_i32_1 = arith.constant 0 : i32
    return %c0_i32, %c0_i32_0 : i32, i32
  }
  func.func @transform_6(%arg0: i32) -> (i32, i32) {
    %c0_i32 = arith.constant 0 : i32
    %c0_i32_0 = arith.constant 0 : i32
    %c0_i32_1 = arith.constant 0 : i32
    return %c0_i32, %c0_i32_0 : i32, i32
  }
  func.func @transform_7(%arg0: i32) -> (i32, i32) {
    %c0_i32 = arith.constant 0 : i32
    %c0_i32_0 = arith.constant 0 : i32
    %c0_i32_1 = arith.constant 0 : i32
    return %c0_i32, %c0_i32_0 : i32, i32
  }
  func.func @transform_8(%arg0: i32) -> (i32, i32) {
    %c0_i32 = arith.constant 0 : i32
    %c0_i32_0 = arith.constant 0 : i32
    %c0_i32_1 = arith.constant 0 : i32
    return %c0_i32, %c0_i32_0 : i32, i32
  }
  func.func @transform_9(%arg0: i32) -> (i32, i32) {
    %c0_i32 = arith.constant 0 : i32
    %c0_i32_0 = arith.constant 0 : i32
    %c0_i32_1 = arith.constant 0 : i32
    return %c0_i32, %c0_i32_0 : i32, i32
  }
  func.func @transform_10(%arg0: i32) -> (i32, i32) {
    %c0_i32 = arith.constant 0 : i32
    %c0_i32_0 = arith.constant 0 : i32
    %c0_i32_1 = arith.constant 0 : i32
    return %c0_i32, %c0_i32_0 : i32, i32
  }
  func.func @transform_11(%arg0: i32) -> (i32, i32) {
    %c0_i32 = arith.constant 0 : i32
    %c0_i32_0 = arith.constant 0 : i32
    %c0_i32_1 = arith.constant 0 : i32
    return %c0_i32, %c0_i32_0 : i32, i32
  }
  func.func @transform_12(%arg0: i32) -> (i32, i32) {
    %c0_i32 = arith.constant 0 : i32
    %c0_i32_0 = arith.constant 0 : i32
    %c0_i32_1 = arith.constant 0 : i32
    return %c0_i32, %c0_i32_0 : i32, i32
  }
  func.func @transform_13(%arg0: i32) -> (i32, i32) {
    %c0_i32 = arith.constant 0 : i32
    %c0_i32_0 = arith.constant 0 : i32
    %c0_i32_1 = arith.constant 0 : i32
    return %c0_i32, %c0_i32_0 : i32, i32
  }
  func.func @transform_14(%arg0: i32) -> (i32, i32) {
    %c0_i32 = arith.constant 0 : i32
    %c0_i32_0 = arith.constant 0 : i32
    %c0_i32_1 = arith.constant 0 : i32
    return %c0_i32, %c0_i32_0 : i32, i32
  }
  func.func @transform_15(%arg0: i32) -> (i32, i32) {
    %c0_i32 = arith.constant 0 : i32
    %c0_i32_0 = arith.constant 0 : i32
    %c0_i32_1 = arith.constant 0 : i32
    return %c0_i32, %c0_i32_0 : i32, i32
  }
  func.func @transform_16(%arg0: i32) -> (i32, i32) {
    %c0_i32 = arith.constant 0 : i32
    %c0_i32_0 = arith.constant 0 : i32
    %c0_i32_1 = arith.constant 0 : i32
    return %c0_i32, %c0_i32_0 : i32, i32
  }
  func.func @transform_17(%arg0: i32) -> (i32, i32) {
    %c0_i32 = arith.constant 0 : i32
    %c0_i32_0 = arith.constant 0 : i32
    %c0_i32_1 = arith.constant 0 : i32
    return %c0_i32, %c0_i32_0 : i32, i32
  }
  func.func @transform_18(%arg0: i32) -> (i32, i32) {
    %c0_i32 = arith.constant 0 : i32
    %c0_i32_0 = arith.constant 0 : i32
    %c0_i32_1 = arith.constant 0 : i32
    return %c0_i32, %c0_i32_0 : i32, i32
  }
  func.func @transform_19(%arg0: i32) -> (i32, i32) {
    %c0_i32 = arith.constant 0 : i32
    %c0_i32_0 = arith.constant 0 : i32
    return %c0_i32, %arg0 : i32, i32
  }
}

</mosaic_0001>

<llo_original>
// kernel: conditional_grasp_pose_encoder.1
$region0: #{conditional_grasp_pose_encoder.1}
  #allocation0 [shape = 'u32[]', space=smem, size = 0x4, offset = 0x4, fixed_abs, tag = 'smem constant byte address 0x4 - core index']
  #allocation1 [shape = 'u32[144,128]{1,0:T(1,128)}', space=vmem, size = 0x12000, scoped, tag = 'internal scratch']
  %s0 = inlined_call_operand.vmem [shape: f32[7,256], index: 0, kind: input, shape index: {}]
  %s1 = inlined_call_operand.vmem [shape: f32[64,256], index: 1, kind: input, shape index: {}]
  %s2 = inlined_call_operand.vmem [shape: f32[16,7], index: 2, kind: input, shape index: {}]
  %s3 = inlined_call_operand.vmem [shape: f32[16,1], index: 3, kind: input, shape index: {}]
  %s4 = inlined_call_operand.vmem [shape: f32[128,16], index: 4, kind: input, shape index: {}]
  %s5 = inlined_call_operand.vmem [shape: f32[128,64], index: 5, kind: input, shape index: {}]
  %s6 = inlined_call_operand.vmem [shape: f32[128,1], index: 6, kind: input, shape index: {}]
  %s7 = inlined_call_operand.vmem [shape: f32[128,128], index: 7, kind: input, shape index: {}]
  %s8 = inlined_call_operand.vmem [shape: f32[128,1], index: 8, kind: input, shape index: {}]
  %s9 = inlined_call_operand.vmem [shape: f32[128,16], index: 9, kind: input, shape index: {}]
  %s10 = inlined_call_operand.vmem [shape: f32[128,64], index: 10, kind: input, shape index: {}]
  %s11 = inlined_call_operand.vmem [shape: f32[128,128], index: 11, kind: input, shape index: {}]
  %s12 = inlined_call_operand.vmem [shape: f32[128,1], index: 12, kind: input, shape index: {}]
  %s13 = inlined_call_operand.vmem [shape: f32[128,128], index: 13, kind: input, shape index: {}]
  %s14 = inlined_call_operand.vmem [shape: f32[128,1], index: 14, kind: input, shape index: {}]
  %s15 = inlined_call_operand.vmem [shape: f32[16,128], index: 15, kind: input, shape index: {}]
  %s16 = inlined_call_operand.vmem [shape: f32[16,1], index: 16, kind: input, shape index: {}]
  %s17 = inlined_call_operand.vmem [shape: f32[8,16], index: 17, kind: input, shape index: {}]
  %s18 = inlined_call_operand.vmem [shape: f32[8,1], index: 18, kind: input, shape index: {}]
  %s19 = inlined_call_operand.hbm [shape: f32[8,256], index: 19, kind: output, shape index: {}]
  %s20 = sld [smem:[#allocation0]]
  $region147: #{conditional_grasp_pose_encoder.1} parent=0
    _
  %s22 = ssub.s32 1, %s20
  %s23 = scalar_select 0, %s22, %s20
  $region1: #{conditional_grasp_pose_encoder.1} parent=0
    #allocation2 [shape = 'u8[65536]{0}', space=vmem, size = 0x10000, scoped, tag = 'input window, operand 1']
    #allocation3 [shape = 'u8[8192]{0}', space=vmem, size = 0x2000, scoped, tag = 'output window, operand 0']
    #allocation4 [shape = 's32[2]{0}', space=sflag, size = 0x8, scoped, tag = 'scoped memory for conditional_grasp_pose_encoder.1']
    %24 = vsyncpa [#allocation4], 0
    %s25 = scalar_lea.sflag [#allocation4], 1
    %26 = vsyncpa %s25, 0
    loop: start=0, step=1, limit=4
    $region2: #{conditional_grasp_pose_encoder.1} parent=1 // loop_pre_header
      _
    $region3: #{conditional_grasp_pose_encoder.1} parent=1 // loop_header
      %s28 = sphi 0, %s32
      %p29 = scmp.ge.s32.totalorder %s28, 4
      %s38 = sphi 0, %s40
      %s41 = sphi 0, %s38
      %s42 = sphi 0, %s41
      %s58 = sphi 0, %s42
      %s64 = sphi 0, %s66
      %s67 = sphi 0, %s64
      %s68 = sphi 0, %s67
      %s84 = sphi 0, %s68
      %s88 = sphi 0, %s88
      %s90 = sphi 0, %s88
      %s91 = sphi 0, %s90
      %s105 = sphi 0, %s91
      %s109 = sphi 0, %s109
      %s111 = sphi 0, %s109
      %s112 = sphi 0, %s111
      %s126 = sphi 0, %s112
      %s130 = sphi 0, %s130
      %s132 = sphi 0, %s130
      %s133 = sphi 0, %s132
      %s147 = sphi 0, %s133
      %s151 = sphi 0, %s151
      %s153 = sphi 0, %s151
      %s154 = sphi 0, %s153
      %s168 = sphi 0, %s154
      %s172 = sphi 0, %s172
      %s174 = sphi 0, %s172
      %s175 = sphi 0, %s174
      %s189 = sphi 0, %s175
      %s193 = sphi 0, %s193
      %s195 = sphi 0, %s193
      %s196 = sphi 0, %s195
      %s210 = sphi 0, %s196
      %s214 = sphi 0, %s214
      %s216 = sphi 0, %s214
      %s217 = sphi 0, %s216
      %s231 = sphi 0, %s217
      %s235 = sphi 0, %s235
      %s237 = sphi 0, %s235
      %s238 = sphi 0, %s237
      %s252 = sphi 0, %s238
      %s256 = sphi 0, %s256
      %s258 = sphi 0, %s256
      %s259 = sphi 0, %s258
      %s273 = sphi 0, %s259
      %s277 = sphi 0, %s277
      %s279 = sphi 0, %s277
      %s280 = sphi 0, %s279
      %s294 = sphi 0, %s280
      %s298 = sphi 0, %s298
      %s300 = sphi 0, %s298
      %s301 = sphi 0, %s300
      %s315 = sphi 0, %s301
      %s319 = sphi 0, %s319
      %s321 = sphi 0, %s319
      %s322 = sphi 0, %s321
      %s336 = sphi 0, %s322
      %s340 = sphi 0, %s340
      %s342 = sphi 0, %s340
      %s343 = sphi 0, %s342
      %s357 = sphi 0, %s343
      %s361 = sphi 0, %s361
      %s363 = sphi 0, %s361
      %s364 = sphi 0, %s363
      %s378 = sphi 0, %s364
      %s382 = sphi 0, %s382
      %s384 = sphi 0, %s382
      %s385 = sphi 0, %s384
      %s399 = sphi 0, %s385
      %s403 = sphi 0, %s403
      %s405 = sphi 0, %s403
      %s406 = sphi 0, %s405
      %s420 = sphi 0, %s406
      %s424 = sphi 0, %s424
      %s426 = sphi 0, %s424
      %s427 = sphi 0, %s426
      %s441 = sphi 0, %s427
      %s447 = sphi 0, %s449
      %s450 = sphi 0, %s447
      %s451 = sphi 0, %s450
      %s467 = sphi 0, %s451
    $region4: #{conditional_grasp_pose_encoder.1} parent=1 // loop_header_branch
      %31 = sbr.rel (%p29) target = $region8
    $region5: #{conditional_grasp_pose_encoder.1} parent=1 // loop_body
      %s33 = ssub.s32 %s28, 1
      %s34 = ssub.s32 %s28, 2
      %s35 = sadd.s32 %s28, 1
      %s36 = ssub.s32 %s28, %s35
      %p37 = scmp.eq.s32.totalorder %s36, 0
      %s39 = sadd.s32 %s38, 1
      %s40 = scalar_select %p37, %s38, %s39
      %p43 = pneg %p37
      %p44 = scmp.eq.s32.totalorder %s28, 1
      %p45 = por %p43, %p44
      %p46 = scmp.ne.s32.totalorder %s38, %s41
      %p47 = scmp.eq.s32.totalorder %s28, 0
      %p48 = por %p46, %p47
      %p49 = scmp.ne.s32.totalorder %s38, %s41
      %p50 = scmp.eq.s32.totalorder %s33, 1
      %p51 = por %p49, %p50
      %p52 = scmp.ne.s32.totalorder %s41, %s42
      %p53 = scmp.eq.s32.totalorder %s33, 0
      %p54 = por %p52, %p53
      %p55 = scmp.ne.s32.totalorder %s41, %s42
      %p56 = scmp.eq.s32.totalorder %s34, 1
      %p57 = por %p55, %p56
      %p59 = scmp.ne.s32.totalorder %s42, %s58
      %p60 = scmp.eq.s32.totalorder %s34, 0
      %p61 = por %p59, %p60
      %s62 = ssub.s32 %s28, %s35
      %p63 = scmp.eq.s32.totalorder %s62, 0
      %s65 = sadd.s32 %s64, 1
      %s66 = scalar_select %p63, %s64, %s65
      %p69 = pneg %p63
      %p70 = scmp.eq.s32.totalorder %s28, 1
      %p71 = por %p69, %p70
      %p72 = scmp.ne.s32.totalorder %s64, %s67
      %p73 = scmp.eq.s32.totalorder %s28, 0
      %p74 = por %p72, %p73
      %p75 = scmp.ne.s32.totalorder %s64, %s67
      %p76 = scmp.eq.s32.totalorder %s33, 1
      %p77 = por %p75, %p76
      %p78 = scmp.ne.s32.totalorder %s67, %s68
      %p79 = scmp.eq.s32.totalorder %s33, 0
      %p80 = por %p78, %p79
      %p81 = scmp.ne.s32.totalorder %s67, %s68
      %p82 = scmp.eq.s32.totalorder %s34, 1
      %p83 = por %p81, %p82
      %p85 = scmp.ne.s32.totalorder %s68, %s84
      %p86 = scmp.eq.s32.totalorder %s34, 0
      %p87 = por %p85, %p86
      %s89 = sadd.s32 %s88, 1
      %p92 = scmp.eq.s32.totalorder %s28, 1
      %p93 = scmp.ne.s32.totalorder %s88, %s90
      %p94 = scmp.eq.s32.totalorder %s28, 0
      %p95 = por %p93, %p94
      %p96 = scmp.ne.s32.totalorder %s88, %s90
      %p97 = scmp.eq.s32.totalorder %s33, 1
      %p98 = por %p96, %p97
      %p99 = scmp.ne.s32.totalorder %s90, %s91
      %p100 = scmp.eq.s32.totalorder %s33, 0
      %p101 = por %p99, %p100
      %p102 = scmp.ne.s32.totalorder %s90, %s91
      %p103 = scmp.eq.s32.totalorder %s34, 1
      %p104 = por %p102, %p103
      %p106 = scmp.ne.s32.totalorder %s91, %s105
      %p107 = scmp.eq.s32.totalorder %s34, 0
      %p108 = por %p106, %p107
      %s110 = sadd.s32 %s109, 1
      %p113 = scmp.eq.s32.totalorder %s28, 1
      %p114 = scmp.ne.s32.totalorder %s109, %s111
      %p115 = scmp.eq.s32.totalorder %s28, 0
      %p116 = por %p114, %p115
      %p117 = scmp.ne.s32.totalorder %s109, %s111
      %p118 = scmp.eq.s32.totalorder %s33, 1
      %p119 = por %p117, %p118
      %p120 = scmp.ne.s32.totalorder %s111, %s112
      %p121 = scmp.eq.s32.totalorder %s33, 0
      %p122 = por %p120, %p121
      %p123 = scmp.ne.s32.totalorder %s111, %s112
      %p124 = scmp.eq.s32.totalorder %s34, 1
      %p125 = por %p123, %p124
      %p127 = scmp.ne.s32.totalorder %s112, %s126
      %p128 = scmp.eq.s32.totalorder %s34, 0
      %p129 = por %p127, %p128
      %s131 = sadd.s32 %s130, 1
      %p134 = scmp.eq.s32.totalorder %s28, 1
      %p135 = scmp.ne.s32.totalorder %s130, %s132
      %p136 = scmp.eq.s32.totalorder %s28, 0
      %p137 = por %p135, %p136
      %p138 = scmp.ne.s32.totalorder %s130, %s132
      %p139 = scmp.eq.s32.totalorder %s33, 1
      %p140 = por %p138, %p139
      %p141 = scmp.ne.s32.totalorder %s132, %s133
      %p142 = scmp.eq.s32.totalorder %s33, 0
      %p143 = por %p141, %p142
      %p144 = scmp.ne.s32.totalorder %s132, %s133
      %p145 = scmp.eq.s32.totalorder %s34, 1
      %p146 = por %p144, %p145
      %p148 = scmp.ne.s32.totalorder %s133, %s147
      %p149 = scmp.eq.s32.totalorder %s34, 0
      %p150 = por %p148, %p149
      %s152 = sadd.s32 %s151, 1
      %p155 = scmp.eq.s32.totalorder %s28, 1
      %p156 = scmp.ne.s32.totalorder %s151, %s153
      %p157 = scmp.eq.s32.totalorder %s28, 0
      %p158 = por %p156, %p157
      %p159 = scmp.ne.s32.totalorder %s151, %s153
      %p160 = scmp.eq.s32.totalorder %s33, 1
      %p161 = por %p159, %p160
      %p162 = scmp.ne.s32.totalorder %s153, %s154
      %p163 = scmp.eq.s32.totalorder %s33, 0
      %p164 = por %p162, %p163
      %p165 = scmp.ne.s32.totalorder %s153, %s154
      %p166 = scmp.eq.s32.totalorder %s34, 1
      %p167 = por %p165, %p166
      %p169 = scmp.ne.s32.totalorder %s154, %s168
      %p170 = scmp.eq.s32.totalorder %s34, 0
      %p171 = por %p169, %p170
      %s173 = sadd.s32 %s172, 1
      %p176 = scmp.eq.s32.totalorder %s28, 1
      %p177 = scmp.ne.s32.totalorder %s172, %s174
      %p178 = scmp.eq.s32.totalorder %s28, 0
      %p179 = por %p177, %p178
      %p180 = scmp.ne.s32.totalorder %s172, %s174
      %p181 = scmp.eq.s32.totalorder %s33, 1
      %p182 = por %p180, %p181
      %p183 = scmp.ne.s32.totalorder %s174, %s175
      %p184 = scmp.eq.s32.totalorder %s33, 0
      %p185 = por %p183, %p184
      %p186 = scmp.ne.s32.totalorder %s174, %s175
      %p187 = scmp.eq.s32.totalorder %s34, 1
      %p188 = por %p186, %p187
      %p190 = scmp.ne.s32.totalorder %s175, %s189
      %p191 = scmp.eq.s32.totalorder %s34, 0
      %p192 = por %p190, %p191
      %s194 = sadd.s32 %s193, 1
      %p197 = scmp.eq.s32.totalorder %s28, 1
      %p198 = scmp.ne.s32.totalorder %s193, %s195
      %p199 = scmp.eq.s32.totalorder %s28, 0
      %p200 = por %p198, %p199
      %p201 = scmp.ne.s32.totalorder %s193, %s195
      %p202 = scmp.eq.s32.totalorder %s33, 1
      %p203 = por %p201, %p202
      %p204 = scmp.ne.s32.totalorder %s195, %s196
      %p205 = scmp.eq.s32.totalorder %s33, 0
      %p206 = por %p204, %p205
      %p207 = scmp.ne.s32.totalorder %s195, %s196
      %p208 = scmp.eq.s32.totalorder %s34, 1
      %p209 = por %p207, %p208
      %p211 = scmp.ne.s32.totalorder %s196, %s210
      %p212 = scmp.eq.s32.totalorder %s34, 0
      %p213 = por %p211, %p212
      %s215 = sadd.s32 %s214, 1
      %p218 = scmp.eq.s32.totalorder %s28, 1
      %p219 = scmp.ne.s32.totalorder %s214, %s216
      %p220 = scmp.eq.s32.totalorder %s28, 0
      %p221 = por %p219, %p220
      %p222 = scmp.ne.s32.totalorder %s214, %s216
      %p223 = scmp.eq.s32.totalorder %s33, 1
      %p224 = por %p222, %p223
      %p225 = scmp.ne.s32.totalorder %s216, %s217
      %p226 = scmp.eq.s32.totalorder %s33, 0
      %p227 = por %p225, %p226
      %p228 = scmp.ne.s32.totalorder %s216, %s217
      %p229 = scmp.eq.s32.totalorder %s34, 1
      %p230 = por %p228, %p229
      %p232 = scmp.ne.s32.totalorder %s217, %s231
      %p233 = scmp.eq.s32.totalorder %s34, 0
      %p234 = por %p232, %p233
      %s236 = sadd.s32 %s235, 1
      %p239 = scmp.eq.s32.totalorder %s28, 1
      %p240 = scmp.ne.s32.totalorder %s235, %s237
      %p241 = scmp.eq.s32.totalorder %s28, 0
      %p242 = por %p240, %p241
      %p243 = scmp.ne.s32.totalorder %s235, %s237
      %p244 = scmp.eq.s32.totalorder %s33, 1
      %p245 = por %p243, %p244
      %p246 = scmp.ne.s32.totalorder %s237, %s238
      %p247 = scmp.eq.s32.totalorder %s33, 0
      %p248 = por %p246, %p247
      %p249 = scmp.ne.s32.totalorder %s237, %s238
      %p250 = scmp.eq.s32.totalorder %s34, 1
      %p251 = por %p249, %p250
      %p253 = scmp.ne.s32.totalorder %s238, %s252
      %p254 = scmp.eq.s32.totalorder %s34, 0
      %p255 = por %p253, %p254
      %s257 = sadd.s32 %s256, 1
      %p260 = scmp.eq.s32.totalorder %s28, 1
      %p261 = scmp.ne.s32.totalorder %s256, %s258
      %p262 = scmp.eq.s32.totalorder %s28, 0
      %p263 = por %p261, %p262
      %p264 = scmp.ne.s32.totalorder %s256, %s258
      %p265 = scmp.eq.s32.totalorder %s33, 1
      %p266 = por %p264, %p265
      %p267 = scmp.ne.s32.totalorder %s258, %s259
      %p268 = scmp.eq.s32.totalorder %s33, 0
      %p269 = por %p267, %p268
      %p270 = scmp.ne.s32.totalorder %s258, %s259
      %p271 = scmp.eq.s32.totalorder %s34, 1
      %p272 = por %p270, %p271
      %p274 = scmp.ne.s32.totalorder %s259, %s273
      %p275 = scmp.eq.s32.totalorder %s34, 0
      %p276 = por %p274, %p275
      %s278 = sadd.s32 %s277, 1
      %p281 = scmp.eq.s32.totalorder %s28, 1
      %p282 = scmp.ne.s32.totalorder %s277, %s279
      %p283 = scmp.eq.s32.totalorder %s28, 0
      %p284 = por %p282, %p283
      %p285 = scmp.ne.s32.totalorder %s277, %s279
      %p286 = scmp.eq.s32.totalorder %s33, 1
      %p287 = por %p285, %p286
      %p288 = scmp.ne.s32.totalorder %s279, %s280
      %p289 = scmp.eq.s32.totalorder %s33, 0
      %p290 = por %p288, %p289
      %p291 = scmp.ne.s32.totalorder %s279, %s280
      %p292 = scmp.eq.s32.totalorder %s34, 1
      %p293 = por %p291, %p292
      %p295 = scmp.ne.s32.totalorder %s280, %s294
      %p296 = scmp.eq.s32.totalorder %s34, 0
      %p297 = por %p295, %p296
      %s299 = sadd.s32 %s298, 1
      %p302 = scmp.eq.s32.totalorder %s28, 1
      %p303 = scmp.ne.s32.totalorder %s298, %s300
      %p304 = scmp.eq.s32.totalorder %s28, 0
      %p305 = por %p303, %p304
      %p306 = scmp.ne.s32.totalorder %s298, %s300
      %p307 = scmp.eq.s32.totalorder %s33, 1
      %p308 = por %p306, %p307
      %p309 = scmp.ne.s32.totalorder %s300, %s301
      %p310 = scmp.eq.s32.totalorder %s33, 0
      %p311 = por %p309, %p310
      %p312 = scmp.ne.s32.totalorder %s300, %s301
      %p313 = scmp.eq.s32.totalorder %s34, 1
      %p314 = por %p312, %p313
      %p316 = scmp.ne.s32.totalorder %s301, %s315
      %p317 = scmp.eq.s32.totalorder %s34, 0
      %p318 = por %p316, %p317
      %s320 = sadd.s32 %s319, 1
      %p323 = scmp.eq.s32.totalorder %s28, 1
      %p324 = scmp.ne.s32.totalorder %s319, %s321
      %p325 = scmp.eq.s32.totalorder %s28, 0
      %p326 = por %p324, %p325
      %p327 = scmp.ne.s32.totalorder %s319, %s321
      %p328 = scmp.eq.s32.totalorder %s33, 1
      %p329 = por %p327, %p328
      %p330 = scmp.ne.s32.totalorder %s321, %s322
      %p331 = scmp.eq.s32.totalorder %s33, 0
      %p332 = por %p330, %p331
      %p333 = scmp.ne.s32.totalorder %s321, %s322
      %p334 = scmp.eq.s32.totalorder %s34, 1
      %p335 = por %p333, %p334
      %p337 = scmp.ne.s32.totalorder %s322, %s336
      %p338 = scmp.eq.s32.totalorder %s34, 0
      %p339 = por %p337, %p338
      %s341 = sadd.s32 %s340, 1
      %p344 = scmp.eq.s32.totalorder %s28, 1
      %p345 = scmp.ne.s32.totalorder %s340, %s342
      %p346 = scmp.eq.s32.totalorder %s28, 0
      %p347 = por %p345, %p346
      %p348 = scmp.ne.s32.totalorder %s340, %s342
      %p349 = scmp.eq.s32.totalorder %s33, 1
      %p350 = por %p348, %p349
      %p351 = scmp.ne.s32.totalorder %s342, %s343
      %p352 = scmp.eq.s32.totalorder %s33, 0
      %p353 = por %p351, %p352
      %p354 = scmp.ne.s32.totalorder %s342, %s343
      %p355 = scmp.eq.s32.totalorder %s34, 1
      %p356 = por %p354, %p355
      %p358 = scmp.ne.s32.totalorder %s343, %s357
      %p359 = scmp.eq.s32.totalorder %s34, 0
      %p360 = por %p358, %p359
      %s362 = sadd.s32 %s361, 1
      %p365 = scmp.eq.s32.totalorder %s28, 1
      %p366 = scmp.ne.s32.totalorder %s361, %s363
      %p367 = scmp.eq.s32.totalorder %s28, 0
      %p368 = por %p366, %p367
      %p369 = scmp.ne.s32.totalorder %s361, %s363
      %p370 = scmp.eq.s32.totalorder %s33, 1
      %p371 = por %p369, %p370
      %p372 = scmp.ne.s32.totalorder %s363, %s364
      %p373 = scmp.eq.s32.totalorder %s33, 0
      %p374 = por %p372, %p373
      %p375 = scmp.ne.s32.totalorder %s363, %s364
      %p376 = scmp.eq.s32.totalorder %s34, 1
      %p377 = por %p375, %p376
      %p379 = scmp.ne.s32.totalorder %s364, %s378
      %p380 = scmp.eq.s32.totalorder %s34, 0
      %p381 = por %p379, %p380
      %s383 = sadd.s32 %s382, 1
      %p386 = scmp.eq.s32.totalorder %s28, 1
      %p387 = scmp.ne.s32.totalorder %s382, %s384
      %p388 = scmp.eq.s32.totalorder %s28, 0
      %p389 = por %p387, %p388
      %p390 = scmp.ne.s32.totalorder %s382, %s384
      %p391 = scmp.eq.s32.totalorder %s33, 1
      %p392 = por %p390, %p391
      %p393 = scmp.ne.s32.totalorder %s384, %s385
      %p394 = scmp.eq.s32.totalorder %s33, 0
      %p395 = por %p393, %p394
      %p396 = scmp.ne.s32.totalorder %s384, %s385
      %p397 = scmp.eq.s32.totalorder %s34, 1
      %p398 = por %p396, %p397
      %p400 = scmp.ne.s32.totalorder %s385, %s399
      %p401 = scmp.eq.s32.totalorder %s34, 0
      %p402 = por %p400, %p401
      %s404 = sadd.s32 %s403, 1
      %p407 = scmp.eq.s32.totalorder %s28, 1
      %p408 = scmp.ne.s32.totalorder %s403, %s405
      %p409 = scmp.eq.s32.totalorder %s28, 0
      %p410 = por %p408, %p409
      %p411 = scmp.ne.s32.totalorder %s403, %s405
      %p412 = scmp.eq.s32.totalorder %s33, 1
      %p413 = por %p411, %p412
      %p414 = scmp.ne.s32.totalorder %s405, %s406
      %p415 = scmp.eq.s32.totalorder %s33, 0
      %p416 = por %p414, %p415
      %p417 = scmp.ne.s32.totalorder %s405, %s406
      %p418 = scmp.eq.s32.totalorder %s34, 1
      %p419 = por %p417, %p418
      %p421 = scmp.ne.s32.totalorder %s406, %s420
      %p422 = scmp.eq.s32.totalorder %s34, 0
      %p423 = por %p421, %p422
      %s425 = sadd.s32 %s424, 1
      %p428 = scmp.eq.s32.totalorder %s28, 1
      %p429 = scmp.ne.s32.totalorder %s424, %s426
      %p430 = scmp.eq.s32.totalorder %s28, 0
      %p431 = por %p429, %p430
      %p432 = scmp.ne.s32.totalorder %s424, %s426
      %p433 = scmp.eq.s32.totalorder %s33, 1
      %p434 = por %p432, %p433
      %p435 = scmp.ne.s32.totalorder %s426, %s427
      %p436 = scmp.eq.s32.totalorder %s33, 0
      %p437 = por %p435, %p436
      %p438 = scmp.ne.s32.totalorder %s426, %s427
      %p439 = scmp.eq.s32.totalorder %s34, 1
      %p440 = por %p438, %p439
      %p442 = scmp.ne.s32.totalorder %s427, %s441
      %p443 = scmp.eq.s32.totalorder %s34, 0
      %p444 = por %p442, %p443
      %s445 = ssub.s32 %s28, %s35
      %p446 = scmp.eq.s32.totalorder %s445, 0
      %s448 = sadd.s32 %s447, 1
      %s449 = scalar_select %p446, %s447, %s448
      %p452 = pneg %p446
      %p453 = scmp.eq.s32.totalorder %s28, 1
      %p454 = por %p452, %p453
      %p455 = scmp.ne.s32.totalorder %s447, %s450
      %p456 = scmp.eq.s32.totalorder %s28, 0
      %p457 = por %p455, %p456
      %p458 = scmp.ne.s32.totalorder %s447, %s450
      %p459 = scmp.eq.s32.totalorder %s33, 1
      %p460 = por %p458, %p459
      %p461 = scmp.ne.s32.totalorder %s450, %s451
      %p462 = scmp.eq.s32.totalorder %s33, 0
      %p463 = por %p461, %p462
      %p464 = scmp.ne.s32.totalorder %s450, %s451
      %p465 = scmp.eq.s32.totalorder %s34, 1
      %p466 = por %p464, %p465
      %p468 = scmp.ne.s32.totalorder %s451, %s467
      %p469 = scmp.eq.s32.totalorder %s34, 0
      %p470 = por %p468, %p469
      %p471 = scmp.le.s32.totalorder 1, %s28
      %p472 = scmp.lt.s32.totalorder %s28, 3
      %p473 = pnand %p471, %p472
      %p474 = pneg %p473
      // Predicated region
      $region9: #{conditional_grasp_pose_encoder.1} parent=5 // pred_check
        _
      $region10: #{conditional_grasp_pose_encoder.1} parent=5 // pred_check_branch
        %476 = sbr.rel (%p473) target = $region12
      $region11: #{conditional_grasp_pose_encoder.1} parent=5 // pred_region
        %s477 = ssub.s32 %s28, 1
        // Predicated region
        $region13: #{conditional_grasp_pose_encoder.1} parent=11 // pred_check
          %p478 = pneg %p101
        $region14: #{conditional_grasp_pose_encoder.1} parent=11 // pred_check_branch
          %480 = sbr.rel (%p478) target = $region16
        $region15: #{conditional_grasp_pose_encoder.1} parent=11 // pred_region
          _
        $region16: #{conditional_grasp_pose_encoder.1} parent=11 // pred_fallthru
          _
        // Predicated region
        $region17: #{conditional_grasp_pose_encoder.1} parent=11 // pred_check
          %p481 = pneg %p122
        $region18: #{conditional_grasp_pose_encoder.1} parent=11 // pred_check_branch
          %483 = sbr.rel (%p481) target = $region20
        $region19: #{conditional_grasp_pose_encoder.1} parent=11 // pred_region
          _
        $region20: #{conditional_grasp_pose_encoder.1} parent=11 // pred_fallthru
          _
        // Predicated region
        $region21: #{conditional_grasp_pose_encoder.1} parent=11 // pred_check
          %p484 = pneg %p143
        $region22: #{conditional_grasp_pose_encoder.1} parent=11 // pred_check_branch
          %486 = sbr.rel (%p484) target = $region24
        $region23: #{conditional_grasp_pose_encoder.1} parent=11 // pred_region
          _
        $region24: #{conditional_grasp_pose_encoder.1} parent=11 // pred_fallthru
          _
        // Predicated region
        $region25: #{conditional_grasp_pose_encoder.1} parent=11 // pred_check
          %p487 = pneg %p164
        $region26: #{conditional_grasp_pose_encoder.1} parent=11 // pred_check_branch
          %489 = sbr.rel (%p487) target = $region28
        $region27: #{conditional_grasp_pose_encoder.1} parent=11 // pred_region
          _
        $region28: #{conditional_grasp_pose_encoder.1} parent=11 // pred_fallthru
          _
        // Predicated region
        $region29: #{conditional_grasp_pose_encoder.1} parent=11 // pred_check
          %p490 = pneg %p185
        $region30: #{conditional_grasp_pose_encoder.1} parent=11 // pred_check_branch
          %492 = sbr.rel (%p490) target = $region32
        $region31: #{conditional_grasp_pose_encoder.1} parent=11 // pred_region
          _
        $region32: #{conditional_grasp_pose_encoder.1} parent=11 // pred_fallthru
          _
        // Predicated region
        $region33: #{conditional_grasp_pose_encoder.1} parent=11 // pred_check
          %p493 = pneg %p206
        $region34: #{conditional_grasp_pose_encoder.1} parent=11 // pred_check_branch
          %495 = sbr.rel (%p493) target = $region36
        $region35: #{conditional_grasp_pose_encoder.1} parent=11 // pred_region
          _
        $region36: #{conditional_grasp_pose_encoder.1} parent=11 // pred_fallthru
          _
        // Predicated region
        $region37: #{conditional_grasp_pose_encoder.1} parent=11 // pred_check
          %p496 = pneg %p227
        $region38: #{conditional_grasp_pose_encoder.1} parent=11 // pred_check_branch
          %498 = sbr.rel (%p496) target = $region40
        $region39: #{conditional_grasp_pose_encoder.1} parent=11 // pred_region
          _
        $region40: #{conditional_grasp_pose_encoder.1} parent=11 // pred_fallthru
          _
        // Predicated region
        $region41: #{conditional_grasp_pose_encoder.1} parent=11 // pred_check
          %p499 = pneg %p248
        $region42: #{conditional_grasp_pose_encoder.1} parent=11 // pred_check_branch
          %501 = sbr.rel (%p499) target = $region44
        $region43: #{conditional_grasp_pose_encoder.1} parent=11 // pred_region
          _
        $region44: #{conditional_grasp_pose_encoder.1} parent=11 // pred_fallthru
          _
        // Predicated region
        $region45: #{conditional_grasp_pose_encoder.1} parent=11 // pred_check
          %p502 = pneg %p269
        $region46: #{conditional_grasp_pose_encoder.1} parent=11 // pred_check_branch
          %504 = sbr.rel (%p502) target = $region48
        $region47: #{conditional_grasp_pose_encoder.1} parent=11 // pred_region
          _
        $region48: #{conditional_grasp_pose_encoder.1} parent=11 // pred_fallthru
          _
        // Predicated region
        $region49: #{conditional_grasp_pose_encoder.1} parent=11 // pred_check
          %p505 = pneg %p290
        $region50: #{conditional_grasp_pose_encoder.1} parent=11 // pred_check_branch
          %507 = sbr.rel (%p505) target = $region52
        $region51: #{conditional_grasp_pose_encoder.1} parent=11 // pred_region
          _
        $region52: #{conditional_grasp_pose_encoder.1} parent=11 // pred_fallthru
          _
        // Predicated region
        $region53: #{conditional_grasp_pose_encoder.1} parent=11 // pred_check
          %p508 = pneg %p311
        $region54: #{conditional_grasp_pose_encoder.1} parent=11 // pred_check_branch
          %510 = sbr.rel (%p508) target = $region56
        $region55: #{conditional_grasp_pose_encoder.1} parent=11 // pred_region
          _
        $region56: #{conditional_grasp_pose_encoder.1} parent=11 // pred_fallthru
          _
        // Predicated region
        $region57: #{conditional_grasp_pose_encoder.1} parent=11 // pred_check
          %p511 = pneg %p332
        $region58: #{conditional_grasp_pose_encoder.1} parent=11 // pred_check_branch
          %513 = sbr.rel (%p511) target = $region60
        $region59: #{conditional_grasp_pose_encoder.1} parent=11 // pred_region
          _
        $region60: #{conditional_grasp_pose_encoder.1} parent=11 // pred_fallthru
          _
        // Predicated region
        $region61: #{conditional_grasp_pose_encoder.1} parent=11 // pred_check
          %p514 = pneg %p353
        $region62: #{conditional_grasp_pose_encoder.1} parent=11 // pred_check_branch
          %516 = sbr.rel (%p514) target = $region64
        $region63: #{conditional_grasp_pose_encoder.1} parent=11 // pred_region
          _
        $region64: #{conditional_grasp_pose_encoder.1} parent=11 // pred_fallthru
          _
        // Predicated region
        $region65: #{conditional_grasp_pose_encoder.1} parent=11 // pred_check
          %p517 = pneg %p374
        $region66: #{conditional_grasp_pose_encoder.1} parent=11 // pred_check_branch
          %519 = sbr.rel (%p517) target = $region68
        $region67: #{conditional_grasp_pose_encoder.1} parent=11 // pred_region
          _
        $region68: #{conditional_grasp_pose_encoder.1} parent=11 // pred_fallthru
          _
        // Predicated region
        $region69: #{conditional_grasp_pose_encoder.1} parent=11 // pred_check
          %p520 = pneg %p395
        $region70: #{conditional_grasp_pose_encoder.1} parent=11 // pred_check_branch
          %522 = sbr.rel (%p520) target = $region72
        $region71: #{conditional_grasp_pose_encoder.1} parent=11 // pred_region
          _
        $region72: #{conditional_grasp_pose_encoder.1} parent=11 // pred_fallthru
          _
        // Predicated region
        $region73: #{conditional_grasp_pose_encoder.1} parent=11 // pred_check
          %p523 = pneg %p416
        $region74: #{conditional_grasp_pose_encoder.1} parent=11 // pred_check_branch
          %525 = sbr.rel (%p523) target = $region76
        $region75: #{conditional_grasp_pose_encoder.1} parent=11 // pred_region
          _
        $region76: #{conditional_grasp_pose_encoder.1} parent=11 // pred_fallthru
          _
        // Predicated region
        $region77: #{conditional_grasp_pose_encoder.1} parent=11 // pred_check
          %p526 = pneg %p437
        $region78: #{conditional_grasp_pose_encoder.1} parent=11 // pred_check_branch
          %528 = sbr.rel (%p526) target = $region80
        $region79: #{conditional_grasp_pose_encoder.1} parent=11 // pred_region
          _
        $region80: #{conditional_grasp_pose_encoder.1} parent=11 // pred_fallthru
          _
      $region12: #{conditional_grasp_pose_encoder.1} parent=5 // pred_fallthru
        _
      %p529 = scmp.lt.s32.totalorder %s28, 2
      // Predicated region
      $region81: #{conditional_grasp_pose_encoder.1} parent=5 // pred_check
        %p530 = pneg %p529
      $region82: #{conditional_grasp_pose_encoder.1} parent=5 // pred_check_branch
        %532 = sbr.rel (%p530) target = $region84
      $region83: #{conditional_grasp_pose_encoder.1} parent=5 // pred_region
        // Predicated region
        $region85: #{conditional_grasp_pose_encoder.1} parent=83 // pred_check
          %p533 = pneg %p48
        $region86: #{conditional_grasp_pose_encoder.1} parent=83 // pred_check_branch
          %535 = sbr.rel (%p533) target = $region88
        $region87: #{conditional_grasp_pose_encoder.1} parent=83 // pred_region
          %p536 = scmp.lt.s32.totalorder %s28, 1
          %s537 = scalar_select %p536, %s28, 1
          %s538 = smul.addr %s537, 8
          %s539 = scalar_lea.vmem %s0, %s538
        $region88: #{conditional_grasp_pose_encoder.1} parent=83 // pred_fallthru
          _
        // Predicated region
        $region89: #{conditional_grasp_pose_encoder.1} parent=83 // pred_check
          %p540 = pneg %p74
        $region90: #{conditional_grasp_pose_encoder.1} parent=83 // pred_check_branch
          %542 = sbr.rel (%p540) target = $region92
        $region91: #{conditional_grasp_pose_encoder.1} parent=83 // pred_region
          %s543 = sand.u32 %s64, 1
          %s544 = sand.u32 %s64, 1
          %s545 = smul.addr %s544, 64
          %s546 = scalar_lea.vmem [#allocation2], %s545
          %s547 = smul.addr %s28, 8
          %s548 = scalar_lea.vmem %s1, %s547
          // Predicated region
          $region93: #{conditional_grasp_pose_encoder.1} parent=91 // pred_check
            _
          $region94: #{conditional_grasp_pose_encoder.1} parent=91 // pred_check_branch
            %550 = sbr.rel (0) target = $region96
          $region95: #{conditional_grasp_pose_encoder.1} parent=91 // pred_region
            // Predicated region
            $region97: #{conditional_grasp_pose_encoder.1} parent=95 // pred_check
              _
            $region98: #{conditional_grasp_pose_encoder.1} parent=95 // pred_check_branch
              %552 = sbr.rel (0) target = $region100
            $region99: #{conditional_grasp_pose_encoder.1} parent=95 // pred_region
              // Predicated region
              $region112: #{conditional_grasp_pose_encoder.1} parent=99 // pred_check
                _
              $region113: #{conditional_grasp_pose_encoder.1} parent=99 // pred_check_branch
                %581 = sbr.rel (0) target = $region115
              $region114: #{conditional_grasp_pose_encoder.1} parent=99 // pred_region
                loop: start=0, step=1, limit=1
                $region116: #{conditional_grasp_pose_encoder.1} parent=114 // loop_pre_header
                  _
                $region117: #{conditional_grasp_pose_encoder.1} parent=114 // loop_header
                  %s583 = sphi 0, %s587
                  %p584 = scmp.ge.s32.totalorder %s583, 1
                  %s588 = sphi %s548, %s548
                  %s589 = sphi %s546, %s546
                $region118: #{conditional_grasp_pose_encoder.1} parent=114 // loop_header_branch
                  %586 = sbr.rel (%p584) target = $region122
                $region119: #{conditional_grasp_pose_encoder.1} parent=114 // loop_body
                  %v590 = vld [vmem:[%s588] sm:$0xff]
                  %591 = vst [vmem:[%s589] sm:$0xff] %v590
                  %v592 = vld [vmem:[%s588 + $0x10] sm:$0xff]
                  %593 = vst [vmem:[%s589 + $0x8] sm:$0xff] %v592
                  %v594 = vld [vmem:[%s588 + $0x20] sm:$0xff]
                  %595 = vst [vmem:[%s589 + $0x10] sm:$0xff] %v594
                  %v596 = vld [vmem:[%s588 + $0x30] sm:$0xff]
                  %597 = vst [vmem:[%s589 + $0x18] sm:$0xff] %v596
                  %v598 = vld [vmem:[%s588 + $0x40] sm:$0xff]
                  %599 = vst [vmem:[%s589 + $0x20] sm:$0xff] %v598
                  %v600 = vld [vmem:[%s588 + $0x50] sm:$0xff]
                  %601 = vst [vmem:[%s589 + $0x28] sm:$0xff] %v600
                  %v602 = vld [vmem:[%s588 + $0x60] sm:$0xff]
                  %603 = vst [vmem:[%s589 + $0x30] sm:$0xff] %v602
                  %v604 = vld [vmem:[%s588 + $0x70] sm:$0xff]
                  %605 = vst [vmem:[%s589 + $0x38] sm:$0xff] %v604
                $region120: #{conditional_grasp_pose_encoder.1} parent=114 // loop_footer
                  %s587 = sadd.s32 1, %s583
                $region121: #{conditional_grasp_pose_encoder.1} parent=114 // loop_footer_branch
                  %582 = sbr.rel target = $region117
                $region122: #{conditional_grasp_pose_encoder.1} parent=114 // loop_exit
                  _
              $region115: #{conditional_grasp_pose_encoder.1} parent=99 // pred_fallthru
                _
              // Predicated region
              $region123: #{conditional_grasp_pose_encoder.1} parent=99 // pred_check
                _
              $region124: #{conditional_grasp_pose_encoder.1} parent=99 // pred_check_branch
                %607 = sbr.rel target = $region126
              $region125: #{conditional_grasp_pose_encoder.1} parent=99 // pred_region
                _
              $region126: #{conditional_grasp_pose_encoder.1} parent=99 // pred_fallthru
                _
            $region100: #{conditional_grasp_pose_encoder.1} parent=95 // pred_fallthru
              _
            // Predicated region
            $region101: #{conditional_grasp_pose_encoder.1} parent=95 // pred_check
              _
            $region102: #{conditional_grasp_pose_encoder.1} parent=95 // pred_check_branch
              %554 = sbr.rel target = $region104
            $region103: #{conditional_grasp_pose_encoder.1} parent=95 // pred_region
              loop: start=0, step=1, limit=1
              $region105: #{conditional_grasp_pose_encoder.1} parent=103 // loop_pre_header
                _
              $region106: #{conditional_grasp_pose_encoder.1} parent=103 // loop_header
                %s557 = sphi 0, %s561
                %p558 = scmp.ge.s32.totalorder %s557, 1
                %s562 = sphi %s548, %s548
                %s563 = sphi %s546, %s546
              $region107: #{conditional_grasp_pose_encoder.1} parent=103 // loop_header_branch
                %560 = sbr.rel (%p558) target = $region111
              $region108: #{conditional_grasp_pose_encoder.1} parent=103 // loop_body
                %v564 = vld [vmem:[%s562] sm:$0xff]
                %565 = vst [vmem:[%s563] sm:$0xff] %v564
                %v566 = vld [vmem:[%s562 + $0x10] sm:$0xff]
                %567 = vst [vmem:[%s563 + $0x8] sm:$0xff] %v566
                %v568 = vld [vmem:[%s562 + $0x20] sm:$0xff]
                %569 = vst [vmem:[%s563 + $0x10] sm:$0xff] %v568
                %v570 = vld [vmem:[%s562 + $0x30] sm:$0xff]
                %571 = vst [vmem:[%s563 + $0x18] sm:$0xff] %v570
                %v572 = vld [vmem:[%s562 + $0x40] sm:$0xff]
                %573 = vst [vmem:[%s563 + $0x20] sm:$0xff] %v572
                %v574 = vld [vmem:[%s562 + $0x50] sm:$0xff]
                %575 = vst [vmem:[%s563 + $0x28] sm:$0xff] %v574
                %v576 = vld [vmem:[%s562 + $0x60] sm:$0xff]
                %577 = vst [vmem:[%s563 + $0x30] sm:$0xff] %v576
                %v578 = vld [vmem:[%s562 + $0x70] sm:$0xff]
                %579 = vst [vmem:[%s563 + $0x38] sm:$0xff] %v578
              $region109: #{conditional_grasp_pose_encoder.1} parent=103 // loop_footer
                %s561 = sadd.s32 1, %s557
              $region110: #{conditional_grasp_pose_encoder.1} parent=103 // loop_footer_branch
                %556 = sbr.rel target = $region106
              $region111: #{conditional_grasp_pose_encoder.1} parent=103 // loop_exit
                _
            $region104: #{conditional_grasp_pose_encoder.1} parent=95 // pred_fallthru
              _
          $region96: #{conditional_grasp_pose_encoder.1} parent=91 // pred_fallthru
            _
          %608 = vnop
        $region92: #{conditional_grasp_pose_encoder.1} parent=83 // pred_fallthru
          _
      $region84: #{conditional_grasp_pose_encoder.1} parent=5 // pred_fallthru
        _
      %p609 = scmp.le.s32.totalorder 1, %s28
      %p610 = scmp.lt.s32.totalorder %s28, 3
      %p611 = pnand %p609, %p610
      %p612 = pneg %p611
      // Predicated region
      $region127: #{conditional_grasp_pose_encoder.1} parent=5 // pred_check
        _
      $region128: #{conditional_grasp_pose_encoder.1} parent=5 // pred_check_branch
        %614 = sbr.rel (%p611) target = $region130
      $region129: #{conditional_grasp_pose_encoder.1} parent=5 // pred_region
        %s615 = ssub.s32 %s28, 1
        %s616 = sand.u32 %s67, 1
        %s617 = sand.u32 %s67, 1
        %s618 = smul.addr %s617, 64
        %s619 = scalar_lea.vmem [#allocation2], %s618
        // Predicated region
        $region131: #{conditional_grasp_pose_encoder.1} parent=129 // pred_check
          %p620 = pneg %p80
        $region132: #{conditional_grasp_pose_encoder.1} parent=129 // pred_check_branch
          %622 = sbr.rel (%p620) target = $region134
        $region133: #{conditional_grasp_pose_encoder.1} parent=129 // pred_region
          _
        $region134: #{conditional_grasp_pose_encoder.1} parent=129 // pred_fallthru
          _
        %p623 = scmp.lt.s32.totalorder %s33, 1
        %s624 = scalar_select %p623, %s33, 1
        %s625 = smul.addr %s624, 8
        %s626 = scalar_lea.vmem %s0, %s625
        %p627 = pneg %p54
        %p628 = pneg %p51
        %s629 = sand.u32 %s67, 1
        %s630 = sand.u32 %s67, 1
        %s631 = smul.addr %s630, 64
        %s632 = scalar_lea.vmem [#allocation2], %s631
        %p633 = pneg %p80
        %p634 = pneg %p77
        %p635 = pneg %p101
        %p636 = pneg %p98
        %p637 = pneg %p122
        %p638 = pneg %p119
        %p639 = pneg %p143
        %p640 = pneg %p140
        %p641 = pneg %p164
        %p642 = pneg %p161
        %p643 = pneg %p185
        %p644 = pneg %p182
        %p645 = pneg %p206
        %p646 = pneg %p203
        %p647 = pneg %p227
        %p648 = pneg %p224
        %p649 = pneg %p248
        %p650 = pneg %p245
        %p651 = pneg %p269
        %p652 = pneg %p266
        %p653 = pneg %p290
        %p654 = pneg %p287
        %p655 = pneg %p311
        %p656 = pneg %p308
        %p657 = pneg %p332
        %p658 = pneg %p329
        %p659 = pneg %p353
        %p660 = pneg %p350
        %p661 = pneg %p374
        %p662 = pneg %p371
        %p663 = pneg %p395
        %p664 = pneg %p392
        %p665 = pneg %p416
        %p666 = pneg %p413
        %p667 = pneg %p437
        %p668 = pneg %p434
        %p669 = pneg %p463
        %p670 = pneg %p460
        %s671 = sand.u32 %s450, 1
        %s672 = scalar_lea.sflag [#allocation4], %s671
        %s673 = sand.u32 %s450, 1
        %s674 = smul.addr %s673, 8
        %s675 = scalar_lea.vmem [#allocation3], %s674
        %p676 = scmp.lt.s32.totalorder %s33, 1
        %s677 = scalar_select %p676, %s33, 1
        %s678 = smul.addr %s677, 8
        %s679 = scalar_lea.vmem %s0, %s678
        %v680 = vld [vmem:[%s679] sm:$0x7f]
        %v681 = vld [vmem:[%s619] sm:$0xff]
        %v682 = vld [vmem:[%s619 + $0x8] sm:$0xff]
        %v683 = vld [vmem:[%s619 + $0x10] sm:$0xff]
        %v684 = vld [vmem:[%s619 + $0x18] sm:$0xff]
        %v685 = vld [vmem:[%s619 + $0x20] sm:$0xff]
        %v686 = vld [vmem:[%s619 + $0x28] sm:$0xff]
        %v687 = vld [vmem:[%s619 + $0x30] sm:$0xff]
        %v688 = vld [vmem:[%s619 + $0x38] sm:$0xff]
        %v689 = vld [vmem:[%s2] sm:$0xff]
        %v690 = vld [vmem:[%s2 + $0x8] sm:$0xff]
        %v691 = vld [vmem:[%s3] sm:$0xff]
        %v692 = vld [vmem:[%s3 + $0x8] sm:$0xff]
        %694 = vset.pattern.permute.xlu0 0
        %695 = vperm.xlu0 %694, %v691
        %v696 = vpop.permute.xlu0 %695
        %699 = vset.pattern.permute.xlu0 0
        %700 = vperm.xlu0 %699, %v692
        %v701 = vpop.permute.xlu0 %700
        %vm703 = vcmask 56320
        %v705 = vsel %vm703, %v689, 0
        %v708 = vsel %vm703, %v690, 0
        %vm710 = vcmask 1046528
        %v712 = vsel %vm710, %v680, 0
        %714 = vmatprep.subr.mxu0 0.0
        %715 = vmatpush1.msra.mxu0 %v712
        %716 = vmatprep.subr.mxu0 0.0
        %717 = vmatpush1.msra.mxu0 0.0
        %718 = vmatprep.subr.mxu0 0.0
        %719 = vmatpush1.msra.mxu0 0.0
        %720 = vmatprep.subr.mxu0 0.0
        %721 = vmatpush1.msra.mxu0 0.0
        %722 = vmatprep.subr.mxu0 0.0
        %723 = vmatpush1.msra.mxu0 0.0
        %724 = vmatprep.subr.mxu0 0.0
        %725 = vmatpush1.msra.mxu0 0.0
        %726 = vmatprep.subr.mxu0 0.0
        %727 = vmatpush1.msra.mxu0 0.0
        %728 = vmatprep.subr.mxu0 0.0
        %729 = vmatpush1.msra.mxu0 0.0
        %730 = vmatprep.subr.mxu0 0.0
        %731 = vmatpush1.msra.mxu0 0.0
        %732 = vmatprep.subr.mxu0 0.0
        %733 = vmatpush1.msra.mxu0 0.0
        %734 = vmatprep.subr.mxu0 0.0
        %735 = vmatpush1.msra.mxu0 0.0
        %736 = vmatprep.subr.mxu0 0.0
        %737 = vmatpush1.msra.mxu0 0.0
        %738 = vmatprep.subr.mxu0 0.0
        %739 = vmatpush1.msra.mxu0 0.0
        %740 = vmatprep.subr.mxu0 0.0
        %741 = vmatpush1.msra.mxu0 0.0
        %742 = vmatprep.subr.mxu0 0.0
        %743 = vmatpush1.msra.mxu0 0.0
        %744 = vmatprep.subr.mxu0 0.0
        %745 = vmatpush1.msra.mxu0 0.0
        %746 = vmatprep.subr.mxu0 0.0
        %747 = vmatpush1.msra.mxu0 0.0
        %748 = vmatprep.subr.mxu0 0.0
        %749 = vmatpush1.msra.mxu0 0.0
        %750 = vmatprep.subr.mxu0 0.0
        %751 = vmatpush1.msra.mxu0 0.0
        %752 = vmatprep.subr.mxu0 0.0
        %753 = vmatpush1.msra.mxu0 0.0
        %754 = vmatprep.subr.mxu0 0.0
        %755 = vmatpush1.msra.mxu0 0.0
        %756 = vmatprep.subr.mxu0 0.0
        %757 = vmatpush1.msra.mxu0 0.0
        %758 = vmatprep.subr.mxu0 0.0
        %759 = vmatpush1.msra.mxu0 0.0
        %760 = vmatprep.subr.mxu0 0.0
        %761 = vmatpush1.msra.mxu0 0.0
        %762 = vmatprep.subr.mxu0 0.0
        %763 = vmatpush1.msra.mxu0 0.0
        %764 = vmatprep.subr.mxu0 0.0
        %765 = vmatpush1.msra.mxu0 0.0
        %766 = vmatprep.subr.mxu0 0.0
        %767 = vmatpush1.msra.mxu0 0.0
        %768 = vmatprep.subr.mxu0 0.0
        %769 = vmatpush1.msra.mxu0 0.0
        %770 = vmatprep.subr.mxu0 0.0
        %771 = vmatpush1.msra.mxu0 0.0
        %772 = vmatprep.subr.mxu0 0.0
        %773 = vmatpush1.msra.mxu0 0.0
        %774 = vmatprep.subr.mxu0 0.0
        %775 = vmatpush1.msra.mxu0 0.0
        %776 = vmatprep.subr.mxu0 0.0
        %777 = vmatpush1.msra.mxu0 0.0
        %778 = vmatprep.mubr.f32.mxu0 0.0
        %779 = vmatmul.mubr.f32.gmra.mrb[0].mxu0 %v705
        %v780 = vpop.f32.mrb[0].mxu0
        %v781 = vadd.f32 %v696, %v780
        %v782 = vpop.f32.mrb[0].mxu0
        %783 = vmatprep.mubr.f32.mxu0 0.0
        %784 = vmatmul.mubr.f32.gmra.mrb[0].mxu0 %v708
        %v785 = vpop.f32.mrb[0].mxu0
        %v786 = vadd.f32 %v701, %v785
        %v787 = vpop.f32.mrb[0].mxu0
        %788 = vdwg.mxu0
        %v789 = vld [vmem:[%s4] sm:$0xff]
        %v790 = vld [vmem:[%s4 + $0x8] sm:$0xff]
        %v791 = vld [vmem:[%s4 + $0x10] sm:$0xff]
        %v792 = vld [vmem:[%s4 + $0x18] sm:$0xff]
        %v793 = vld [vmem:[%s4 + $0x20] sm:$0xff]
        %v794 = vld [vmem:[%s4 + $0x28] sm:$0xff]
        %v795 = vld [vmem:[%s4 + $0x30] sm:$0xff]
        %v796 = vld [vmem:[%s4 + $0x38] sm:$0xff]
        %v797 = vld [vmem:[%s4 + $0x40] sm:$0xff]
        %v798 = vld [vmem:[%s4 + $0x48] sm:$0xff]
        %v799 = vld [vmem:[%s4 + $0x50] sm:$0xff]
        %v800 = vld [vmem:[%s4 + $0x58] sm:$0xff]
        %v801 = vld [vmem:[%s4 + $0x60] sm:$0xff]
        %v802 = vld [vmem:[%s4 + $0x68] sm:$0xff]
        %v803 = vld [vmem:[%s4 + $0x70] sm:$0xff]
        %v804 = vld [vmem:[%s4 + $0x78] sm:$0xff]
        %v805 = vld [vmem:[%s5] sm:$0xff]
        %v806 = vld [vmem:[%s5 + $0x8] sm:$0xff]
        %v807 = vld [vmem:[%s5 + $0x10] sm:$0xff]
        %v808 = vld [vmem:[%s5 + $0x18] sm:$0xff]
        %v809 = vld [vmem:[%s5 + $0x20] sm:$0xff]
        %v810 = vld [vmem:[%s5 + $0x28] sm:$0xff]
        %v811 = vld [vmem:[%s5 + $0x30] sm:$0xff]
        %v812 = vld [vmem:[%s5 + $0x38] sm:$0xff]
        %v813 = vld [vmem:[%s5 + $0x40] sm:$0xff]
        %v814 = vld [vmem:[%s5 + $0x48] sm:$0xff]
        %v815 = vld [vmem:[%s5 + $0x50] sm:$0xff]
        %v816 = vld [vmem:[%s5 + $0x58] sm:$0xff]
        %v817 = vld [vmem:[%s5 + $0x60] sm:$0xff]
        %v818 = vld [vmem:[%s5 + $0x68] sm:$0xff]
        %v819 = vld [vmem:[%s5 + $0x70] sm:$0xff]
        %v820 = vld [vmem:[%s5 + $0x78] sm:$0xff]
        %vm821 = vcmask 523264
        %v823 = vsel %vm821, %v805, 0
        %v826 = vsel %vm821, %v806, 0
        %v829 = vsel %vm821, %v807, 0
        %v832 = vsel %vm821, %v808, 0
        %v835 = vsel %vm821, %v809, 0
        %v838 = vsel %vm821, %v810, 0
        %v841 = vsel %vm821, %v811, 0
        %v844 = vsel %vm821, %v812, 0
        %v847 = vsel %vm821, %v813, 0
        %v850 = vsel %vm821, %v814, 0
        %v853 = vsel %vm821, %v815, 0
        %v856 = vsel %vm821, %v816, 0
        %v859 = vsel %vm821, %v817, 0
        %v862 = vsel %vm821, %v818, 0
        %v865 = vsel %vm821, %v819, 0
        %v868 = vsel %vm821, %v820, 0
        %870 = vmatprep.subr.mxu0 0.0
        %871 = vmatpush1.msra.mxu0 %v681
        %872 = vmatprep.subr.mxu0 0.0
        %873 = vmatpush1.msra.mxu0 %v682
        %874 = vmatprep.subr.mxu0 0.0
        %875 = vmatpush1.msra.mxu0 %v683
        %876 = vmatprep.subr.mxu0 0.0
        %877 = vmatpush1.msra.mxu0 %v684
        %878 = vmatprep.subr.mxu0 0.0
        %879 = vmatpush1.msra.mxu0 %v685
        %880 = vmatprep.subr.mxu0 0.0
        %881 = vmatpush1.msra.mxu0 %v686
        %882 = vmatprep.subr.mxu0 0.0
        %883 = vmatpush1.msra.mxu0 %v687
        %884 = vmatprep.subr.mxu0 0.0
        %885 = vmatpush1.msra.mxu0 %v688
        %886 = vmatprep.subr.mxu0 0.0
        %887 = vmatpush1.msra.mxu0 0.0
        %888 = vmatprep.subr.mxu0 0.0
        %889 = vmatpush1.msra.mxu0 0.0
        %890 = vmatprep.subr.mxu0 0.0
        %891 = vmatpush1.msra.mxu0 0.0
        %892 = vmatprep.subr.mxu0 0.0
        %893 = vmatpush1.msra.mxu0 0.0
        %894 = vmatprep.subr.mxu0 0.0
        %895 = vmatpush1.msra.mxu0 0.0
        %896 = vmatprep.subr.mxu0 0.0
        %897 = vmatpush1.msra.mxu0 0.0
        %898 = vmatprep.subr.mxu0 0.0
        %899 = vmatpush1.msra.mxu0 0.0
        %900 = vmatprep.subr.mxu0 0.0
        %901 = vmatpush1.msra.mxu0 0.0
        %902 = vmatprep.subr.mxu0 0.0
        %903 = vmatpush1.msra.mxu0 0.0
        %904 = vmatprep.subr.mxu0 0.0
        %905 = vmatpush1.msra.mxu0 0.0
        %906 = vmatprep.subr.mxu0 0.0
        %907 = vmatpush1.msra.mxu0 0.0
        %908 = vmatprep.subr.mxu0 0.0
        %909 = vmatpush1.msra.mxu0 0.0
        %910 = vmatprep.subr.mxu0 0.0
        %911 = vmatpush1.msra.mxu0 0.0
        %912 = vmatprep.subr.mxu0 0.0
        %913 = vmatpush1.msra.mxu0 0.0
        %914 = vmatprep.subr.mxu0 0.0
        %915 = vmatpush1.msra.mxu0 0.0
        %916 = vmatprep.subr.mxu0 0.0
        %917 = vmatpush1.msra.mxu0 0.0
        %918 = vmatprep.subr.mxu0 0.0
        %919 = vmatpush1.msra.mxu0 0.0
        %920 = vmatprep.subr.mxu0 0.0
        %921 = vmatpush1.msra.mxu0 0.0
        %922 = vmatprep.subr.mxu0 0.0
        %923 = vmatpush1.msra.mxu0 0.0
        %924 = vmatprep.subr.mxu0 0.0
        %925 = vmatpush1.msra.mxu0 0.0
        %926 = vmatprep.subr.mxu0 0.0
        %927 = vmatpush1.msra.mxu0 0.0
        %928 = vmatprep.subr.mxu0 0.0
        %929 = vmatpush1.msra.mxu0 0.0
        %930 = vmatprep.subr.mxu0 0.0
        %931 = vmatpush1.msra.mxu0 0.0
        %932 = vmatprep.subr.mxu0 0.0
        %933 = vmatpush1.msra.mxu0 0.0
        %934 = vmatprep.mubr.f32.mxu0 0.0
        %935 = vmatmul.mubr.f32.gmra.mrb[0].mxu0 %v823
        %v936 = vpop.f32.mrb[0].mxu0
        %v937 = vadd.f32 0.0, %v936
        %v938 = vpop.f32.mrb[0].mxu0
        %939 = vmatprep.mubr.f32.mxu0 0.0
        %940 = vmatmul.mubr.f32.gmra.mrb[0].mxu0 %v826
        %v941 = vpop.f32.mrb[0].mxu0
        %v942 = vadd.f32 0.0, %v941
        %v943 = vpop.f32.mrb[0].mxu0
        %944 = vmatprep.mubr.f32.mxu0 0.0
        %945 = vmatmul.mubr.f32.gmra.mrb[0].mxu0 %v829
        %v946 = vpop.f32.mrb[0].mxu0
        %v947 = vadd.f32 0.0, %v946
        %v948 = vpop.f32.mrb[0].mxu0
        %949 = vmatprep.mubr.f32.mxu0 0.0
        %950 = vmatmul.mubr.f32.gmra.mrb[0].mxu0 %v832
        %v951 = vpop.f32.mrb[0].mxu0
        %v952 = vadd.f32 0.0, %v951
        %v953 = vpop.f32.mrb[0].mxu0
        %954 = vmatprep.mubr.f32.mxu0 0.0
        %955 = vmatmul.mubr.f32.gmra.mrb[0].mxu0 %v835
        %v956 = vpop.f32.mrb[0].mxu0
        %v957 = vadd.f32 0.0, %v956
        %v958 = vpop.f32.mrb[0].mxu0
        %959 = vmatprep.mubr.f32.mxu0 0.0
        %960 = vmatmul.mubr.f32.gmra.mrb[0].mxu0 %v838
        %v961 = vpop.f32.mrb[0].mxu0
        %v962 = vadd.f32 0.0, %v961
        %v963 = vpop.f32.mrb[0].mxu0
        %964 = vmatprep.mubr.f32.mxu0 0.0
        %965 = vmatmul.mubr.f32.gmra.mrb[0].mxu0 %v841
        %v966 = vpop.f32.mrb[0].mxu0
        %v967 = vadd.f32 0.0, %v966
        %v968 = vpop.f32.mrb[0].mxu0
        %969 = vmatprep.mubr.f32.mxu0 0.0
        %970 = vmatmul.mubr.f32.gmra.mrb[0].mxu0 %v844
        %v971 = vpop.f32.mrb[0].mxu0
        %v972 = vadd.f32 0.0, %v971
        %v973 = vpop.f32.mrb[0].mxu0
        %974 = vmatprep.mubr.f32.mxu0 0.0
        %975 = vmatmul.mubr.f32.gmra.mrb[0].mxu0 %v847
        %v976 = vpop.f32.mrb[0].mxu0
        %v977 = vadd.f32 0.0, %v976
        %v978 = vpop.f32.mrb[0].mxu0
        %979 = vmatprep.mubr.f32.mxu0 0.0
        %980 = vmatmul.mubr.f32.gmra.mrb[0].mxu0 %v850
        %v981 = vpop.f32.mrb[0].mxu0
        %v982 = vadd.f32 0.0, %v981
        %v983 = vpop.f32.mrb[0].mxu0
        %984 = vmatprep.mubr.f32.mxu0 0.0
        %985 = vmatmul.mubr.f32.gmra.mrb[0].mxu0 %v853
        %v986 = vpop.f32.mrb[0].mxu0
        %v987 = vadd.f32 0.0, %v986
        %v988 = vpop.f32.mrb[0].mxu0
        %989 = vmatprep.mubr.f32.mxu0 0.0
        %990 = vmatmul.mubr.f32.gmra.mrb[0].mxu0 %v856
        %v991 = vpop.f32.mrb[0].mxu0
        %v992 = vadd.f32 0.0, %v991
        %v993 = vpop.f32.mrb[0].mxu0
        %994 = vmatprep.mubr.f32.mxu0 0.0
        %995 = vmatmul.mubr.f32.gmra.mrb[0].mxu0 %v859
        %v996 = vpop.f32.mrb[0].mxu0
        %v997 = vadd.f32 0.0, %v996
        %v998 = vpop.f32.mrb[0].mxu0
        %999 = vmatprep.mubr.f32.mxu0 0.0
        %1000 = vmatmul.mubr.f32.gmra.mrb[0].mxu0 %v862
        %v1001 = vpop.f32.mrb[0].mxu0
        %v1002 = vadd.f32 0.0, %v1001
        %v1003 = vpop.f32.mrb[0].mxu0
        %1004 = vmatprep.mubr.f32.mxu0 0.0
        %1005 = vmatmul.mubr.f32.gmra.mrb[0].mxu0 %v865
        %v1006 = vpop.f32.mrb[0].mxu0
        %v1007 = vadd.f32 0.0, %v1006
        %v1008 = vpop.f32.mrb[0].mxu0
        %1009 = vmatprep.mubr.f32.mxu0 0.0
        %1010 = vmatmul.mubr.f32.gmra.mrb[0].mxu0 %v868
        %v1011 = vpop.f32.mrb[0].mxu0
        %v1012 = vadd.f32 0.0, %v1011
        %v1013 = vpop.f32.mrb[0].mxu0
        %1014 = vdwg.mxu0
        %vm1015 = vcmask 130048
        %v1017 = vsel %vm1015, %v789, 0
        %v1020 = vsel %vm1015, %v790, 0
        %v1023 = vsel %vm1015, %v791, 0
        %v1026 = vsel %vm1015, %v792, 0
        %v1029 = vsel %vm1015, %v793, 0
        %v1032 = vsel %vm1015, %v794, 0
        %v1035 = vsel %vm1015, %v795, 0
        %v1038 = vsel %vm1015, %v796, 0
        %v1041 = vsel %vm1015, %v797, 0
        %v1044 = vsel %vm1015, %v798, 0
        %v1047 = vsel %vm1015, %v799, 0
        %v1050 = vsel %vm1015, %v800, 0
        %v1053 = vsel %vm1015, %v801, 0
        %v1056 = vsel %vm1015, %v802, 0
        %v1059 = vsel %vm1015, %v803, 0
        %v1062 = vsel %vm1015, %v804, 0
        %1064 = vmatprep.subr.mxu0 0.0
        %1065 = vmatpush1.msra.mxu0 %v781
        %1066 = vmatprep.subr.mxu0 0.0
        %1067 = vmatpush1.msra.mxu0 %v786
        %1068 = vmatprep.subr.mxu0 0.0
        %1069 = vmatpush1.msra.mxu0 0.0
        %1070 = vmatprep.subr.mxu0 0.0
        %1071 = vmatpush1.msra.mxu0 0.0
        %1072 = vmatprep.subr.mxu0 0.0
        %1073 = vmatpush1.msra.mxu0 0.0
        %1074 = vmatprep.subr.mxu0 0.0
        %1075 = vmatpush1.msra.mxu0 0.0
        %1076 = vmatprep.subr.mxu0 0.0
        %1077 = vmatpush1.msra.mxu0 0.0
        %1078 = vmatprep.subr.mxu0 0.0
        %1079 = vmatpush1.msra.mxu0 0.0
        %1080 = vmatprep.subr.mxu0 0.0
        %1081 = vmatpush1.msra.mxu0 0.0
        %1082 = vmatprep.subr.mxu0 0.0
        %1083 = vmatpush1.msra.mxu0 0.0
        %1084 = vmatprep.subr.mxu0 0.0
        %1085 = vmatpush1.msra.mxu0 0.0
        %1086 = vmatprep.subr.mxu0 0.0
        %1087 = vmatpush1.msra.mxu0 0.0
        %1088 = vmatprep.subr.mxu0 0.0
        %1089 = vmatpush1.msra.mxu0 0.0
        %1090 = vmatprep.subr.mxu0 0.0
        %1091 = vmatpush1.msra.mxu0 0.0
        %1092 = vmatprep.subr.mxu0 0.0
        %1093 = vmatpush1.msra.mxu0 0.0
        %1094 = vmatprep.subr.mxu0 0.0
        %1095 = vmatpush1.msra.mxu0 0.0
        %1096 = vmatprep.subr.mxu0 0.0
        %1097 = vmatpush1.msra.mxu0 0.0
        %1098 = vmatprep.subr.mxu0 0.0
        %1099 = vmatpush1.msra.mxu0 0.0
        %1100 = vmatprep.subr.mxu0 0.0
        %1101 = vmatpush1.msra.mxu0 0.0
        %1102 = vmatprep.subr.mxu0 0.0
        %1103 = vmatpush1.msra.mxu0 0.0
        %1104 = vmatprep.subr.mxu0 0.0
        %1105 = vmatpush1.msra.mxu0 0.0
        %1106 = vmatprep.subr.mxu0 0.0
        %1107 = vmatpush1.msra.mxu0 0.0
        %1108 = vmatprep.subr.mxu0 0.0
        %1109 = vmatpush1.msra.mxu0 0.0
        %1110 = vmatprep.subr.mxu0 0.0
        %1111 = vmatpush1.msra.mxu0 0.0
        %1112 = vmatprep.subr.mxu0 0.0
        %1113 = vmatpush1.msra.mxu0 0.0
        %1114 = vmatprep.subr.mxu0 0.0
        %1115 = vmatpush1.msra.mxu0 0.0
        %1116 = vmatprep.subr.mxu0 0.0
        %1117 = vmatpush1.msra.mxu0 0.0
        %1118 = vmatprep.subr.mxu0 0.0
        %1119 = vmatpush1.msra.mxu0 0.0
        %1120 = vmatprep.subr.mxu0 0.0
        %1121 = vmatpush1.msra.mxu0 0.0
        %1122 = vmatprep.subr.mxu0 0.0
        %1123 = vmatpush1.msra.mxu0 0.0
        %1124 = vmatprep.subr.mxu0 0.0
        %1125 = vmatpush1.msra.mxu0 0.0
        %1126 = vmatprep.subr.mxu0 0.0
        %1127 = vmatpush1.msra.mxu0 0.0
        %1128 = vmatprep.mubr.f32.mxu0 0.0
        %1129 = vmatmul.mubr.f32.gmra.mrb[0].mxu0 %v1017
        %v1130 = vpop.f32.mrb[0].mxu0
        %v1131 = vadd.f32 %v937, %v1130
        %v1132 = vpop.f32.mrb[0].mxu0
        %1133 = vmatprep.mubr.f32.mxu0 0.0
        %1134 = vmatmul.mubr.f32.gmra.mrb[0].mxu0 %v1020
        %v1135 = vpop.f32.mrb[0].mxu0
        %v1136 = vadd.f32 %v942, %v1135
        %v1137 = vpop.f32.mrb[0].mxu0
        %1138 = vmatprep.mubr.f32.mxu0 0.0
        %1139 = vmatmul.mubr.f32.gmra.mrb[0].mxu0 %v1023
        %v1140 = vpop.f32.mrb[0].mxu0
        %v1141 = vadd.f32 %v947, %v1140
        %v1142 = vpop.f32.mrb[0].mxu0
        %1143 = vmatprep.mubr.f32.mxu0 0.0
        %1144 = vmatmul.mubr.f32.gmra.mrb[0].mxu0 %v1026
        %v1145 = vpop.f32.mrb[0].mxu0
        %v1146 = vadd.f32 %v952, %v1145
        %v1147 = vpop.f32.mrb[0].mxu0
        %1148 = vmatprep.mubr.f32.mxu0 0.0
        %1149 = vmatmul.mubr.f32.gmra.mrb[0].mxu0 %v1029
        %v1150 = vpop.f32.mrb[0].mxu0
        %v1151 = vadd.f32 %v957, %v1150
        %v1152 = vpop.f32.mrb[0].mxu0
        %1153 = vmatprep.mubr.f32.mxu0 0.0
        %1154 = vmatmul.mubr.f32.gmra.mrb[0].mxu0 %v1032
        %v1155 = vpop.f32.mrb[0].mxu0
        %v1156 = vadd.f32 %v962, %v1155
        %v1157 = vpop.f32.mrb[0].mxu0
        %1158 = vmatprep.mubr.f32.mxu0 0.0
        %1159 = vmatmul.mubr.f32.gmra.mrb[0].mxu0 %v1035
        %v1160 = vpop.f32.mrb[0].mxu0
        %v1161 = vadd.f32 %v967, %v1160
        %v1162 = vpop.f32.mrb[0].mxu0
        %1163 = vmatprep.mubr.f32.mxu0 0.0
        %1164 = vmatmul.mubr.f32.gmra.mrb[0].mxu0 %v1038
        %v1165 = vpop.f32.mrb[0].mxu0
        %v1166 = vadd.f32 %v972, %v1165
        %v1167 = vpop.f32.mrb[0].mxu0
        %1168 = vmatprep.mubr.f32.mxu0 0.0
        %1169 = vmatmul.mubr.f32.gmra.mrb[0].mxu0 %v1041
        %v1170 = vpop.f32.mrb[0].mxu0
        %v1171 = vadd.f32 %v977, %v1170
        %v1172 = vpop.f32.mrb[0].mxu0
        %1173 = vmatprep.mubr.f32.mxu0 0.0
        %1174 = vmatmul.mubr.f32.gmra.mrb[0].mxu0 %v1044
        %v1175 = vpop.f32.mrb[0].mxu0
        %v1176 = vadd.f32 %v982, %v1175
        %v1177 = vpop.f32.mrb[0].mxu0
        %1178 = vmatprep.mubr.f32.mxu0 0.0
        %1179 = vmatmul.mubr.f32.gmra.mrb[0].mxu0 %v1047
        %v1180 = vpop.f32.mrb[0].mxu0
        %v1181 = vadd.f32 %v987, %v1180
        %v1182 = vpop.f32.mrb[0].mxu0
        %1183 = vmatprep.mubr.f32.mxu0 0.0
        %1184 = vmatmul.mubr.f32.gmra.mrb[0].mxu0 %v1050
        %v1185 = vpop.f32.mrb[0].mxu0
        %v1186 = vadd.f32 %v992, %v1185
        %v1187 = vpop.f32.mrb[0].mxu0
        %1188 = vmatprep.mubr.f32.mxu0 0.0
        %1189 = vmatmul.mubr.f32.gmra.mrb[0].mxu0 %v1053
        %v1190 = vpop.f32.mrb[0].mxu0
        %v1191 = vadd.f32 %v997, %v1190
        %v1192 = vpop.f32.mrb[0].mxu0
        %1193 = vmatprep.mubr.f32.mxu0 0.0
        %1194 = vmatmul.mubr.f32.gmra.mrb[0].mxu0 %v1056
        %v1195 = vpop.f32.mrb[0].mxu0
        %v1196 = vadd.f32 %v1002, %v1195
        %v1197 = vpop.f32.mrb[0].mxu0
        %1198 = vmatprep.mubr.f32.mxu0 0.0
        %1199 = vmatmul.mubr.f32.gmra.mrb[0].mxu0 %v1059
        %v1200 = vpop.f32.mrb[0].mxu0
        %v1201 = vadd.f32 %v1007, %v1200
        %v1202 = vpop.f32.mrb[0].mxu0
        %1203 = vmatprep.mubr.f32.mxu0 0.0
        %1204 = vmatmul.mubr.f32.gmra.mrb[0].mxu0 %v1062
        %v1205 = vpop.f32.mrb[0].mxu0
        %v1206 = vadd.f32 %v1012, %v1205
        %v1207 = vpop.f32.mrb[0].mxu0
        %1208 = vdwg.mxu0
        %v1209 = vld [vmem:[%s6] sm:$0xff]
        %v1210 = vld [vmem:[%s6 + $0x8] sm:$0xff]
        %v1211 = vld [vmem:[%s6 + $0x10] sm:$0xff]
        %v1212 = vld [vmem:[%s6 + $0x18] sm:$0xff]
        %v1213 = vld [vmem:[%s6 + $0x20] sm:$0xff]
        %v1214 = vld [vmem:[%s6 + $0x28] sm:$0xff]
        %v1215 = vld [vmem:[%s6 + $0x30] sm:$0xff]
        %v1216 = vld [vmem:[%s6 + $0x38] sm:$0xff]
        %v1217 = vld [vmem:[%s6 + $0x40] sm:$0xff]
        %v1218 = vld [vmem:[%s6 + $0x48] sm:$0xff]
        %v1219 = vld [vmem:[%s6 + $0x50] sm:$0xff]
        %v1220 = vld [vmem:[%s6 + $0x58] sm:$0xff]
        %v1221 = vld [vmem:[%s6 + $0x60] sm:$0xff]
        %v1222 = vld [vmem:[%s6 + $0x68] sm:$0xff]
        %v1223 = vld [vmem:[%s6 + $0x70] sm:$0xff]
        %v1224 = vld [vmem:[%s6 + $0x78] sm:$0xff]
        %1226 = vset.pattern.permute.xlu0 0
        %1227 = vperm.xlu0 %1226, %v1209
        %v1228 = vpop.permute.xlu0 %1227
        %1231 = vset.pattern.permute.xlu0 0
        %1232 = vperm.xlu0 %1231, %v1210
        %v1233 = vpop.permute.xlu0 %1232
        %1236 = vset.pattern.permute.xlu0 0
        %1237 = vperm.xlu0 %1236, %v1211
        %v1238 = vpop.permute.xlu0 %1237
        %1241 = vset.pattern.permute.xlu0 0
        %1242 = vperm.xlu0 %1241, %v1212
        %v1243 = vpop.permute.xlu0 %1242
        %1246 = vset.pattern.permute.xlu0 0
        %1247 = vperm.xlu0 %1246, %v1213
        %v1248 = vpop.permute.xlu0 %1247
        %1251 = vset.pattern.permute.xlu0 0
        %1252 = vperm.xlu0 %1251, %v1214
        %v1253 = vpop.permute.xlu0 %1252
        %1256 = vset.pattern.permute.xlu0 0
        %1257 = vperm.xlu0 %1256, %v1215
        %v1258 = vpop.permute.xlu0 %1257
        %1261 = vset.pattern.permute.xlu0 0
        %1262 = vperm.xlu0 %1261, %v1216
        %v1263 = vpop.permute.xlu0 %1262
        %1266 = vset.pattern.permute.xlu0 0
        %1267 = vperm.xlu0 %1266, %v1217
        %v1268 = vpop.permute.xlu0 %1267
        %1271 = vset.pattern.permute.xlu0 0
        %1272 = vperm.xlu0 %1271, %v1218
        %v1273 = vpop.permute.xlu0 %1272
        %1276 = vset.pattern.permute.xlu0 0
        %1277 = vperm.xlu0 %1276, %v1219
        %v1278 = vpop.permute.xlu0 %1277
        %1281 = vset.pattern.permute.xlu0 0
        %1282 = vperm.xlu0 %1281, %v1220
        %v1283 = vpop.permute.xlu0 %1282
        %1286 = vset.pattern.permute.xlu0 0
        %1287 = vperm.xlu0 %1286, %v1221
        %v1288 = vpop.permute.xlu0 %1287
        %1291 = vset.pattern.permute.xlu0 0
        %1292 = vperm.xlu0 %1291, %v1222
        %v1293 = vpop.permute.xlu0 %1292
        %1296 = vset.pattern.permute.xlu0 0
        %1297 = vperm.xlu0 %1296, %v1223
        %v1298 = vpop.permute.xlu0 %1297
        %1301 = vset.pattern.permute.xlu0 0
        %1302 = vperm.xlu0 %1301, %v1224
        %v1303 = vpop.permute.xlu0 %1302
        %v1305 = vadd.f32 %v1131, %v1228
        %v1306 = vadd.f32 %v1136, %v1233
        %v1307 = vadd.f32 %v1141, %v1238
        %v1308 = vadd.f32 %v1146, %v1243
        %v1309 = vadd.f32 %v1151, %v1248
        %v1310 = vadd.f32 %v1156, %v1253
        %v1311 = vadd.f32 %v1161, %v1258
        %v1312 = vadd.f32 %v1166, %v1263
        %v1313 = vadd.f32 %v1171, %v1268
        %v1314 = vadd.f32 %v1176, %v1273
        %v1315 = vadd.f32 %v1181, %v1278
        %v1316 = vadd.f32 %v1186, %v1283
        %v1317 = vadd.f32 %v1191, %v1288
        %v1318 = vadd.f32 %v1196, %v1293
        %v1319 = vadd.f32 %v1201, %v1298
        %v1320 = vadd.f32 %v1206, %v1303
        %v1321 = vxor.u32 %v1305, 2147483648
        %v1322 = vxor.u32 %v1306, 2147483648
        %v1323 = vxor.u32 %v1307, 2147483648
        %v1324 = vxor.u32 %v1308, 2147483648
        %v1325 = vxor.u32 %v1309, 2147483648
        %v1326 = vxor.u32 %v1310, 2147483648
        %v1327 = vxor.u32 %v1311, 2147483648
        %v1328 = vxor.u32 %v1312, 2147483648
        %v1329 = vxor.u32 %v1313, 2147483648
        %v1330 = vxor.u32 %v1314, 2147483648
        %v1331 = vxor.u32 %v1315, 2147483648
        %v1332 = vxor.u32 %v1316, 2147483648
        %v1333 = vxor.u32 %v1317, 2147483648
        %v1334 = vxor.u32 %v1318, 2147483648
        %v1335 = vxor.u32 %v1319, 2147483648
        %v1336 = vxor.u32 %v1320, 2147483648
        %v1337 = vmul.f32 %v1321, 1.442695
        %v1338 = vpow.pop %v1337
        %v1339 = vmul.f32 %v1322, 1.442695
        %v1340 = vpow.pop %v1339
        %v1341 = vmul.f32 %v1323, 1.442695
        %v1342 = vpow.pop %v1341
        %v1343 = vmul.f32 %v1324, 1.442695
        %v1344 = vpow.pop %v1343
        %v1345 = vmul.f32 %v1325, 1.442695
        %v1346 = vpow.pop %v1345
        %v1347 = vmul.f32 %v1326, 1.442695
        %v1348 = vpow.pop %v1347
        %v1349 = vmul.f32 %v1327, 1.442695
        %v1350 = vpow.pop %v1349
        %v1351 = vmul.f32 %v1328, 1.442695
        %v1352 = vpow.pop %v1351
        %v1353 = vmul.f32 %v1329, 1.442695
        %v1354 = vpow.pop %v1353
        %v1355 = vmul.f32 %v1330, 1.442695
        %v1356 = vpow.pop %v1355
        %v1357 = vmul.f32 %v1331, 1.442695
        %v1358 = vpow.pop %v1357
        %v1359 = vmul.f32 %v1332, 1.442695
        %v1360 = vpow.pop %v1359
        %v1361 = vmul.f32 %v1333, 1.442695
        %v1362 = vpow.pop %v1361
        %v1363 = vmul.f32 %v1334, 1.442695
        %v1364 = vpow.pop %v1363
        %v1365 = vmul.f32 %v1335, 1.442695
        %v1366 = vpow.pop %v1365
        %v1367 = vmul.f32 %v1336, 1.442695
        %v1368 = vpow.pop %v1367
        %v1369 = vadd.f32 %v1338, 1.0
        %v1370 = vadd.f32 %v1340, 1.0
        %v1371 = vadd.f32 %v1342, 1.0
        %v1372 = vadd.f32 %v1344, 1.0
        %v1373 = vadd.f32 %v1346, 1.0
        %v1374 = vadd.f32 %v1348, 1.0
        %v1375 = vadd.f32 %v1350, 1.0
        %v1376 = vadd.f32 %v1352, 1.0
        %v1377 = vadd.f32 %v1354, 1.0
        %v1378 = vadd.f32 %v1356, 1.0
        %v1379 = vadd.f32 %v1358, 1.0
        %v1380 = vadd.f32 %v1360, 1.0
        %v1381 = vadd.f32 %v1362, 1.0
        %v1382 = vadd.f32 %v1364, 1.0
        %v1383 = vadd.f32 %v1366, 1.0
        %v1384 = vadd.f32 %v1368, 1.0
        %v1385 = vrcp.pop %v1369
        %v1386 = vmul.f32 1.0, %v1385
        %v1387 = vrcp.pop %v1370
        %v1388 = vmul.f32 1.0, %v1387
        %v1389 = vrcp.pop %v1371
        %v1390 = vmul.f32 1.0, %v1389
        %v1391 = vrcp.pop %v1372
        %v1392 = vmul.f32 1.0, %v1391
        %v1393 = vrcp.pop %v1373
        %v1394 = vmul.f32 1.0, %v1393
        %v1395 = vrcp.pop %v1374
        %v1396 = vmul.f32 1.0, %v1395
        %v1397 = vrcp.pop %v1375
        %v1398 = vmul.f32 1.0, %v1397
        %v1399 = vrcp.pop %v1376
        %v1400 = vmul.f32 1.0, %v1399
        %v1401 = vrcp.pop %v1377
        %v1402 = vmul.f32 1.0, %v1401
        %v1403 = vrcp.pop %v1378
        %v1404 = vmul.f32 1.0, %v1403
        %v1405 = vrcp.pop %v1379
        %v1406 = vmul.f32 1.0, %v1405
        %v1407 = vrcp.pop %v1380
        %v1408 = vmul.f32 1.0, %v1407
        %v1409 = vrcp.pop %v1381
        %v1410 = vmul.f32 1.0, %v1409
        %v1411 = vrcp.pop %v1382
        %v1412 = vmul.f32 1.0, %v1411
        %v1413 = vrcp.pop %v1383
        %v1414 = vmul.f32 1.0, %v1413
        %v1415 = vrcp.pop %v1384
        %v1416 = vmul.f32 1.0, %v1415
        %v1417 = vmul.f32 %v1305, %v1386
        %v1418 = vmul.f32 %v1306, %v1388
        %v1419 = vmul.f32 %v1307, %v1390
        %v1420 = vmul.f32 %v1308, %v1392
        %v1421 = vmul.f32 %v1309, %v1394
        %v1422 = vmul.f32 %v1310, %v1396
        %v1423 = vmul.f32 %v1311, %v1398
        %v1424 = vmul.f32 %v1312, %v1400
        %v1425 = vmul.f32 %v1313, %v1402
        %v1426 = vmul.f32 %v1314, %v1404
        %v1427 = vmul.f32 %v1315, %v1406
        %v1428 = vmul.f32 %v1316, %v1408
        %v1429 = vmul.f32 %v1317, %v1410
        %v1430 = vmul.f32 %v1318, %v1412
        %v1431 = vmul.f32 %v1319, %v1414
        %v1432 = vmul.f32 %v1320, %v1416
        %v1433 = vld [vmem:[%s7] sm:$0xff]
        %v1434 = vld [vmem:[%s7 + $0x8] sm:$0xff]
        %v1435 = vld [vmem:[%s7 + $0x10] sm:$0xff]
        %v1436 = vld [vmem:[%s7 + $0x18] sm:$0xff]
        %v1437 = vld [vmem:[%s7 + $0x20] sm:$0xff]
        %v1438 = vld [vmem:[%s7 + $0x28] sm:$0xff]
        %v1439 = vld [vmem:[%s7 + $0x30] sm:$0xff]
        %v1440 = vld [vmem:[%s7 + $0x38] sm:$0xff]
        %v1441 = vld [vmem:[%s7 + $0x40] sm:$0xff]
        %v1442 = vld [vmem:[%s7 + $0x48] sm:$0xff]
        %v1443 = vld [vmem:[%s7 + $0x50] sm:$0xff]
        %v1444 = vld [vmem:[%s7 + $0x58] sm:$0xff]
        %v1445 = vld [vmem:[%s7 + $0x60] sm:$0xff]
        %v1446 = vld [vmem:[%s7 + $0x68] sm:$0xff]
        %v1447 = vld [vmem:[%s7 + $0x70] sm:$0xff]
        %v1448 = vld [vmem:[%s7 + $0x78] sm:$0xff]
        %v1449 = vld [vmem:[%s8] sm:$0xff]
        %v1450 = vld [vmem:[%s8 + $0x8] sm:$0xff]
        %v1451 = vld [vmem:[%s8 + $0x10] sm:$0xff]
        %v1452 = vld [vmem:[%s8 + $0x18] sm:$0xff]
        %v1453 = vld [vmem:[%s8 + $0x20] sm:$0xff]
        %v1454 = vld [vmem:[%s8 + $0x28] sm:$0xff]
        %v1455 = vld [vmem:[%s8 + $0x30] sm:$0xff]
        %v1456 = vld [vmem:[%s8 + $0x38] sm:$0xff]
        %v1457 = vld [vmem:[%s8 + $0x40] sm:$0xff]
        %v1458 = vld [vmem:[%s8 + $0x48] sm:$0xff]
        %v1459 = vld [vmem:[%s8 + $0x50] sm:$0xff]
        %v1460 = vld [vmem:[%s8 + $0x58] sm:$0xff]
        %v1461 = vld [vmem:[%s8 + $0x60] sm:$0xff]
        %v1462 = vld [vmem:[%s8 + $0x68] sm:$0xff]
        %v1463 = vld [vmem:[%s8 + $0x70] sm:$0xff]
        %v1464 = vld [vmem:[%s8 + $0x78] sm:$0xff]
        %1466 = vset.pattern.permute.xlu0 0
        %1467 = vperm.xlu0 %1466, %v1449
        %v1468 = vpop.permute.xlu0 %1467
        %1471 = vset.pattern.permute.xlu0 0
        %1472 = vperm.xlu0 %1471, %v1450
        %v1473 = vpop.permute.xlu0 %1472
        %1476 = vset.pattern.permute.xlu0 0
        %1477 = vperm.xlu0 %1476, %v1451
        %v1478 = vpop.permute.xlu0 %1477
        %1481 = vset.pattern.permute.xlu0 0
        %1482 = vperm.xlu0 %1481, %v1452
        %v1483 = vpop.permute.xlu0 %1482
        %1486 = vset.pattern.permute.xlu0 0
        %1487 = vperm.xlu0 %1486, %v1453
        %v1488 = vpop.permute.xlu0 %1487
        %1491 = vset.pattern.permute.xlu0 0
        %1492 = vperm.xlu0 %1491, %v1454
        %v1493 = vpop.permute.xlu0 %1492
        %1496 = vset.pattern.permute.xlu0 0
        %1497 = vperm.xlu0 %1496, %v1455
        %v1498 = vpop.permute.xlu0 %1497
        %1501 = vset.pattern.permute.xlu0 0
        %1502 = vperm.xlu0 %1501, %v1456
        %v1503 = vpop.permute.xlu0 %1502
        %1506 = vset.pattern.permute.xlu0 0
        %1507 = vperm.xlu0 %1506, %v1457
        %v1508 = vpop.permute.xlu0 %1507
        %1511 = vset.pattern.permute.xlu0 0
        %1512 = vperm.xlu0 %1511, %v1458
        %v1513 = vpop.permute.xlu0 %1512
        %1516 = vset.pattern.permute.xlu0 0
        %1517 = vperm.xlu0 %1516, %v1459
        %v1518 = vpop.permute.xlu0 %1517
        %1521 = vset.pattern.permute.xlu0 0
        %1522 = vperm.xlu0 %1521, %v1460
        %v1523 = vpop.permute.xlu0 %1522
        %1526 = vset.pattern.permute.xlu0 0
        %1527 = vperm.xlu0 %1526, %v1461
        %v1528 = vpop.permute.xlu0 %1527
        %1531 = vset.pattern.permute.xlu0 0
        %1532 = vperm.xlu0 %1531, %v1462
        %v1533 = vpop.permute.xlu0 %1532
        %1536 = vset.pattern.permute.xlu0 0
        %1537 = vperm.xlu0 %1536, %v1463
        %v1538 = vpop.permute.xlu0 %1537
        %1541 = vset.pattern.permute.xlu0 0
        %1542 = vperm.xlu0 %1541, %v1464
        %v1543 = vpop.permute.xlu0 %1542
        %1545 = vmatprep.subr.mxu0 0.0
        %1546 = vmatpush1.msra.mxu0 %v1417
        %1547 = vmatprep.subr.mxu0 0.0
        %1548 = vmatpush1.msra.mxu0 %v1418
        %1549 = vmatprep.subr.mxu0 0.0
        %1550 = vmatpush1.msra.mxu0 %v1419
        %1551 = vmatprep.subr.mxu0 0.0
        %1552 = vmatpush1.msra.mxu0 %v1420
        %1553 = vmatprep.subr.mxu0 0.0
        %1554 = vmatpush1.msra.mxu0 %v1421
        %1555 = vmatprep.subr.mxu0 0.0
        %1556 = vmatpush1.msra.mxu0 %v1422
        %1557 = vmatprep.subr.mxu0 0.0
        %1558 = vmatpush1.msra.mxu0 %v1423
        %1559 = vmatprep.subr.mxu0 0.0
        %1560 = vmatpush1.msra.mxu0 %v1424
        %1561 = vmatprep.subr.mxu0 0.0
        %1562 = vmatpush1.msra.mxu0 %v1425
        %1563 = vmatprep.subr.mxu0 0.0
        %1564 = vmatpush1.msra.mxu0 %v1426
        %1565 = vmatprep.subr.mxu0 0.0
        %1566 = vmatpush1.msra.mxu0 %v1427
        %1567 = vmatprep.subr.mxu0 0.0
        %1568 = vmatpush1.msra.mxu0 %v1428
        %1569 = vmatprep.subr.mxu0 0.0
        %1570 = vmatpush1.msra.mxu0 %v1429
        %1571 = vmatprep.subr.mxu0 0.0
        %1572 = vmatpush1.msra.mxu0 %v1430
        %1573 = vmatprep.subr.mxu0 0.0
        %1574 = vmatpush1.msra.mxu0 %v1431
        %1575 = vmatprep.subr.mxu0 0.0
        %1576 = vmatpush1.msra.mxu0 %v1432
        %1577 = vmatprep.subr.mxu0 0.0
        %1578 = vmatpush1.msra.mxu0 0.0
        %1579 = vmatprep.subr.mxu0 0.0
        %1580 = vmatpush1.msra.mxu0 0.0
        %1581 = vmatprep.subr.mxu0 0.0
        %1582 = vmatpush1.msra.mxu0 0.0
        %1583 = vmatprep.subr.mxu0 0.0
        %1584 = vmatpush1.msra.mxu0 0.0
        %1585 = vmatprep.subr.mxu0 0.0
        %1586 = vmatpush1.msra.mxu0 0.0
        %1587 = vmatprep.subr.mxu0 0.0
        %1588 = vmatpush1.msra.mxu0 0.0
        %1589 = vmatprep.subr.mxu0 0.0
        %1590 = vmatpush1.msra.mxu0 0.0
        %1591 = vmatprep.subr.mxu0 0.0
        %1592 = vmatpush1.msra.mxu0 0.0
        %1593 = vmatprep.subr.mxu0 0.0
        %1594 = vmatpush1.msra.mxu0 0.0
        %1595 = vmatprep.subr.mxu0 0.0
        %1596 = vmatpush1.msra.mxu0 0.0
        %1597 = vmatprep.subr.mxu0 0.0
        %1598 = vmatpush1.msra.mxu0 0.0
        %1599 = vmatprep.subr.mxu0 0.0
        %1600 = vmatpush1.msra.mxu0 0.0
        %1601 = vmatprep.subr.mxu0 0.0
        %1602 = vmatpush1.msra.mxu0 0.0
        %1603 = vmatprep.subr.mxu0 0.0
        %1604 = vmatpush1.msra.mxu0 0.0
        %1605 = vmatprep.subr.mxu0 0.0
        %1606 = vmatpush1.msra.mxu0 0.0
        %1607 = vmatprep.subr.mxu0 0.0
        %1608 = vmatpush1.msra.mxu0 0.0
        %1609 = vmatprep.mubr.f32.mxu0 0.0
        %1610 = vmatmul.mubr.f32.gmra.mrb[0].mxu0 %v1433
        %v1611 = vpop.f32.mrb[0].mxu0
        %v1612 = vadd.f32 %v1468, %v1611
        %v1613 = vpop.f32.mrb[0].mxu0
        %1614 = vmatprep.mubr.f32.mxu0 0.0
        %1615 = vmatmul.mubr.f32.gmra.mrb[0].mxu0 %v1434
        %v1616 = vpop.f32.mrb[0].mxu0
        %v1617 = vadd.f32 %v1473, %v1616
        %v1618 = vpop.f32.mrb[0].mxu0
        %1619 = vmatprep.mubr.f32.mxu0 0.0
        %1620 = vmatmul.mubr.f32.gmra.mrb[0].mxu0 %v1435
        %v1621 = vpop.f32.mrb[0].mxu0
        %v1622 = vadd.f32 %v1478, %v1621
        %v1623 = vpop.f32.mrb[0].mxu0
        %1624 = vmatprep.mubr.f32.mxu0 0.0
        %1625 = vmatmul.mubr.f32.gmra.mrb[0].mxu0 %v1436
        %v1626 = vpop.f32.mrb[0].mxu0
        %v1627 = vadd.f32 %v1483, %v1626
        %v1628 = vpop.f32.mrb[0].mxu0
        %1629 = vmatprep.mubr.f32.mxu0 0.0
        %1630 = vmatmul.mubr.f32.gmra.mrb[0].mxu0 %v1437
        %v1631 = vpop.f32.mrb[0].mxu0
        %v1632 = vadd.f32 %v1488, %v1631
        %v1633 = vpop.f32.mrb[0].mxu0
        %1634 = vmatprep.mubr.f32.mxu0 0.0
        %1635 = vmatmul.mubr.f32.gmra.mrb[0].mxu0 %v1438
        %v1636 = vpop.f32.mrb[0].mxu0
        %v1637 = vadd.f32 %v1493, %v1636
        %v1638 = vpop.f32.mrb[0].mxu0
        %1639 = vmatprep.mubr.f32.mxu0 0.0
        %1640 = vmatmul.mubr.f32.gmra.mrb[0].mxu0 %v1439
        %v1641 = vpop.f32.mrb[0].mxu0
        %v1642 = vadd.f32 %v1498, %v1641
        %v1643 = vpop.f32.mrb[0].mxu0
        %1644 = vmatprep.mubr.f32.mxu0 0.0
        %1645 = vmatmul.mubr.f32.gmra.mrb[0].mxu0 %v1440
        %v1646 = vpop.f32.mrb[0].mxu0
        %v1647 = vadd.f32 %v1503, %v1646
        %v1648 = vpop.f32.mrb[0].mxu0
        %1649 = vmatprep.mubr.f32.mxu0 0.0
        %1650 = vmatmul.mubr.f32.gmra.mrb[0].mxu0 %v1441
        %v1651 = vpop.f32.mrb[0].mxu0
        %v1652 = vadd.f32 %v1508, %v1651
        %v1653 = vpop.f32.mrb[0].mxu0
        %1654 = vmatprep.mubr.f32.mxu0 0.0
        %1655 = vmatmul.mubr.f32.gmra.mrb[0].mxu0 %v1442
        %v1656 = vpop.f32.mrb[0].mxu0
        %v1657 = vadd.f32 %v1513, %v1656
        %v1658 = vpop.f32.mrb[0].mxu0
        %1659 = vmatprep.mubr.f32.mxu0 0.0
        %1660 = vmatmul.mubr.f32.gmra.mrb[0].mxu0 %v1443
        %v1661 = vpop.f32.mrb[0].mxu0
        %v1662 = vadd.f32 %v1518, %v1661
        %v1663 = vpop.f32.mrb[0].mxu0
        %1664 = vmatprep.mubr.f32.mxu0 0.0
        %1665 = vmatmul.mubr.f32.gmra.mrb[0].mxu0 %v1444
        %v1666 = vpop.f32.mrb[0].mxu0
        %v1667 = vadd.f32 %v1523, %v1666
        %v1668 = vpop.f32.mrb[0].mxu0
        %1669 = vmatprep.mubr.f32.mxu0 0.0
        %1670 = vmatmul.mubr.f32.gmra.mrb[0].mxu0 %v1445
        %v1671 = vpop.f32.mrb[0].mxu0
        %v1672 = vadd.f32 %v1528, %v1671
        %v1673 = vpop.f32.mrb[0].mxu0
        %1674 = vmatprep.mubr.f32.mxu0 0.0
        %1675 = vmatmul.mubr.f32.gmra.mrb[0].mxu0 %v1446
        %v1676 = vpop.f32.mrb[0].mxu0
        %v1677 = vadd.f32 %v1533, %v1676
        %v1678 = vpop.f32.mrb[0].mxu0
        %1679 = vmatprep.mubr.f32.mxu0 0.0
        %1680 = vmatmul.mubr.f32.gmra.mrb[0].mxu0 %v1447
        %v1681 = vpop.f32.mrb[0].mxu0
        %v1682 = vadd.f32 %v1538, %v1681
        %v1683 = vpop.f32.mrb[0].mxu0
        %1684 = vmatprep.mubr.f32.mxu0 0.0
        %1685 = vmatmul.mubr.f32.gmra.mrb[0].mxu0 %v1448
        %v1686 = vpop.f32.mrb[0].mxu0
        %v1687 = vadd.f32 %v1543, %v1686
        %v1688 = vpop.f32.mrb[0].mxu0
        %1689 = vdwg.mxu0
        %v1690 = vld [vmem:[%s9] sm:$0xff]
        %v1691 = vld [vmem:[%s9 + $0x8] sm:$0xff]
        %v1692 = vld [vmem:[%s9 + $0x10] sm:$0xff]
        %v1693 = vld [vmem:[%s9 + $0x18] sm:$0xff]
        %v1694 = vld [vmem:[%s9 + $0x20] sm:$0xff]
        %v1695 = vld [vmem:[%s9 + $0x28] sm:$0xff]
        %v1696 = vld [vmem:[%s9 + $0x30] sm:$0xff]
        %v1697 = vld [vmem:[%s9 + $0x38] sm:$0xff]
        %v1698 = vld [vmem:[%s9 + $0x40] sm:$0xff]
        %v1699 = vld [vmem:[%s9 + $0x48] sm:$0xff]
        %v1700 = vld [vmem:[%s9 + $0x50] sm:$0xff]
        %v1701 = vld [vmem:[%s9 + $0x58] sm:$0xff]
        %v1702 = vld [vmem:[%s9 + $0x60] sm:$0xff]
        %v1703 = vld [vmem:[%s9 + $0x68] sm:$0xff]
        %v1704 = vld [vmem:[%s9 + $0x70] sm:$0xff]
        %v1705 = vld [vmem:[%s9 + $0x78] sm:$0xff]
        %v1706 = vld [vmem:[%s10] sm:$0xff]
        %v1707 = vld [vmem:[%s10 + $0x8] sm:$0xff]
        %v1708 = vld [vmem:[%s10 + $0x10] sm:$0xff]
        %v1709 = vld [vmem:[%s10 + $0x18] sm:$0xff]
        %v1710 = vld [vmem:[%s10 + $0x20] sm:$0xff]
        %v1711 = vld [vmem:[%s10 + $0x28] sm:$0xff]
        %v1712 = vld [vmem:[%s10 + $0x30] sm:$0xff]
        %v1713 = vld [vmem:[%s10 + $0x38] sm:$0xff]
        %v1714 = vld [vmem:[%s10 + $0x40] sm:$0xff]
        %v1715 = vld [vmem:[%s10 + $0x48] sm:$0xff]
        %v1716 = vld [vmem:[%s10 + $0x50] sm:$0xff]
        %v1717 = vld [vmem:[%s10 + $0x58] sm:$0xff]
        %v1718 = vld [vmem:[%s10 + $0x60] sm:$0xff]
        %v1719 = vld [vmem:[%s10 + $0x68] sm:$0xff]
        %v1720 = vld [vmem:[%s10 + $0x70] sm:$0xff]
        %v1721 = vld [vmem:[%s10 + $0x78] sm:$0xff]
        %v1723 = vsel %vm821, %v1706, 0
        %v1726 = vsel %vm821, %v1707, 0
        %v1729 = vsel %vm821, %v1708, 0
        %v1732 = vsel %vm821, %v1709, 0
        %v1735 = vsel %vm821, %v1710, 0
        %v1738 = vsel %vm821, %v1711, 0
        %v1741 = vsel %vm821, %v1712, 0
        %v1744 = vsel %vm821, %v1713, 0
        %v1747 = vsel %vm821, %v1714, 0
        %v1750 = vsel %vm821, %v1715, 0
        %v1753 = vsel %vm821, %v1716, 0
        %v1756 = vsel %vm821, %v1717, 0
        %v1759 = vsel %vm821, %v1718, 0
        %v1762 = vsel %vm821, %v1719, 0
        %v1765 = vsel %vm821, %v1720, 0
        %v1768 = vsel %vm821, %v1721, 0
        %1770 = vmatprep.subr.mxu0 0.0
        %1771 = vmatpush1.msra.mxu0 %v681
        %1772 = vmatprep.subr.mxu0 0.0
        %1773 = vmatpush1.msra.mxu0 %v682
        %1774 = vmatprep.subr.mxu0 0.0
        %1775 = vmatpush1.msra.mxu0 %v683
        %1776 = vmatprep.subr.mxu0 0.0
        %1777 = vmatpush1.msra.mxu0 %v684
        %1778 = vmatprep.subr.mxu0 0.0
        %1779 = vmatpush1.msra.mxu0 %v685
        %1780 = vmatprep.subr.mxu0 0.0
        %1781 = vmatpush1.msra.mxu0 %v686
        %1782 = vmatprep.subr.mxu0 0.0
        %1783 = vmatpush1.msra.mxu0 %v687
        %1784 = vmatprep.subr.mxu0 0.0
        %1785 = vmatpush1.msra.mxu0 %v688
        %1786 = vmatprep.subr.mxu0 0.0
        %1787 = vmatpush1.msra.mxu0 0.0
        %1788 = vmatprep.subr.mxu0 0.0
        %1789 = vmatpush1.msra.mxu0 0.0
        %1790 = vmatprep.subr.mxu0 0.0
        %1791 = vmatpush1.msra.mxu0 0.0
        %1792 = vmatprep.subr.mxu0 0.0
        %1793 = vmatpush1.msra.mxu0 0.0
        %1794 = vmatprep.subr.mxu0 0.0
        %1795 = vmatpush1.msra.mxu0 0.0
        %1796 = vmatprep.subr.mxu0 0.0
        %1797 = vmatpush1.msra.mxu0 0.0
        %1798 = vmatprep.subr.mxu0 0.0
        %1799 = vmatpush1.msra.mxu0 0.0
        %1800 = vmatprep.subr.mxu0 0.0
        %1801 = vmatpush1.msra.mxu0 0.0
        %1802 = vmatprep.subr.mxu0 0.0
        %1803 = vmatpush1.msra.mxu0 0.0
        %1804 = vmatprep.subr.mxu0 0.0
        %1805 = vmatpush1.msra.mxu0 0.0
        %1806 = vmatprep.subr.mxu0 0.0
        %1807 = vmatpush1.msra.mxu0 0.0
        %1808 = vmatprep.subr.mxu0 0.0
        %1809 = vmatpush1.msra.mxu0 0.0
        %1810 = vmatprep.subr.mxu0 0.0
        %1811 = vmatpush1.msra.mxu0 0.0
        %1812 = vmatprep.subr.mxu0 0.0
        %1813 = vmatpush1.msra.mxu0 0.0
        %1814 = vmatprep.subr.mxu0 0.0
        %1815 = vmatpush1.msra.mxu0 0.0
        %1816 = vmatprep.subr.mxu0 0.0
        %1817 = vmatpush1.msra.mxu0 0.0
        %1818 = vmatprep.subr.mxu0 0.0
        %1819 = vmatpush1.msra.mxu0 0.0
        %1820 = vmatprep.subr.mxu0 0.0
        %1821 = vmatpush1.msra.mxu0 0.0
        %1822 = vmatprep.subr.mxu0 0.0
        %1823 = vmatpush1.msra.mxu0 0.0
        %1824 = vmatprep.subr.mxu0 0.0
        %1825 = vmatpush1.msra.mxu0 0.0
        %1826 = vmatprep.subr.mxu0 0.0
        %1827 = vmatpush1.msra.mxu0 0.0
        %1828 = vmatprep.subr.mxu0 0.0
        %1829 = vmatpush1.msra.mxu0 0.0
        %1830 = vmatprep.subr.mxu0 0.0
        %1831 = vmatpush1.msra.mxu0 0.0
        %1832 = vmatprep.subr.mxu0 0.0
        %1833 = vmatpush1.msra.mxu0 0.0
        %1834 = vmatprep.mubr.f32.mxu0 0.0
        %1835 = vmatmul.mubr.f32.gmra.mrb[0].mxu0 %v1723
        %v1836 = vpop.f32.mrb[0].mxu0
        %v1837 = vadd.f32 0.0, %v1836
        %v1838 = vpop.f32.mrb[0].mxu0
        %1839 = vmatprep.mubr.f32.mxu0 0.0
        %1840 = vmatmul.mubr.f32.gmra.mrb[0].mxu0 %v1726
        %v1841 = vpop.f32.mrb[0].mxu0
        %v1842 = vadd.f32 0.0, %v1841
        %v1843 = vpop.f32.mrb[0].mxu0
        %1844 = vmatprep.mubr.f32.mxu0 0.0
        %1845 = vmatmul.mubr.f32.gmra.mrb[0].mxu0 %v1729
        %v1846 = vpop.f32.mrb[0].mxu0
        %v1847 = vadd.f32 0.0, %v1846
        %v1848 = vpop.f32.mrb[0].mxu0
        %1849 = vmatprep.mubr.f32.mxu0 0.0
        %1850 = vmatmul.mubr.f32.gmra.mrb[0].mxu0 %v1732
        %v1851 = vpop.f32.mrb[0].mxu0
        %v1852 = vadd.f32 0.0, %v1851
        %v1853 = vpop.f32.mrb[0].mxu0
        %1854 = vmatprep.mubr.f32.mxu0 0.0
        %1855 = vmatmul.mubr.f32.gmra.mrb[0].mxu0 %v1735
        %v1856 = vpop.f32.mrb[0].mxu0
        %v1857 = vadd.f32 0.0, %v1856
        %v1858 = vpop.f32.mrb[0].mxu0
        %1859 = vmatprep.mubr.f32.mxu0 0.0
        %1860 = vmatmul.mubr.f32.gmra.mrb[0].mxu0 %v1738
        %v1861 = vpop.f32.mrb[0].mxu0
        %v1862 = vadd.f32 0.0, %v1861
        %v1863 = vpop.f32.mrb[0].mxu0
        %1864 = vmatprep.mubr.f32.mxu0 0.0
        %1865 = vmatmul.mubr.f32.gmra.mrb[0].mxu0 %v1741
        %v1866 = vpop.f32.mrb[0].mxu0
        %v1867 = vadd.f32 0.0, %v1866
        %v1868 = vpop.f32.mrb[0].mxu0
        %1869 = vmatprep.mubr.f32.mxu0 0.0
        %1870 = vmatmul.mubr.f32.gmra.mrb[0].mxu0 %v1744
        %v1871 = vpop.f32.mrb[0].mxu0
        %v1872 = vadd.f32 0.0, %v1871
        %v1873 = vpop.f32.mrb[0].mxu0
        %1874 = vmatprep.mubr.f32.mxu0 0.0
        %1875 = vmatmul.mubr.f32.gmra.mrb[0].mxu0 %v1747
        %v1876 = vpop.f32.mrb[0].mxu0
        %v1877 = vadd.f32 0.0, %v1876
        %v1878 = vpop.f32.mrb[0].mxu0
        %1879 = vmatprep.mubr.f32.mxu0 0.0
        %1880 = vmatmul.mubr.f32.gmra.mrb[0].mxu0 %v1750
        %v1881 = vpop.f32.mrb[0].mxu0
        %v1882 = vadd.f32 0.0, %v1881
        %v1883 = vpop.f32.mrb[0].mxu0
        %1884 = vmatprep.mubr.f32.mxu0 0.0
        %1885 = vmatmul.mubr.f32.gmra.mrb[0].mxu0 %v1753
        %v1886 = vpop.f32.mrb[0].mxu0
        %v1887 = vadd.f32 0.0, %v1886
        %v1888 = vpop.f32.mrb[0].mxu0
        %1889 = vmatprep.mubr.f32.mxu0 0.0
        %1890 = vmatmul.mubr.f32.gmra.mrb[0].mxu0 %v1756
        %v1891 = vpop.f32.mrb[0].mxu0
        %v1892 = vadd.f32 0.0, %v1891
        %v1893 = vpop.f32.mrb[0].mxu0
        %1894 = vmatprep.mubr.f32.mxu0 0.0
        %1895 = vmatmul.mubr.f32.gmra.mrb[0].mxu0 %v1759
        %v1896 = vpop.f32.mrb[0].mxu0
        %v1897 = vadd.f32 0.0, %v1896
        %v1898 = vpop.f32.mrb[0].mxu0
        %1899 = vmatprep.mubr.f32.mxu0 0.0
        %1900 = vmatmul.mubr.f32.gmra.mrb[0].mxu0 %v1762
        %v1901 = vpop.f32.mrb[0].mxu0
        %v1902 = vadd.f32 0.0, %v1901
        %v1903 = vpop.f32.mrb[0].mxu0
        %1904 = vmatprep.mubr.f32.mxu0 0.0
        %1905 = vmatmul.mubr.f32.gmra.mrb[0].mxu0 %v1765
        %v1906 = vpop.f32.mrb[0].mxu0
        %v1907 = vadd.f32 0.0, %v1906
        %v1908 = vpop.f32.mrb[0].mxu0
        %1909 = vmatprep.mubr.f32.mxu0 0.0
        %1910 = vmatmul.mubr.f32.gmra.mrb[0].mxu0 %v1768
        %v1911 = vpop.f32.mrb[0].mxu0
        %v1912 = vadd.f32 0.0, %v1911
        %v1913 = vpop.f32.mrb[0].mxu0
        %1914 = vdwg.mxu0
        %v1916 = vsel %vm1015, %v1690, 0
        %v1919 = vsel %vm1015, %v1691, 0
        %v1922 = vsel %vm1015, %v1692, 0
        %v1925 = vsel %vm1015, %v1693, 0
        %v1928 = vsel %vm1015, %v1694, 0
        %v1931 = vsel %vm1015, %v1695, 0
        %v1934 = vsel %vm1015, %v1696, 0
        %v1937 = vsel %vm1015, %v1697, 0
        %v1940 = vsel %vm1015, %v1698, 0
        %v1943 = vsel %vm1015, %v1699, 0
        %v1946 = vsel %vm1015, %v1700, 0
        %v1949 = vsel %vm1015, %v1701, 0
        %v1952 = vsel %vm1015, %v1702, 0
        %v1955 = vsel %vm1015, %v1703, 0
        %v1958 = vsel %vm1015, %v1704, 0
        %v1961 = vsel %vm1015, %v1705, 0
        %1963 = vmatprep.subr.mxu0 0.0
        %1964 = vmatpush1.msra.mxu0 %v781
        %1965 = vmatprep.subr.mxu0 0.0
        %1966 = vmatpush1.msra.mxu0 %v786
        %1967 = vmatprep.subr.mxu0 0.0
        %1968 = vmatpush1.msra.mxu0 0.0
        %1969 = vmatprep.subr.mxu0 0.0
        %1970 = vmatpush1.msra.mxu0 0.0
        %1971 = vmatprep.subr.mxu0 0.0
        %1972 = vmatpush1.msra.mxu0 0.0
        %1973 = vmatprep.subr.mxu0 0.0
        %1974 = vmatpush1.msra.mxu0 0.0
        %1975 = vmatprep.subr.mxu0 0.0
        %1976 = vmatpush1.msra.mxu0 0.0
        %1977 = vmatprep.subr.mxu0 0.0
        %1978 = vmatpush1.msra.mxu0 0.0
        %1979 = vmatprep.subr.mxu0 0.0
        %1980 = vmatpush1.msra.mxu0 0.0
        %1981 = vmatprep.subr.mxu0 0.0
        %1982 = vmatpush1.msra.mxu0 0.0
        %1983 = vmatprep.subr.mxu0 0.0
        %1984 = vmatpush1.msra.mxu0 0.0
        %1985 = vmatprep.subr.mxu0 0.0
        %1986 = vmatpush1.msra.mxu0 0.0
        %1987 = vmatprep.subr.mxu0 0.0
        %1988 = vmatpush1.msra.mxu0 0.0
        %1989 = vmatprep.subr.mxu0 0.0
        %1990 = vmatpush1.msra.mxu0 0.0
        %1991 = vmatprep.subr.mxu0 0.0
        %1992 = vmatpush1.msra.mxu0 0.0
        %1993 = vmatprep.subr.mxu0 0.0
        %1994 = vmatpush1.msra.mxu0 0.0
        %1995 = vmatprep.subr.mxu0 0.0
        %1996 = vmatpush1.msra.mxu0 0.0
        %1997 = vmatprep.subr.mxu0 0.0
        %1998 = vmatpush1.msra.mxu0 0.0
        %1999 = vmatprep.subr.mxu0 0.0
        %2000 = vmatpush1.msra.mxu0 0.0
        %2001 = vmatprep.subr.mxu0 0.0
        %2002 = vmatpush1.msra.mxu0 0.0
        %2003 = vmatprep.subr.mxu0 0.0
        %2004 = vmatpush1.msra.mxu0 0.0
        %2005 = vmatprep.subr.mxu0 0.0
        %2006 = vmatpush1.msra.mxu0 0.0
        %2007 = vmatprep.subr.mxu0 0.0
        %2008 = vmatpush1.msra.mxu0 0.0
        %2009 = vmatprep.subr.mxu0 0.0
        %2010 = vmatpush1.msra.mxu0 0.0
        %2011 = vmatprep.subr.mxu0 0.0
        %2012 = vmatpush1.msra.mxu0 0.0
        %2013 = vmatprep.subr.mxu0 0.0
        %2014 = vmatpush1.msra.mxu0 0.0
        %2015 = vmatprep.subr.mxu0 0.0
        %2016 = vmatpush1.msra.mxu0 0.0
        %2017 = vmatprep.subr.mxu0 0.0
        %2018 = vmatpush1.msra.mxu0 0.0
        %2019 = vmatprep.subr.mxu0 0.0
        %2020 = vmatpush1.msra.mxu0 0.0
        %2021 = vmatprep.subr.mxu0 0.0
        %2022 = vmatpush1.msra.mxu0 0.0
        %2023 = vmatprep.subr.mxu0 0.0
        %2024 = vmatpush1.msra.mxu0 0.0
        %2025 = vmatprep.subr.mxu0 0.0
        %2026 = vmatpush1.msra.mxu0 0.0
        %2027 = vmatprep.mubr.f32.mxu0 0.0
        %2028 = vmatmul.mubr.f32.gmra.mrb[0].mxu0 %v1916
        %v2029 = vpop.f32.mrb[0].mxu0
        %v2030 = vadd.f32 %v1837, %v2029
        %v2031 = vpop.f32.mrb[0].mxu0
        %2032 = vmatprep.mubr.f32.mxu0 0.0
        %2033 = vmatmul.mubr.f32.gmra.mrb[0].mxu0 %v1919
        %v2034 = vpop.f32.mrb[0].mxu0
        %v2035 = vadd.f32 %v1842, %v2034
        %v2036 = vpop.f32.mrb[0].mxu0
        %2037 = vmatprep.mubr.f32.mxu0 0.0
        %2038 = vmatmul.mubr.f32.gmra.mrb[0].mxu0 %v1922
        %v2039 = vpop.f32.mrb[0].mxu0
        %v2040 = vadd.f32 %v1847, %v2039
        %v2041 = vpop.f32.mrb[0].mxu0
        %2042 = vmatprep.mubr.f32.mxu0 0.0
        %2043 = vmatmul.mubr.f32.gmra.mrb[0].mxu0 %v1925
        %v2044 = vpop.f32.mrb[0].mxu0
        %v2045 = vadd.f32 %v1852, %v2044
        %v2046 = vpop.f32.mrb[0].mxu0
        %2047 = vmatprep.mubr.f32.mxu0 0.0
        %2048 = vmatmul.mubr.f32.gmra.mrb[0].mxu0 %v1928
        %v2049 = vpop.f32.mrb[0].mxu0
        %v2050 = vadd.f32 %v1857, %v2049
        %v2051 = vpop.f32.mrb[0].mxu0
        %2052 = vmatprep.mubr.f32.mxu0 0.0
        %2053 = vmatmul.mubr.f32.gmra.mrb[0].mxu0 %v1931
        %v2054 = vpop.f32.mrb[0].mxu0
        %v2055 = vadd.f32 %v1862, %v2054
        %v2056 = vpop.f32.mrb[0].mxu0
        %2057 = vmatprep.mubr.f32.mxu0 0.0
        %2058 = vmatmul.mubr.f32.gmra.mrb[0].mxu0 %v1934
        %v2059 = vpop.f32.mrb[0].mxu0
        %v2060 = vadd.f32 %v1867, %v2059
        %v2061 = vpop.f32.mrb[0].mxu0
        %2062 = vmatprep.mubr.f32.mxu0 0.0
        %2063 = vmatmul.mubr.f32.gmra.mrb[0].mxu0 %v1937
        %v2064 = vpop.f32.mrb[0].mxu0
        %v2065 = vadd.f32 %v1872, %v2064
        %v2066 = vpop.f32.mrb[0].mxu0
        %2067 = vmatprep.mubr.f32.mxu0 0.0
        %2068 = vmatmul.mubr.f32.gmra.mrb[0].mxu0 %v1940
        %v2069 = vpop.f32.mrb[0].mxu0
        %v2070 = vadd.f32 %v1877, %v2069
        %v2071 = vpop.f32.mrb[0].mxu0
        %2072 = vmatprep.mubr.f32.mxu0 0.0
        %2073 = vmatmul.mubr.f32.gmra.mrb[0].mxu0 %v1943
        %v2074 = vpop.f32.mrb[0].mxu0
        %v2075 = vadd.f32 %v1882, %v2074
        %v2076 = vpop.f32.mrb[0].mxu0
        %2077 = vmatprep.mubr.f32.mxu0 0.0
        %2078 = vmatmul.mubr.f32.gmra.mrb[0].mxu0 %v1946
        %v2079 = vpop.f32.mrb[0].mxu0
        %v2080 = vadd.f32 %v1887, %v2079
        %v2081 = vpop.f32.mrb[0].mxu0
        %2082 = vmatprep.mubr.f32.mxu0 0.0
        %2083 = vmatmul.mubr.f32.gmra.mrb[0].mxu0 %v1949
        %v2084 = vpop.f32.mrb[0].mxu0
        %v2085 = vadd.f32 %v1892, %v2084
        %v2086 = vpop.f32.mrb[0].mxu0
        %2087 = vmatprep.mubr.f32.mxu0 0.0
        %2088 = vmatmul.mubr.f32.gmra.mrb[0].mxu0 %v1952
        %v2089 = vpop.f32.mrb[0].mxu0
        %v2090 = vadd.f32 %v1897, %v2089
        %v2091 = vpop.f32.mrb[0].mxu0
        %2092 = vmatprep.mubr.f32.mxu0 0.0
        %2093 = vmatmul.mubr.f32.gmra.mrb[0].mxu0 %v1955
        %v2094 = vpop.f32.mrb[0].mxu0
        %v2095 = vadd.f32 %v1902, %v2094
        %v2096 = vpop.f32.mrb[0].mxu0
        %2097 = vmatprep.mubr.f32.mxu0 0.0
        %2098 = vmatmul.mubr.f32.gmra.mrb[0].mxu0 %v1958
        %v2099 = vpop.f32.mrb[0].mxu0
        %v2100 = vadd.f32 %v1907, %v2099
        %v2101 = vpop.f32.mrb[0].mxu0
        %2102 = vmatprep.mubr.f32.mxu0 0.0
        %2103 = vmatmul.mubr.f32.gmra.mrb[0].mxu0 %v1961
        %v2104 = vpop.f32.mrb[0].mxu0
        %v2105 = vadd.f32 %v1912, %v2104
        %v2106 = vpop.f32.mrb[0].mxu0
        %2107 = vdwg.mxu0
        %v2108 = vadd.f32 %v1612, %v2030
        %v2109 = vadd.f32 %v1617, %v2035
        %v2110 = vadd.f32 %v1622, %v2040
        %v2111 = vadd.f32 %v1627, %v2045
        %v2112 = vadd.f32 %v1632, %v2050
        %v2113 = vadd.f32 %v1637, %v2055
        %v2114 = vadd.f32 %v1642, %v2060
        %v2115 = vadd.f32 %v1647, %v2065
        %v2116 = vadd.f32 %v1652, %v2070
        %v2117 = vadd.f32 %v1657, %v2075
        %v2118 = vadd.f32 %v1662, %v2080
        %v2119 = vadd.f32 %v1667, %v2085
        %v2120 = vadd.f32 %v1672, %v2090
        %v2121 = vadd.f32 %v1677, %v2095
        %v2122 = vadd.f32 %v1682, %v2100
        %v2123 = vadd.f32 %v1687, %v2105
        %v2124 = vld [vmem:[%s11] sm:$0xff]
        %v2125 = vld [vmem:[%s11 + $0x8] sm:$0xff]
        %v2126 = vld [vmem:[%s11 + $0x10] sm:$0xff]
        %v2127 = vld [vmem:[%s11 + $0x18] sm:$0xff]
        %v2128 = vld [vmem:[%s11 + $0x20] sm:$0xff]
        %v2129 = vld [vmem:[%s11 + $0x28] sm:$0xff]
        %v2130 = vld [vmem:[%s11 + $0x30] sm:$0xff]
        %v2131 = vld [vmem:[%s11 + $0x38] sm:$0xff]
        %v2132 = vld [vmem:[%s11 + $0x40] sm:$0xff]
        %v2133 = vld [vmem:[%s11 + $0x48] sm:$0xff]
        %v2134 = vld [vmem:[%s11 + $0x50] sm:$0xff]
        %v2135 = vld [vmem:[%s11 + $0x58] sm:$0xff]
        %v2136 = vld [vmem:[%s11 + $0x60] sm:$0xff]
        %v2137 = vld [vmem:[%s11 + $0x68] sm:$0xff]
        %v2138 = vld [vmem:[%s11 + $0x70] sm:$0xff]
        %v2139 = vld [vmem:[%s11 + $0x78] sm:$0xff]
        %v2140 = vld [vmem:[%s12] sm:$0xff]
        %v2141 = vld [vmem:[%s12 + $0x8] sm:$0xff]
        %v2142 = vld [vmem:[%s12 + $0x10] sm:$0xff]
        %v2143 = vld [vmem:[%s12 + $0x18] sm:$0xff]
        %v2144 = vld [vmem:[%s12 + $0x20] sm:$0xff]
        %v2145 = vld [vmem:[%s12 + $0x28] sm:$0xff]
        %v2146 = vld [vmem:[%s12 + $0x30] sm:$0xff]
        %v2147 = vld [vmem:[%s12 + $0x38] sm:$0xff]
        %v2148 = vld [vmem:[%s12 + $0x40] sm:$0xff]
        %v2149 = vld [vmem:[%s12 + $0x48] sm:$0xff]
        %v2150 = vld [vmem:[%s12 + $0x50] sm:$0xff]
        %v2151 = vld [vmem:[%s12 + $0x58] sm:$0xff]
        %v2152 = vld [vmem:[%s12 + $0x60] sm:$0xff]
        %v2153 = vld [vmem:[%s12 + $0x68] sm:$0xff]
        %v2154 = vld [vmem:[%s12 + $0x70] sm:$0xff]
        %v2155 = vld [vmem:[%s12 + $0x78] sm:$0xff]
        %2157 = vset.pattern.permute.xlu0 0
        %2158 = vperm.xlu0 %2157, %v2140
        %v2159 = vpop.permute.xlu0 %2158
        %2162 = vset.pattern.permute.xlu0 0
        %2163 = vperm.xlu0 %2162, %v2141
        %v2164 = vpop.permute.xlu0 %2163
        %2167 = vset.pattern.permute.xlu0 0
        %2168 = vperm.xlu0 %2167, %v2142
        %v2169 = vpop.permute.xlu0 %2168
        %2172 = vset.pattern.permute.xlu0 0
        %2173 = vperm.xlu0 %2172, %v2143
        %v2174 = vpop.permute.xlu0 %2173
        %2177 = vset.pattern.permute.xlu0 0
        %2178 = vperm.xlu0 %2177, %v2144
        %v2179 = vpop.permute.xlu0 %2178
        %2182 = vset.pattern.permute.xlu0 0
        %2183 = vperm.xlu0 %2182, %v2145
        %v2184 = vpop.permute.xlu0 %2183
        %2187 = vset.pattern.permute.xlu0 0
        %2188 = vperm.xlu0 %2187, %v2146
        %v2189 = vpop.permute.xlu0 %2188
        %2192 = vset.pattern.permute.xlu0 0
        %2193 = vperm.xlu0 %2192, %v2147
        %v2194 = vpop.permute.xlu0 %2193
        %2197 = vset.pattern.permute.xlu0 0
        %2198 = vperm.xlu0 %2197, %v2148
        %v2199 = vpop.permute.xlu0 %2198
        %2202 = vset.pattern.permute.xlu0 0
        %2203 = vperm.xlu0 %2202, %v2149
        %v2204 = vpop.permute.xlu0 %2203
        %2207 = vset.pattern.permute.xlu0 0
        %2208 = vperm.xlu0 %2207, %v2150
        %v2209 = vpop.permute.xlu0 %2208
        %2212 = vset.pattern.permute.xlu0 0
        %2213 = vperm.xlu0 %2212, %v2151
        %v2214 = vpop.permute.xlu0 %2213
        %2217 = vset.pattern.permute.xlu0 0
        %2218 = vperm.xlu0 %2217, %v2152
        %v2219 = vpop.permute.xlu0 %2218
        %2222 = vset.pattern.permute.xlu0 0
        %2223 = vperm.xlu0 %2222, %v2153
        %v2224 = vpop.permute.xlu0 %2223
        %2227 = vset.pattern.permute.xlu0 0
        %2228 = vperm.xlu0 %2227, %v2154
        %v2229 = vpop.permute.xlu0 %2228
        %2232 = vset.pattern.permute.xlu0 0
        %2233 = vperm.xlu0 %2232, %v2155
        %v2234 = vpop.permute.xlu0 %2233
        %2236 = vmatprep.subr.mxu0 0.0
        %2237 = vmatpush1.msra.mxu0 %v2108
        %2238 = vmatprep.subr.mxu0 0.0
        %2239 = vmatpush1.msra.mxu0 %v2109
        %2240 = vmatprep.subr.mxu0 0.0
        %2241 = vmatpush1.msra.mxu0 %v2110
        %2242 = vmatprep.subr.mxu0 0.0
        %2243 = vmatpush1.msra.mxu0 %v2111
        %2244 = vmatprep.subr.mxu0 0.0
        %2245 = vmatpush1.msra.mxu0 %v2112
        %2246 = vmatprep.subr.mxu0 0.0
        %2247 = vmatpush1.msra.mxu0 %v2113
        %2248 = vmatprep.subr.mxu0 0.0
        %2249 = vmatpush1.msra.mxu0 %v2114
        %2250 = vmatprep.subr.mxu0 0.0
        %2251 = vmatpush1.msra.mxu0 %v2115
        %2252 = vmatprep.subr.mxu0 0.0
        %2253 = vmatpush1.msra.mxu0 %v2116
        %2254 = vmatprep.subr.mxu0 0.0
        %2255 = vmatpush1.msra.mxu0 %v2117
        %2256 = vmatprep.subr.mxu0 0.0
        %2257 = vmatpush1.msra.mxu0 %v2118
        %2258 = vmatprep.subr.mxu0 0.0
        %2259 = vmatpush1.msra.mxu0 %v2119
        %2260 = vmatprep.subr.mxu0 0.0
        %2261 = vmatpush1.msra.mxu0 %v2120
        %2262 = vmatprep.subr.mxu0 0.0
        %2263 = vmatpush1.msra.mxu0 %v2121
        %2264 = vmatprep.subr.mxu0 0.0
        %2265 = vmatpush1.msra.mxu0 %v2122
        %2266 = vmatprep.subr.mxu0 0.0
        %2267 = vmatpush1.msra.mxu0 %v2123
        %2268 = vmatprep.subr.mxu0 0.0
        %2269 = vmatpush1.msra.mxu0 0.0
        %2270 = vmatprep.subr.mxu0 0.0
        %2271 = vmatpush1.msra.mxu0 0.0
        %2272 = vmatprep.subr.mxu0 0.0
        %2273 = vmatpush1.msra.mxu0 0.0
        %2274 = vmatprep.subr.mxu0 0.0
        %2275 = vmatpush1.msra.mxu0 0.0
        %2276 = vmatprep.subr.mxu0 0.0
        %2277 = vmatpush1.msra.mxu0 0.0
        %2278 = vmatprep.subr.mxu0 0.0
        %2279 = vmatpush1.msra.mxu0 0.0
        %2280 = vmatprep.subr.mxu0 0.0
        %2281 = vmatpush1.msra.mxu0 0.0
        %2282 = vmatprep.subr.mxu0 0.0
        %2283 = vmatpush1.msra.mxu0 0.0
        %2284 = vmatprep.subr.mxu0 0.0
        %2285 = vmatpush1.msra.mxu0 0.0
        %2286 = vmatprep.subr.mxu0 0.0
        %2287 = vmatpush1.msra.mxu0 0.0
        %2288 = vmatprep.subr.mxu0 0.0
        %2289 = vmatpush1.msra.mxu0 0.0
        %2290 = vmatprep.subr.mxu0 0.0
        %2291 = vmatpush1.msra.mxu0 0.0
        %2292 = vmatprep.subr.mxu0 0.0
        %2293 = vmatpush1.msra.mxu0 0.0
        %2294 = vmatprep.subr.mxu0 0.0
        %2295 = vmatpush1.msra.mxu0 0.0
        %2296 = vmatprep.subr.mxu0 0.0
        %2297 = vmatpush1.msra.mxu0 0.0
        %2298 = vmatprep.subr.mxu0 0.0
        %2299 = vmatpush1.msra.mxu0 0.0
        %2300 = vmatprep.mubr.f32.mxu0 0.0
        %2301 = vmatmul.mubr.f32.gmra.mrb[0].mxu0 %v2124
        %v2302 = vpop.f32.mrb[0].mxu0
        %v2303 = vadd.f32 %v2159, %v2302
        %v2304 = vpop.f32.mrb[0].mxu0
        %2305 = vmatprep.mubr.f32.mxu0 0.0
        %2306 = vmatmul.mubr.f32.gmra.mrb[0].mxu0 %v2125
        %v2307 = vpop.f32.mrb[0].mxu0
        %v2308 = vadd.f32 %v2164, %v2307
        %v2309 = vpop.f32.mrb[0].mxu0
        %2310 = vmatprep.mubr.f32.mxu0 0.0
        %2311 = vmatmul.mubr.f32.gmra.mrb[0].mxu0 %v2126
        %v2312 = vpop.f32.mrb[0].mxu0
        %v2313 = vadd.f32 %v2169, %v2312
        %v2314 = vpop.f32.mrb[0].mxu0
        %2315 = vmatprep.mubr.f32.mxu0 0.0
        %2316 = vmatmul.mubr.f32.gmra.mrb[0].mxu0 %v2127
        %v2317 = vpop.f32.mrb[0].mxu0
        %v2318 = vadd.f32 %v2174, %v2317
        %v2319 = vpop.f32.mrb[0].mxu0
        %2320 = vmatprep.mubr.f32.mxu0 0.0
        %2321 = vmatmul.mubr.f32.gmra.mrb[0].mxu0 %v2128
        %v2322 = vpop.f32.mrb[0].mxu0
        %v2323 = vadd.f32 %v2179, %v2322
        %v2324 = vpop.f32.mrb[0].mxu0
        %2325 = vmatprep.mubr.f32.mxu0 0.0
        %2326 = vmatmul.mubr.f32.gmra.mrb[0].mxu0 %v2129
        %v2327 = vpop.f32.mrb[0].mxu0
        %v2328 = vadd.f32 %v2184, %v2327
        %v2329 = vpop.f32.mrb[0].mxu0
        %2330 = vmatprep.mubr.f32.mxu0 0.0
        %2331 = vmatmul.mubr.f32.gmra.mrb[0].mxu0 %v2130
        %v2332 = vpop.f32.mrb[0].mxu0
        %v2333 = vadd.f32 %v2189, %v2332
        %v2334 = vpop.f32.mrb[0].mxu0
        %2335 = vmatprep.mubr.f32.mxu0 0.0
        %2336 = vmatmul.mubr.f32.gmra.mrb[0].mxu0 %v2131
        %v2337 = vpop.f32.mrb[0].mxu0
        %v2338 = vadd.f32 %v2194, %v2337
        %v2339 = vpop.f32.mrb[0].mxu0
        %2340 = vmatprep.mubr.f32.mxu0 0.0
        %2341 = vmatmul.mubr.f32.gmra.mrb[0].mxu0 %v2132
        %v2342 = vpop.f32.mrb[0].mxu0
        %v2343 = vadd.f32 %v2199, %v2342
        %v2344 = vpop.f32.mrb[0].mxu0
        %2345 = vmatprep.mubr.f32.mxu0 0.0
        %2346 = vmatmul.mubr.f32.gmra.mrb[0].mxu0 %v2133
        %v2347 = vpop.f32.mrb[0].mxu0
        %v2348 = vadd.f32 %v2204, %v2347
        %v2349 = vpop.f32.mrb[0].mxu0
        %2350 = vmatprep.mubr.f32.mxu0 0.0
        %2351 = vmatmul.mubr.f32.gmra.mrb[0].mxu0 %v2134
        %v2352 = vpop.f32.mrb[0].mxu0
        %v2353 = vadd.f32 %v2209, %v2352
        %v2354 = vpop.f32.mrb[0].mxu0
        %2355 = vmatprep.mubr.f32.mxu0 0.0
        %2356 = vmatmul.mubr.f32.gmra.mrb[0].mxu0 %v2135
        %v2357 = vpop.f32.mrb[0].mxu0
        %v2358 = vadd.f32 %v2214, %v2357
        %v2359 = vpop.f32.mrb[0].mxu0
        %2360 = vmatprep.mubr.f32.mxu0 0.0
        %2361 = vmatmul.mubr.f32.gmra.mrb[0].mxu0 %v2136
        %v2362 = vpop.f32.mrb[0].mxu0
        %v2363 = vadd.f32 %v2219, %v2362
        %v2364 = vpop.f32.mrb[0].mxu0
        %2365 = vmatprep.mubr.f32.mxu0 0.0
        %2366 = vmatmul.mubr.f32.gmra.mrb[0].mxu0 %v2137
        %v2367 = vpop.f32.mrb[0].mxu0
        %v2368 = vadd.f32 %v2224, %v2367
        %v2369 = vpop.f32.mrb[0].mxu0
        %2370 = vmatprep.mubr.f32.mxu0 0.0
        %2371 = vmatmul.mubr.f32.gmra.mrb[0].mxu0 %v2138
        %v2372 = vpop.f32.mrb[0].mxu0
        %v2373 = vadd.f32 %v2229, %v2372
        %v2374 = vpop.f32.mrb[0].mxu0
        %2375 = vmatprep.mubr.f32.mxu0 0.0
        %2376 = vmatmul.mubr.f32.gmra.mrb[0].mxu0 %v2139
        %v2377 = vpop.f32.mrb[0].mxu0
        %v2378 = vadd.f32 %v2234, %v2377
        %v2379 = vpop.f32.mrb[0].mxu0
        %2380 = vdwg.mxu0
        %v2381 = vxor.u32 %v2303, 2147483648
        %v2382 = vxor.u32 %v2308, 2147483648
        %v2383 = vxor.u32 %v2313, 2147483648
        %v2384 = vxor.u32 %v2318, 2147483648
        %v2385 = vxor.u32 %v2323, 2147483648
        %v2386 = vxor.u32 %v2328, 2147483648
        %v2387 = vxor.u32 %v2333, 2147483648
        %v2388 = vxor.u32 %v2338, 2147483648
        %v2389 = vxor.u32 %v2343, 2147483648
        %v2390 = vxor.u32 %v2348, 2147483648
        %v2391 = vxor.u32 %v2353, 2147483648
        %v2392 = vxor.u32 %v2358, 2147483648
        %v2393 = vxor.u32 %v2363, 2147483648
        %v2394 = vxor.u32 %v2368, 2147483648
        %v2395 = vxor.u32 %v2373, 2147483648
        %v2396 = vxor.u32 %v2378, 2147483648
        %v2397 = vmul.f32 %v2381, 1.442695
        %v2398 = vpow.pop %v2397
        %v2399 = vmul.f32 %v2382, 1.442695
        %v2400 = vpow.pop %v2399
        %v2401 = vmul.f32 %v2383, 1.442695
        %v2402 = vpow.pop %v2401
        %v2403 = vmul.f32 %v2384, 1.442695
        %v2404 = vpow.pop %v2403
        %v2405 = vmul.f32 %v2385, 1.442695
        %v2406 = vpow.pop %v2405
        %v2407 = vmul.f32 %v2386, 1.442695
        %v2408 = vpow.pop %v2407
        %v2409 = vmul.f32 %v2387, 1.442695
        %v2410 = vpow.pop %v2409
        %v2411 = vmul.f32 %v2388, 1.442695
        %v2412 = vpow.pop %v2411
        %v2413 = vmul.f32 %v2389, 1.442695
        %v2414 = vpow.pop %v2413
        %v2415 = vmul.f32 %v2390, 1.442695
        %v2416 = vpow.pop %v2415
        %v2417 = vmul.f32 %v2391, 1.442695
        %v2418 = vpow.pop %v2417
        %v2419 = vmul.f32 %v2392, 1.442695
        %v2420 = vpow.pop %v2419
        %v2421 = vmul.f32 %v2393, 1.442695
        %v2422 = vpow.pop %v2421
        %v2423 = vmul.f32 %v2394, 1.442695
        %v2424 = vpow.pop %v2423
        %v2425 = vmul.f32 %v2395, 1.442695
        %v2426 = vpow.pop %v2425
        %v2427 = vmul.f32 %v2396, 1.442695
        %v2428 = vpow.pop %v2427
        %v2429 = vadd.f32 %v2398, 1.0
        %v2430 = vadd.f32 %v2400, 1.0
        %v2431 = vadd.f32 %v2402, 1.0
        %v2432 = vadd.f32 %v2404, 1.0
        %v2433 = vadd.f32 %v2406, 1.0
        %v2434 = vadd.f32 %v2408, 1.0
        %v2435 = vadd.f32 %v2410, 1.0
        %v2436 = vadd.f32 %v2412, 1.0
        %v2437 = vadd.f32 %v2414, 1.0
        %v2438 = vadd.f32 %v2416, 1.0
        %v2439 = vadd.f32 %v2418, 1.0
        %v2440 = vadd.f32 %v2420, 1.0
        %v2441 = vadd.f32 %v2422, 1.0
        %v2442 = vadd.f32 %v2424, 1.0
        %v2443 = vadd.f32 %v2426, 1.0
        %v2444 = vadd.f32 %v2428, 1.0
        %v2445 = vrcp.pop %v2429
        %v2446 = vmul.f32 1.0, %v2445
        %v2447 = vrcp.pop %v2430
        %v2448 = vmul.f32 1.0, %v2447
        %v2449 = vrcp.pop %v2431
        %v2450 = vmul.f32 1.0, %v2449
        %v2451 = vrcp.pop %v2432
        %v2452 = vmul.f32 1.0, %v2451
        %v2453 = vrcp.pop %v2433
        %v2454 = vmul.f32 1.0, %v2453
        %v2455 = vrcp.pop %v2434
        %v2456 = vmul.f32 1.0, %v2455
        %v2457 = vrcp.pop %v2435
        %v2458 = vmul.f32 1.0, %v2457
        %v2459 = vrcp.pop %v2436
        %v2460 = vmul.f32 1.0, %v2459
        %v2461 = vrcp.pop %v2437
        %v2462 = vmul.f32 1.0, %v2461
        %v2463 = vrcp.pop %v2438
        %v2464 = vmul.f32 1.0, %v2463
        %v2465 = vrcp.pop %v2439
        %v2466 = vmul.f32 1.0, %v2465
        %v2467 = vrcp.pop %v2440
        %v2468 = vmul.f32 1.0, %v2467
        %v2469 = vrcp.pop %v2441
        %v2470 = vmul.f32 1.0, %v2469
        %v2471 = vrcp.pop %v2442
        %v2472 = vmul.f32 1.0, %v2471
        %v2473 = vrcp.pop %v2443
        %v2474 = vmul.f32 1.0, %v2473
        %v2475 = vrcp.pop %v2444
        %v2476 = vmul.f32 1.0, %v2475
        %v2477 = vmul.f32 %v2303, %v2446
        %v2478 = vmul.f32 %v2308, %v2448
        %v2479 = vmul.f32 %v2313, %v2450
        %v2480 = vmul.f32 %v2318, %v2452
        %v2481 = vmul.f32 %v2323, %v2454
        %v2482 = vmul.f32 %v2328, %v2456
        %v2483 = vmul.f32 %v2333, %v2458
        %v2484 = vmul.f32 %v2338, %v2460
        %v2485 = vmul.f32 %v2343, %v2462
        %v2486 = vmul.f32 %v2348, %v2464
        %v2487 = vmul.f32 %v2353, %v2466
        %v2488 = vmul.f32 %v2358, %v2468
        %v2489 = vmul.f32 %v2363, %v2470
        %v2490 = vmul.f32 %v2368, %v2472
        %v2491 = vmul.f32 %v2373, %v2474
        %v2492 = vmul.f32 %v2378, %v2476
        %v2493 = vld [vmem:[%s13] sm:$0xff]
        %v2494 = vld [vmem:[%s13 + $0x8] sm:$0xff]
        %v2495 = vld [vmem:[%s13 + $0x10] sm:$0xff]
        %v2496 = vld [vmem:[%s13 + $0x18] sm:$0xff]
        %v2497 = vld [vmem:[%s13 + $0x20] sm:$0xff]
        %v2498 = vld [vmem:[%s13 + $0x28] sm:$0xff]
        %v2499 = vld [vmem:[%s13 + $0x30] sm:$0xff]
        %v2500 = vld [vmem:[%s13 + $0x38] sm:$0xff]
        %v2501 = vld [vmem:[%s13 + $0x40] sm:$0xff]
        %v2502 = vld [vmem:[%s13 + $0x48] sm:$0xff]
        %v2503 = vld [vmem:[%s13 + $0x50] sm:$0xff]
        %v2504 = vld [vmem:[%s13 + $0x58] sm:$0xff]
        %v2505 = vld [vmem:[%s13 + $0x60] sm:$0xff]
        %v2506 = vld [vmem:[%s13 + $0x68] sm:$0xff]
        %v2507 = vld [vmem:[%s13 + $0x70] sm:$0xff]
        %v2508 = vld [vmem:[%s13 + $0x78] sm:$0xff]
        %v2509 = vld [vmem:[%s14] sm:$0xff]
        %v2510 = vld [vmem:[%s14 + $0x8] sm:$0xff]
        %v2511 = vld [vmem:[%s14 + $0x10] sm:$0xff]
        %v2512 = vld [vmem:[%s14 + $0x18] sm:$0xff]
        %v2513 = vld [vmem:[%s14 + $0x20] sm:$0xff]
        %v2514 = vld [vmem:[%s14 + $0x28] sm:$0xff]
        %v2515 = vld [vmem:[%s14 + $0x30] sm:$0xff]
        %v2516 = vld [vmem:[%s14 + $0x38] sm:$0xff]
        %v2517 = vld [vmem:[%s14 + $0x40] sm:$0xff]
        %v2518 = vld [vmem:[%s14 + $0x48] sm:$0xff]
        %v2519 = vld [vmem:[%s14 + $0x50] sm:$0xff]
        %v2520 = vld [vmem:[%s14 + $0x58] sm:$0xff]
        %v2521 = vld [vmem:[%s14 + $0x60] sm:$0xff]
        %v2522 = vld [vmem:[%s14 + $0x68] sm:$0xff]
        %v2523 = vld [vmem:[%s14 + $0x70] sm:$0xff]
        %v2524 = vld [vmem:[%s14 + $0x78] sm:$0xff]
        %2526 = vset.pattern.permute.xlu0 0
        %2527 = vperm.xlu0 %2526, %v2509
        %v2528 = vpop.permute.xlu0 %2527
        %2531 = vset.pattern.permute.xlu0 0
        %2532 = vperm.xlu0 %2531, %v2510
        %v2533 = vpop.permute.xlu0 %2532
        %2536 = vset.pattern.permute.xlu0 0
        %2537 = vperm.xlu0 %2536, %v2511
        %v2538 = vpop.permute.xlu0 %2537
        %2541 = vset.pattern.permute.xlu0 0
        %2542 = vperm.xlu0 %2541, %v2512
        %v2543 = vpop.permute.xlu0 %2542
        %2546 = vset.pattern.permute.xlu0 0
        %2547 = vperm.xlu0 %2546, %v2513
        %v2548 = vpop.permute.xlu0 %2547
        %2551 = vset.pattern.permute.xlu0 0
        %2552 = vperm.xlu0 %2551, %v2514
        %v2553 = vpop.permute.xlu0 %2552
        %2556 = vset.pattern.permute.xlu0 0
        %2557 = vperm.xlu0 %2556, %v2515
        %v2558 = vpop.permute.xlu0 %2557
        %2561 = vset.pattern.permute.xlu0 0
        %2562 = vperm.xlu0 %2561, %v2516
        %v2563 = vpop.permute.xlu0 %2562
        %2566 = vset.pattern.permute.xlu0 0
        %2567 = vperm.xlu0 %2566, %v2517
        %v2568 = vpop.permute.xlu0 %2567
        %2571 = vset.pattern.permute.xlu0 0
        %2572 = vperm.xlu0 %2571, %v2518
        %v2573 = vpop.permute.xlu0 %2572
        %2576 = vset.pattern.permute.xlu0 0
        %2577 = vperm.xlu0 %2576, %v2519
        %v2578 = vpop.permute.xlu0 %2577
        %2581 = vset.pattern.permute.xlu0 0
        %2582 = vperm.xlu0 %2581, %v2520
        %v2583 = vpop.permute.xlu0 %2582
        %2586 = vset.pattern.permute.xlu0 0
        %2587 = vperm.xlu0 %2586, %v2521
        %v2588 = vpop.permute.xlu0 %2587
        %2591 = vset.pattern.permute.xlu0 0
        %2592 = vperm.xlu0 %2591, %v2522
        %v2593 = vpop.permute.xlu0 %2592
        %2596 = vset.pattern.permute.xlu0 0
        %2597 = vperm.xlu0 %2596, %v2523
        %v2598 = vpop.permute.xlu0 %2597
        %2601 = vset.pattern.permute.xlu0 0
        %2602 = vperm.xlu0 %2601, %v2524
        %v2603 = vpop.permute.xlu0 %2602
        %2605 = vmatprep.subr.mxu0 0.0
        %2606 = vmatpush1.msra.mxu0 %v2477
        %2607 = vmatprep.subr.mxu0 0.0
        %2608 = vmatpush1.msra.mxu0 %v2478
        %2609 = vmatprep.subr.mxu0 0.0
        %2610 = vmatpush1.msra.mxu0 %v2479
        %2611 = vmatprep.subr.mxu0 0.0
        %2612 = vmatpush1.msra.mxu0 %v2480
        %2613 = vmatprep.subr.mxu0 0.0
        %2614 = vmatpush1.msra.mxu0 %v2481
        %2615 = vmatprep.subr.mxu0 0.0
        %2616 = vmatpush1.msra.mxu0 %v2482
        %2617 = vmatprep.subr.mxu0 0.0
        %2618 = vmatpush1.msra.mxu0 %v2483
        %2619 = vmatprep.subr.mxu0 0.0
        %2620 = vmatpush1.msra.mxu0 %v2484
        %2621 = vmatprep.subr.mxu0 0.0
        %2622 = vmatpush1.msra.mxu0 %v2485
        %2623 = vmatprep.subr.mxu0 0.0
        %2624 = vmatpush1.msra.mxu0 %v2486
        %2625 = vmatprep.subr.mxu0 0.0
        %2626 = vmatpush1.msra.mxu0 %v2487
        %2627 = vmatprep.subr.mxu0 0.0
        %2628 = vmatpush1.msra.mxu0 %v2488
        %2629 = vmatprep.subr.mxu0 0.0
        %2630 = vmatpush1.msra.mxu0 %v2489
        %2631 = vmatprep.subr.mxu0 0.0
        %2632 = vmatpush1.msra.mxu0 %v2490
        %2633 = vmatprep.subr.mxu0 0.0
        %2634 = vmatpush1.msra.mxu0 %v2491
        %2635 = vmatprep.subr.mxu0 0.0
        %2636 = vmatpush1.msra.mxu0 %v2492
        %2637 = vmatprep.subr.mxu0 0.0
        %2638 = vmatpush1.msra.mxu0 0.0
        %2639 = vmatprep.subr.mxu0 0.0
        %2640 = vmatpush1.msra.mxu0 0.0
        %2641 = vmatprep.subr.mxu0 0.0
        %2642 = vmatpush1.msra.mxu0 0.0
        %2643 = vmatprep.subr.mxu0 0.0
        %2644 = vmatpush1.msra.mxu0 0.0
        %2645 = vmatprep.subr.mxu0 0.0
        %2646 = vmatpush1.msra.mxu0 0.0
        %2647 = vmatprep.subr.mxu0 0.0
        %2648 = vmatpush1.msra.mxu0 0.0
        %2649 = vmatprep.subr.mxu0 0.0
        %2650 = vmatpush1.msra.mxu0 0.0
        %2651 = vmatprep.subr.mxu0 0.0
        %2652 = vmatpush1.msra.mxu0 0.0
        %2653 = vmatprep.subr.mxu0 0.0
        %2654 = vmatpush1.msra.mxu0 0.0
        %2655 = vmatprep.subr.mxu0 0.0
        %2656 = vmatpush1.msra.mxu0 0.0
        %2657 = vmatprep.subr.mxu0 0.0
        %2658 = vmatpush1.msra.mxu0 0.0
        %2659 = vmatprep.subr.mxu0 0.0
        %2660 = vmatpush1.msra.mxu0 0.0
        %2661 = vmatprep.subr.mxu0 0.0
        %2662 = vmatpush1.msra.mxu0 0.0
        %2663 = vmatprep.subr.mxu0 0.0
        %2664 = vmatpush1.msra.mxu0 0.0
        %2665 = vmatprep.subr.mxu0 0.0
        %2666 = vmatpush1.msra.mxu0 0.0
        %2667 = vmatprep.subr.mxu0 0.0
        %2668 = vmatpush1.msra.mxu0 0.0
        %2669 = vmatprep.mubr.f32.mxu0 0.0
        %2670 = vmatmul.mubr.f32.gmra.mrb[0].mxu0 %v2493
        %v2671 = vpop.f32.mrb[0].mxu0
        %v2672 = vadd.f32 %v2528, %v2671
        %v2673 = vpop.f32.mrb[0].mxu0
        %2674 = vmatprep.mubr.f32.mxu0 0.0
        %2675 = vmatmul.mubr.f32.gmra.mrb[0].mxu0 %v2494
        %v2676 = vpop.f32.mrb[0].mxu0
        %v2677 = vadd.f32 %v2533, %v2676
        %v2678 = vpop.f32.mrb[0].mxu0
        %2679 = vmatprep.mubr.f32.mxu0 0.0
        %2680 = vmatmul.mubr.f32.gmra.mrb[0].mxu0 %v2495
        %v2681 = vpop.f32.mrb[0].mxu0
        %v2682 = vadd.f32 %v2538, %v2681
        %v2683 = vpop.f32.mrb[0].mxu0
        %2684 = vmatprep.mubr.f32.mxu0 0.0
        %2685 = vmatmul.mubr.f32.gmra.mrb[0].mxu0 %v2496
        %v2686 = vpop.f32.mrb[0].mxu0
        %v2687 = vadd.f32 %v2543, %v2686
        %v2688 = vpop.f32.mrb[0].mxu0
        %2689 = vmatprep.mubr.f32.mxu0 0.0
        %2690 = vmatmul.mubr.f32.gmra.mrb[0].mxu0 %v2497
        %v2691 = vpop.f32.mrb[0].mxu0
        %v2692 = vadd.f32 %v2548, %v2691
        %v2693 = vpop.f32.mrb[0].mxu0
        %2694 = vmatprep.mubr.f32.mxu0 0.0
        %2695 = vmatmul.mubr.f32.gmra.mrb[0].mxu0 %v2498
        %v2696 = vpop.f32.mrb[0].mxu0
        %v2697 = vadd.f32 %v2553, %v2696
        %v2698 = vpop.f32.mrb[0].mxu0
        %2699 = vmatprep.mubr.f32.mxu0 0.0
        %2700 = vmatmul.mubr.f32.gmra.mrb[0].mxu0 %v2499
        %v2701 = vpop.f32.mrb[0].mxu0
        %v2702 = vadd.f32 %v2558, %v2701
        %v2703 = vpop.f32.mrb[0].mxu0
        %2704 = vmatprep.mubr.f32.mxu0 0.0
        %2705 = vmatmul.mubr.f32.gmra.mrb[0].mxu0 %v2500
        %v2706 = vpop.f32.mrb[0].mxu0
        %v2707 = vadd.f32 %v2563, %v2706
        %v2708 = vpop.f32.mrb[0].mxu0
        %2709 = vmatprep.mubr.f32.mxu0 0.0
        %2710 = vmatmul.mubr.f32.gmra.mrb[0].mxu0 %v2501
        %v2711 = vpop.f32.mrb[0].mxu0
        %v2712 = vadd.f32 %v2568, %v2711
        %v2713 = vpop.f32.mrb[0].mxu0
        %2714 = vmatprep.mubr.f32.mxu0 0.0
        %2715 = vmatmul.mubr.f32.gmra.mrb[0].mxu0 %v2502
        %v2716 = vpop.f32.mrb[0].mxu0
        %v2717 = vadd.f32 %v2573, %v2716
        %v2718 = vpop.f32.mrb[0].mxu0
        %2719 = vmatprep.mubr.f32.mxu0 0.0
        %2720 = vmatmul.mubr.f32.gmra.mrb[0].mxu0 %v2503
        %v2721 = vpop.f32.mrb[0].mxu0
        %v2722 = vadd.f32 %v2578, %v2721
        %v2723 = vpop.f32.mrb[0].mxu0
        %2724 = vmatprep.mubr.f32.mxu0 0.0
        %2725 = vmatmul.mubr.f32.gmra.mrb[0].mxu0 %v2504
        %v2726 = vpop.f32.mrb[0].mxu0
        %v2727 = vadd.f32 %v2583, %v2726
        %v2728 = vpop.f32.mrb[0].mxu0
        %2729 = vmatprep.mubr.f32.mxu0 0.0
        %2730 = vmatmul.mubr.f32.gmra.mrb[0].mxu0 %v2505
        %v2731 = vpop.f32.mrb[0].mxu0
        %v2732 = vadd.f32 %v2588, %v2731
        %v2733 = vpop.f32.mrb[0].mxu0
        %2734 = vmatprep.mubr.f32.mxu0 0.0
        %2735 = vmatmul.mubr.f32.gmra.mrb[0].mxu0 %v2506
        %v2736 = vpop.f32.mrb[0].mxu0
        %v2737 = vadd.f32 %v2593, %v2736
        %v2738 = vpop.f32.mrb[0].mxu0
        %2739 = vmatprep.mubr.f32.mxu0 0.0
        %2740 = vmatmul.mubr.f32.gmra.mrb[0].mxu0 %v2507
        %v2741 = vpop.f32.mrb[0].mxu0
        %v2742 = vadd.f32 %v2598, %v2741
        %v2743 = vpop.f32.mrb[0].mxu0
        %2744 = vmatprep.mubr.f32.mxu0 0.0
        %2745 = vmatmul.mubr.f32.gmra.mrb[0].mxu0 %v2508
        %v2746 = vpop.f32.mrb[0].mxu0
        %v2747 = vadd.f32 %v2603, %v2746
        %v2748 = vpop.f32.mrb[0].mxu0
        %2749 = vdwg.mxu0
        %v2750 = vadd.f32 %v2672, %v2108
        %v2751 = vadd.f32 %v2677, %v2109
        %v2752 = vadd.f32 %v2682, %v2110
        %v2753 = vadd.f32 %v2687, %v2111
        %v2754 = vadd.f32 %v2692, %v2112
        %v2755 = vadd.f32 %v2697, %v2113
        %v2756 = vadd.f32 %v2702, %v2114
        %v2757 = vadd.f32 %v2707, %v2115
        %v2758 = vadd.f32 %v2712, %v2116
        %v2759 = vadd.f32 %v2717, %v2117
        %v2760 = vadd.f32 %v2722, %v2118
        %v2761 = vadd.f32 %v2727, %v2119
        %v2762 = vadd.f32 %v2732, %v2120
        %v2763 = vadd.f32 %v2737, %v2121
        %v2764 = vadd.f32 %v2742, %v2122
        %v2765 = vadd.f32 %v2747, %v2123
        %v2766 = vld [vmem:[%s15] sm:$0xff]
        %v2767 = vld [vmem:[%s15 + $0x8] sm:$0xff]
        %v2768 = vld [vmem:[%s16] sm:$0xff]
        %v2769 = vld [vmem:[%s16 + $0x8] sm:$0xff]
        %2771 = vset.pattern.permute.xlu0 0
        %2772 = vperm.xlu0 %2771, %v2768
        %v2773 = vpop.permute.xlu0 %2772
        %2776 = vset.pattern.permute.xlu0 0
        %2777 = vperm.xlu0 %2776, %v2769
        %v2778 = vpop.permute.xlu0 %2777
        %2780 = vmatprep.subr.mxu0 0.0
        %2781 = vmatpush1.msra.mxu0 %v2750
        %2782 = vmatprep.subr.mxu0 0.0
        %2783 = vmatpush1.msra.mxu0 %v2751
        %2784 = vmatprep.subr.mxu0 0.0
        %2785 = vmatpush1.msra.mxu0 %v2752
        %2786 = vmatprep.subr.mxu0 0.0
        %2787 = vmatpush1.msra.mxu0 %v2753
        %2788 = vmatprep.subr.mxu0 0.0
        %2789 = vmatpush1.msra.mxu0 %v2754
        %2790 = vmatprep.subr.mxu0 0.0
        %2791 = vmatpush1.msra.mxu0 %v2755
        %2792 = vmatprep.subr.mxu0 0.0
        %2793 = vmatpush1.msra.mxu0 %v2756
        %2794 = vmatprep.subr.mxu0 0.0
        %2795 = vmatpush1.msra.mxu0 %v2757
        %2796 = vmatprep.subr.mxu0 0.0
        %2797 = vmatpush1.msra.mxu0 %v2758
        %2798 = vmatprep.subr.mxu0 0.0
        %2799 = vmatpush1.msra.mxu0 %v2759
        %2800 = vmatprep.subr.mxu0 0.0
        %2801 = vmatpush1.msra.mxu0 %v2760
        %2802 = vmatprep.subr.mxu0 0.0
        %2803 = vmatpush1.msra.mxu0 %v2761
        %2804 = vmatprep.subr.mxu0 0.0
        %2805 = vmatpush1.msra.mxu0 %v2762
        %2806 = vmatprep.subr.mxu0 0.0
        %2807 = vmatpush1.msra.mxu0 %v2763
        %2808 = vmatprep.subr.mxu0 0.0
        %2809 = vmatpush1.msra.mxu0 %v2764
        %2810 = vmatprep.subr.mxu0 0.0
        %2811 = vmatpush1.msra.mxu0 %v2765
        %2812 = vmatprep.subr.mxu0 0.0
        %2813 = vmatpush1.msra.mxu0 0.0
        %2814 = vmatprep.subr.mxu0 0.0
        %2815 = vmatpush1.msra.mxu0 0.0
        %2816 = vmatprep.subr.mxu0 0.0
        %2817 = vmatpush1.msra.mxu0 0.0
        %2818 = vmatprep.subr.mxu0 0.0
        %2819 = vmatpush1.msra.mxu0 0.0
        %2820 = vmatprep.subr.mxu0 0.0
        %2821 = vmatpush1.msra.mxu0 0.0
        %2822 = vmatprep.subr.mxu0 0.0
        %2823 = vmatpush1.msra.mxu0 0.0
        %2824 = vmatprep.subr.mxu0 0.0
        %2825 = vmatpush1.msra.mxu0 0.0
        %2826 = vmatprep.subr.mxu0 0.0
        %2827 = vmatpush1.msra.mxu0 0.0
        %2828 = vmatprep.subr.mxu0 0.0
        %2829 = vmatpush1.msra.mxu0 0.0
        %2830 = vmatprep.subr.mxu0 0.0
        %2831 = vmatpush1.msra.mxu0 0.0
        %2832 = vmatprep.subr.mxu0 0.0
        %2833 = vmatpush1.msra.mxu0 0.0
        %2834 = vmatprep.subr.mxu0 0.0
        %2835 = vmatpush1.msra.mxu0 0.0
        %2836 = vmatprep.subr.mxu0 0.0
        %2837 = vmatpush1.msra.mxu0 0.0
        %2838 = vmatprep.subr.mxu0 0.0
        %2839 = vmatpush1.msra.mxu0 0.0
        %2840 = vmatprep.subr.mxu0 0.0
        %2841 = vmatpush1.msra.mxu0 0.0
        %2842 = vmatprep.subr.mxu0 0.0
        %2843 = vmatpush1.msra.mxu0 0.0
        %2844 = vmatprep.mubr.f32.mxu0 0.0
        %2845 = vmatmul.mubr.f32.gmra.mrb[0].mxu0 %v2766
        %v2846 = vpop.f32.mrb[0].mxu0
        %v2847 = vadd.f32 %v2773, %v2846
        %v2848 = vpop.f32.mrb[0].mxu0
        %2849 = vmatprep.mubr.f32.mxu0 0.0
        %2850 = vmatmul.mubr.f32.gmra.mrb[0].mxu0 %v2767
        %v2851 = vpop.f32.mrb[0].mxu0
        %v2852 = vadd.f32 %v2778, %v2851
        %v2853 = vpop.f32.mrb[0].mxu0
        %2854 = vdwg.mxu0
        %v2855 = vld [vmem:[%s17] sm:$0xff]
        %v2856 = vld [vmem:[%s18] sm:$0xff]
        %2858 = vset.pattern.permute.xlu0 0
        %2859 = vperm.xlu0 %2858, %v2856
        %v2860 = vpop.permute.xlu0 %2859
        %v2863 = vsel %vm1015, %v2855, 0
        %2865 = vmatprep.subr.mxu0 0.0
        %2866 = vmatpush1.msra.mxu0 %v2847
        %2867 = vmatprep.subr.mxu0 0.0
        %2868 = vmatpush1.msra.mxu0 %v2852
        %2869 = vmatprep.subr.mxu0 0.0
        %2870 = vmatpush1.msra.mxu0 0.0
        %2871 = vmatprep.subr.mxu0 0.0
        %2872 = vmatpush1.msra.mxu0 0.0
        %2873 = vmatprep.subr.mxu0 0.0
        %2874 = vmatpush1.msra.mxu0 0.0
        %2875 = vmatprep.subr.mxu0 0.0
        %2876 = vmatpush1.msra.mxu0 0.0
        %2877 = vmatprep.subr.mxu0 0.0
        %2878 = vmatpush1.msra.mxu0 0.0
        %2879 = vmatprep.subr.mxu0 0.0
        %2880 = vmatpush1.msra.mxu0 0.0
        %2881 = vmatprep.subr.mxu0 0.0
        %2882 = vmatpush1.msra.mxu0 0.0
        %2883 = vmatprep.subr.mxu0 0.0
        %2884 = vmatpush1.msra.mxu0 0.0
        %2885 = vmatprep.subr.mxu0 0.0
        %2886 = vmatpush1.msra.mxu0 0.0
        %2887 = vmatprep.subr.mxu0 0.0
        %2888 = vmatpush1.msra.mxu0 0.0
        %2889 = vmatprep.subr.mxu0 0.0
        %2890 = vmatpush1.msra.mxu0 0.0
        %2891 = vmatprep.subr.mxu0 0.0
        %2892 = vmatpush1.msra.mxu0 0.0
        %2893 = vmatprep.subr.mxu0 0.0
        %2894 = vmatpush1.msra.mxu0 0.0
        %2895 = vmatprep.subr.mxu0 0.0
        %2896 = vmatpush1.msra.mxu0 0.0
        %2897 = vmatprep.subr.mxu0 0.0
        %2898 = vmatpush1.msra.mxu0 0.0
        %2899 = vmatprep.subr.mxu0 0.0
        %2900 = vmatpush1.msra.mxu0 0.0
        %2901 = vmatprep.subr.mxu0 0.0
        %2902 = vmatpush1.msra.mxu0 0.0
        %2903 = vmatprep.subr.mxu0 0.0
        %2904 = vmatpush1.msra.mxu0 0.0
        %2905 = vmatprep.subr.mxu0 0.0
        %2906 = vmatpush1.msra.mxu0 0.0
        %2907 = vmatprep.subr.mxu0 0.0
        %2908 = vmatpush1.msra.mxu0 0.0
        %2909 = vmatprep.subr.mxu0 0.0
        %2910 = vmatpush1.msra.mxu0 0.0
        %2911 = vmatprep.subr.mxu0 0.0
        %2912 = vmatpush1.msra.mxu0 0.0
        %2913 = vmatprep.subr.mxu0 0.0
        %2914 = vmatpush1.msra.mxu0 0.0
        %2915 = vmatprep.subr.mxu0 0.0
        %2916 = vmatpush1.msra.mxu0 0.0
        %2917 = vmatprep.subr.mxu0 0.0
        %2918 = vmatpush1.msra.mxu0 0.0
        %2919 = vmatprep.subr.mxu0 0.0
        %2920 = vmatpush1.msra.mxu0 0.0
        %2921 = vmatprep.subr.mxu0 0.0
        %2922 = vmatpush1.msra.mxu0 0.0
        %2923 = vmatprep.subr.mxu0 0.0
        %2924 = vmatpush1.msra.mxu0 0.0
        %2925 = vmatprep.subr.mxu0 0.0
        %2926 = vmatpush1.msra.mxu0 0.0
        %2927 = vmatprep.subr.mxu0 0.0
        %2928 = vmatpush1.msra.mxu0 0.0
        %2929 = vmatprep.mubr.f32.mxu0 0.0
        %2930 = vmatmul.mubr.f32.gmra.mrb[0].mxu0 %v2863
        %v2931 = vpop.f32.mrb[0].mxu0
        %v2932 = vadd.f32 %v2860, %v2931
        %v2933 = vpop.f32.mrb[0].mxu0
        %2934 = vdwg.mxu0
        %2935 = vst [vmem:[%s675] sm:$0xff] %v2932
        %s2936 = sand.u32 %s450, 1
        %s2937 = scalar_lea.sflag [#allocation4], %s2936
        %s2938 = sand.u32 %s450, 1
        %s2939 = smul.addr %s2938, 8
        %s2940 = scalar_lea.vmem [#allocation3], %s2939
        // Predicated region
        $region135: #{conditional_grasp_pose_encoder.1} parent=129 // pred_check
          %p2941 = pneg %p460
        $region136: #{conditional_grasp_pose_encoder.1} parent=129 // pred_check_branch
          %2943 = sbr.rel (%p2941) target = $region138
        $region137: #{conditional_grasp_pose_encoder.1} parent=129 // pred_region
          %s2945 = ssub.s32 128, 128
          %2946 = vsyncadd %s2937, %s2945
          %s2947 = smul.addr %s33, 128
          %s2948 = scalar_lea.hbm %s19, %s2947
          %s2950 = sshll.u32 %s2940, 4
          %s2951 = int_to_ptr.vmem [resolvable:$true] %s2950
          %2953 = dma.vmem_to_hbm [thread:$0]  %s2951, 128, %s2948, %s2937
        $region138: #{conditional_grasp_pose_encoder.1} parent=129 // pred_fallthru
          _
      $region130: #{conditional_grasp_pose_encoder.1} parent=5 // pred_fallthru
        _
      %p2954 = scmp.le.s32.totalorder 2, %s28
      // Predicated region
      $region139: #{conditional_grasp_pose_encoder.1} parent=5 // pred_check
        %p2955 = pneg %p2954
      $region140: #{conditional_grasp_pose_encoder.1} parent=5 // pred_check_branch
        %2957 = sbr.rel (%p2955) target = $region142
      $region141: #{conditional_grasp_pose_encoder.1} parent=5 // pred_region
        %s2958 = ssub.s32 %s28, 2
        // Predicated region
        $region143: #{conditional_grasp_pose_encoder.1} parent=141 // pred_check
          %p2959 = pneg %p466
        $region144: #{conditional_grasp_pose_encoder.1} parent=141 // pred_check_branch
          %2961 = sbr.rel (%p2959) target = $region146
        $region145: #{conditional_grasp_pose_encoder.1} parent=141 // pred_region
          %s2962 = sand.u32 %s451, 1
          %s2963 = scalar_lea.sflag [#allocation4], %s2962
          %s2964 = sand.u32 %s451, 1
          %s2965 = smul.addr %s2964, 8
          %s2966 = scalar_lea.vmem [#allocation3], %s2965
          %2967 = dma.done %s2963, 128
        $region146: #{conditional_grasp_pose_encoder.1} parent=141 // pred_fallthru
          _
      $region142: #{conditional_grasp_pose_encoder.1} parent=5 // pred_fallthru
        _
    $region6: #{conditional_grasp_pose_encoder.1} parent=1 // loop_footer
      %s32 = sadd.s32 1, %s28
    $region7: #{conditional_grasp_pose_encoder.1} parent=1 // loop_footer_branch
      %27 = sbr.rel target = $region3
    $region8: #{conditional_grasp_pose_encoder.1} parent=1 // loop_exit
      _
    %2968 = vsyncpa [#allocation4], 1
    %s2969 = scalar_lea.sflag [#allocation4], 1
    %2970 = vsyncpa %s2969, 1

</llo_original>
